<compile_context>
chip_gen: v7x
topology: tpu7x:2x2x1
jax: 0.10.0
libtpu: 0.0.40
codegen_flags: <defaults>
</compile_context>

<pallas_src>
import functools

import jax
import jax.numpy as jnp
from jax import lax
from jax.experimental import pallas as pl
from jax.experimental.pallas import tpu as pltpu


def _dropout_u24(shape, salt, cout):
    """Counter-based int32 hash -> 24-bit uniforms; pure jnp ops (portable)."""
    row = lax.broadcasted_iota(jnp.int32, shape, 0)
    col = lax.broadcasted_iota(jnp.int32, shape, 1)
    r = row * jnp.int32(cout) + col + salt
    # xorshift-multiply mixing; mask to 31 bits before each shift so the
    # arithmetic right shift behaves like a logical shift.
    r = jnp.bitwise_and(r, jnp.int32(0x7FFFFFFF))
    r = jnp.bitwise_xor(r, r >> 15)
    r = r * jnp.int32(0x7FEB352D)
    r = jnp.bitwise_and(r, jnp.int32(0x7FFFFFFF))
    r = jnp.bitwise_xor(r, r >> 13)
    r = r * jnp.int32(0x68E31DA5)
    r = jnp.bitwise_and(r, jnp.int32(0x7FFFFFFF))
    r = jnp.bitwise_xor(r, r >> 16)
    return jnp.bitwise_and(r, jnp.int32(0x00FFFFFF))       # U{0 .. 2^24 - 1}


def _ulayer_down_kernel(seed_ref, x_ref, w_ref, b_ref, slo_ref, shi_ref,
                        o_ref, y_ref, *, W, Ho, Wo, Hp, Wp, Cout, p):
    """One batch element per grid step.

    x_ref  : (1, H*W + 2, Cin)  flat NHWC image (+2 zero rows)     VMEM
    w_ref  : (9, Cin, Cout)     conv taps, k = 3*di + dj           VMEM
    b_ref  : (1, Cout)                                             VMEM
    slo/shi: (Wp, Wo)           0/1 column-selection matrices      VMEM
    o_ref  : (1, Hp, Wp, Cout)  pooled output                      VMEM
    y_ref  : (Ho*W, Cout)       conv + ReLU + dropout scratch      VMEM
    """
    n = pl.program_id(0)
    M = Ho * W

    # ---- 3x3 valid conv: 9 big accumulated MXU matmuls over shifted slices.
    # (For v6e/v7x the matmul inputs could be cast to bf16 to halve DMA bytes;
    # kept f32 here for exactness of the correctness check.)
    acc = jnp.zeros((M, Cout), jnp.float32)
    for di in range(3):
        for dj in range(3):
            xs = x_ref[0, pl.ds(di * W + dj, M), :]            # (M, Cin)
            acc = acc + jnp.dot(xs, w_ref[3 * di + dj],
                                preferred_element_type=jnp.float32)
    y = jnp.maximum(acc + b_ref[...], 0.0)                     # bias + ReLU

    # ---- dropout: one vectorized draw per image, integer-domain keep test.
    if p > 0.0:
        salt = (seed_ref[0] * jnp.int32(1000003)
                + n * jnp.int32(M * Cout) + jnp.int32(0x1234D))
        u24 = _dropout_u24((M, Cout), salt, Cout)
        thresh = jnp.int32(int(round(p * (1 << 24))))
        keep = u24 >= thresh                                   # P(keep) = 1-p
        y = jnp.where(keep, y * jnp.float32(1.0 / (1.0 - p)), 0.0)

    y_ref[...] = y                                             # single store

    # ---- MaxPool2d(2, stride 2, padding 1).  y >= 0, so the -inf pad is
    # equivalent to clamping window indices into [0, Ho) x [0, Wo).
    s_lo = slo_ref[...]                                        # hoisted
    s_hi = shi_ref[...]

    def pool_row(pq, carry):
        ra = jnp.maximum(2 * pq - 1, 0)                        # clamped rows
        rb = jnp.minimum(2 * pq, Ho - 1)
        row_a = y_ref[pl.ds(ra * W, Wo), :]                    # (Wo, Cout)
        row_b = y_ref[pl.ds(rb * W, Wo), :]
        rmax = jnp.maximum(row_a, row_b)
        lo = jnp.dot(s_lo, rmax, preferred_element_type=jnp.float32)
        hi = jnp.dot(s_hi, rmax, preferred_element_type=jnp.float32)
        o_ref[0, pq] = jnp.maximum(lo, hi)                     # (Wp, Cout)
        return carry

    lax.fori_loop(0, Hp, pool_row, 0)


def ulayer_down(x_nchw, w_hwio, bias, *, seed=0, p=0.4):
    """Forward pass of ULayerDown.  Input/output are NCHW like PyTorch."""
    N, Cin, H, W = x_nchw.shape
    assert w_hwio.shape[:3] == (3, 3, Cin)
    Cout = w_hwio.shape[-1]
    assert 0.0 <= p < 1.0
    Ho, Wo = H - 2, W - 2                      # valid 3x3 conv
    assert Ho > 0 and Wo > 0
    # TODO(synk): odd conv-output sizes (uneven last pool window) not handled.
    assert Ho % 2 == 0 and Wo % 2 == 0
    Hp, Wp = Ho // 2 + 1, Wo // 2 + 1          # MaxPool2d(2, padding=1)

    # Flatten each image to (H*W, Cin) and append 2 zero rows so every shifted
    # conv slice x_flat[di*W+dj : di*W+dj + Ho*W] stays in bounds.
    x_nhwc = jnp.transpose(x_nchw, (0, 2, 3, 1)).astype(jnp.float32)
    x_flat = jnp.pad(x_nhwc.reshape(N, H * W, Cin), ((0, 0), (0, 2), (0, 0)))
    w_flat = w_hwio.astype(jnp.float32).reshape(9, Cin, Cout)
    b2 = bias.reshape(1, Cout).astype(jnp.float32)

    # Constant 0/1 selection matrices for the column half of the max pool
    # (built once here instead of rebuilt with iota every grid step).
    q = jnp.arange(Wp)
    cols = jnp.arange(Wo)
    s_lo = (jnp.clip(2 * q - 1, 0, Wo - 1)[:, None] == cols[None, :]
            ).astype(jnp.float32)
    s_hi = (jnp.clip(2 * q, 0, Wo - 1)[:, None] == cols[None, :]
            ).astype(jnp.float32)

    seed_arr = jnp.array([seed], dtype=jnp.int32)
    kernel = functools.partial(_ulayer_down_kernel, W=W, Ho=Ho, Wo=Wo,
                               Hp=Hp, Wp=Wp, Cout=Cout, p=float(p))

    # TODO(synk): for large images add a grid axis over conv-row blocks (with a
    # 2-row halo) so the per-step working set fits v7x's smaller VMEM; the demo
    # shapes here fit comfortably in a single block per image.
    out_nhwc = pl.pallas_call(
        kernel,
        out_shape=jax.ShapeDtypeStruct((N, Hp, Wp, Cout), jnp.float32),
        grid_spec=pltpu.PrefetchScalarGridSpec(
            num_scalar_prefetch=1,
            grid=(N,),
            in_specs=[
                pl.BlockSpec((1, H * W + 2, Cin), lambda n, s: (n, 0, 0)),
                pl.BlockSpec((9, Cin, Cout), lambda n, s: (0, 0, 0)),
                pl.BlockSpec((1, Cout), lambda n, s: (0, 0)),
                pl.BlockSpec((Wp, Wo), lambda n, s: (0, 0)),
                pl.BlockSpec((Wp, Wo), lambda n, s: (0, 0)),
            ],
            out_specs=pl.BlockSpec((1, Hp, Wp, Cout),
                                   lambda n, s: (n, 0, 0, 0)),
            scratch_shapes=[pltpu.VMEM((Ho * W, Cout), jnp.float32)],
        ),
        compiler_params=pltpu.CompilerParams(
            dimension_semantics=("parallel",)),   # batch -> 2 TCs on v7x
    )(seed_arr, x_flat, w_flat, b2, s_lo, s_hi)

    return jnp.transpose(out_nhwc, (0, 3, 1, 2))   # back to NCHW


def _reference_no_dropout(x_nchw, w_hwio, bias):
    """Pure-JAX reference (dropout disabled) for correctness checking."""
    x_nhwc = jnp.transpose(x_nchw, (0, 2, 3, 1))
    y = lax.conv_general_dilated(
        x_nhwc, w_hwio, window_strides=(1, 1), padding="VALID",
        dimension_numbers=("NHWC", "HWIO", "NHWC"))
    y = jnp.maximum(y + bias.reshape(1, 1, 1, -1), 0.0)
    y = lax.reduce_window(y, -jnp.inf, lax.max,
                          window_dimensions=(1, 2, 2, 1),
                          window_strides=(1, 2, 2, 1),
                          padding=((0, 0), (1, 1), (1, 1), (0, 0)))
    return jnp.transpose(y, (0, 3, 1, 2))


if __name__ == "__main__":
    key = jax.random.PRNGKey(0)
    kx, kw, kb = jax.random.split(key, 3)

    N, Cin, Cout, H, W = 2, 4, 8, 16, 16
    x = jax.random.normal(kx, (N, Cin, H, W), jnp.float32)
    w = 0.1 * jax.random.normal(kw, (3, 3, Cin, Cout), jnp.float32)  # HWIO
    b = 0.1 * jax.random.normal(kb, (Cout,), jnp.float32)

    # 1) correctness of conv + ReLU + maxpool path (dropout prob = 0)
    out_nodrop = jax.block_until_ready(ulayer_down(x, w, b, seed=0, p=0.0))
    ref = jax.block_until_ready(_reference_no_dropout(x, w, b))
    assert out_nodrop.shape == ref.shape == (N, Cout, 8, 8)
    assert jnp.allclose(out_nodrop, ref, atol=1e-2, rtol=1e-2), (
        float(jnp.max(jnp.abs(out_nodrop - ref))))

    # 2) full forward pass with dropout p=0.4 (as in the module)
    out = jax.block_until_ready(ulayer_down(x, w, b, seed=123, p=0.4))
    assert out.shape == (N, Cout, 8, 8)
    assert bool(jnp.all(jnp.isfinite(out)))
    assert bool(jnp.all(out >= 0.0))              # ReLU -> maxpool keeps >= 0
    assert not bool(jnp.allclose(out, out_nodrop))  # dropout actually applied

    print("KERNEL_OK")
</pallas_src>

<mosaic_0001>
module attributes {stable_mosaic.version = 11 : i64} {
  func.func @_ulayer_down_kernel(%arg0: i32, %arg1: memref<1xi32, #tpu.memory_space<smem>>, %arg2: memref<1x258x4xf32, #tpu.memory_space<vmem>>, %arg3: memref<9x4x8xf32, #tpu.memory_space<vmem>>, %arg4: memref<1x8xf32, #tpu.memory_space<vmem>>, %arg5: memref<8x14xf32, #tpu.memory_space<vmem>>, %arg6: memref<8x14xf32, #tpu.memory_space<vmem>>, %arg7: memref<1x8x8x8xf32, #tpu.memory_space<vmem>>, %arg8: memref<224x8xf32, #tpu.memory_space<vmem>>) attributes {dimension_semantics = [#tpu.dimension_semantics<parallel>], iteration_bounds = array<i64: 2>, scalar_prefetch = 1 : i64, scratch_operands = 1 : i64, tpu.core_type = #tpu.core_type<tc>, window_params = [{transform_indices = @transform_0, window_bounds = array<i64: 1, 258, 4>}, {pipeline_mode = #tpu.pipeline_mode<synchronous>, transform_indices = @transform_1, window_bounds = array<i64: 9, 4, 8>}, {pipeline_mode = #tpu.pipeline_mode<synchronous>, transform_indices = @transform_2, window_bounds = array<i64: 1, 8>}, {pipeline_mode = #tpu.pipeline_mode<synchronous>, transform_indices = @transform_3, window_bounds = array<i64: 8, 14>}, {pipeline_mode = #tpu.pipeline_mode<synchronous>, transform_indices = @transform_4, window_bounds = array<i64: 8, 14>}, {transform_indices = @transform_5, window_bounds = array<i64: 1, 8, 8, 8>}]} {
    %cst = arith.constant 0.000000e+00 : f32
    %0 = vector.broadcast %cst : f32 to vector<224x8xf32>
    %c0 = arith.constant 0 : index
    %c0_0 = arith.constant 0 : index
    %c0_1 = arith.constant 0 : index
    %1 = vector.load %arg2[%c0, %c0_0, %c0_1] : memref<1x258x4xf32, #tpu.memory_space<vmem>>, vector<1x224x4xf32>
    %2 = vector.shape_cast %1 : vector<1x224x4xf32> to vector<224x4xf32>
    %c0_2 = arith.constant 0 : index
    %c0_3 = arith.constant 0 : index
    %c0_4 = arith.constant 0 : index
    %3 = vector.load %arg3[%c0_2, %c0_3, %c0_4] : memref<9x4x8xf32, #tpu.memory_space<vmem>>, vector<1x4x8xf32>
    %4 = vector.shape_cast %3 : vector<1x4x8xf32> to vector<4x8xf32>
    %cst_5 = arith.constant dense<0.000000e+00> : vector<224x8xf32>
    %5 = tpu.matmul %2, %4, %cst_5 {dimension_numbers = #tpu.dot_dimension_numbers<[1], [0], [0], [1], [0, 0, 1, 1], [], []>} : vector<224x4xf32>, vector<4x8xf32>, vector<224x8xf32> -> vector<224x8xf32>
    %6 = arith.addf %0, %5 : vector<224x8xf32>
    %c0_6 = arith.constant 0 : index
    %c1 = arith.constant 1 : index
    %c0_7 = arith.constant 0 : index
    %7 = vector.load %arg2[%c0_6, %c1, %c0_7] : memref<1x258x4xf32, #tpu.memory_space<vmem>>, vector<1x224x4xf32>
    %8 = vector.shape_cast %7 : vector<1x224x4xf32> to vector<224x4xf32>
    %c1_8 = arith.constant 1 : index
    %c0_9 = arith.constant 0 : index
    %c0_10 = arith.constant 0 : index
    %9 = vector.load %arg3[%c1_8, %c0_9, %c0_10] : memref<9x4x8xf32, #tpu.memory_space<vmem>>, vector<1x4x8xf32>
    %10 = vector.shape_cast %9 : vector<1x4x8xf32> to vector<4x8xf32>
    %cst_11 = arith.constant dense<0.000000e+00> : vector<224x8xf32>
    %11 = tpu.matmul %8, %10, %cst_11 {dimension_numbers = #tpu.dot_dimension_numbers<[1], [0], [0], [1], [0, 0, 1, 1], [], []>} : vector<224x4xf32>, vector<4x8xf32>, vector<224x8xf32> -> vector<224x8xf32>
    %12 = arith.addf %6, %11 : vector<224x8xf32>
    %c0_12 = arith.constant 0 : index
    %c2 = arith.constant 2 : index
    %c0_13 = arith.constant 0 : index
    %13 = vector.load %arg2[%c0_12, %c2, %c0_13] : memref<1x258x4xf32, #tpu.memory_space<vmem>>, vector<1x224x4xf32>
    %14 = vector.shape_cast %13 : vector<1x224x4xf32> to vector<224x4xf32>
    %c2_14 = arith.constant 2 : index
    %c0_15 = arith.constant 0 : index
    %c0_16 = arith.constant 0 : index
    %15 = vector.load %arg3[%c2_14, %c0_15, %c0_16] : memref<9x4x8xf32, #tpu.memory_space<vmem>>, vector<1x4x8xf32>
    %16 = vector.shape_cast %15 : vector<1x4x8xf32> to vector<4x8xf32>
    %cst_17 = arith.constant dense<0.000000e+00> : vector<224x8xf32>
    %17 = tpu.matmul %14, %16, %cst_17 {dimension_numbers = #tpu.dot_dimension_numbers<[1], [0], [0], [1], [0, 0, 1, 1], [], []>} : vector<224x4xf32>, vector<4x8xf32>, vector<224x8xf32> -> vector<224x8xf32>
    %18 = arith.addf %12, %17 : vector<224x8xf32>
    %c0_18 = arith.constant 0 : index
    %c16 = arith.constant 16 : index
    %c0_19 = arith.constant 0 : index
    %19 = vector.load %arg2[%c0_18, %c16, %c0_19] : memref<1x258x4xf32, #tpu.memory_space<vmem>>, vector<1x224x4xf32>
    %20 = vector.shape_cast %19 : vector<1x224x4xf32> to vector<224x4xf32>
    %c3 = arith.constant 3 : index
    %c0_20 = arith.constant 0 : index
    %c0_21 = arith.constant 0 : index
    %21 = vector.load %arg3[%c3, %c0_20, %c0_21] : memref<9x4x8xf32, #tpu.memory_space<vmem>>, vector<1x4x8xf32>
    %22 = vector.shape_cast %21 : vector<1x4x8xf32> to vector<4x8xf32>
    %cst_22 = arith.constant dense<0.000000e+00> : vector<224x8xf32>
    %23 = tpu.matmul %20, %22, %cst_22 {dimension_numbers = #tpu.dot_dimension_numbers<[1], [0], [0], [1], [0, 0, 1, 1], [], []>} : vector<224x4xf32>, vector<4x8xf32>, vector<224x8xf32> -> vector<224x8xf32>
    %24 = arith.addf %18, %23 : vector<224x8xf32>
    %c0_23 = arith.constant 0 : index
    %c17 = arith.constant 17 : index
    %c0_24 = arith.constant 0 : index
    %25 = vector.load %arg2[%c0_23, %c17, %c0_24] : memref<1x258x4xf32, #tpu.memory_space<vmem>>, vector<1x224x4xf32>
    %26 = vector.shape_cast %25 : vector<1x224x4xf32> to vector<224x4xf32>
    %c4 = arith.constant 4 : index
    %c0_25 = arith.constant 0 : index
    %c0_26 = arith.constant 0 : index
    %27 = vector.load %arg3[%c4, %c0_25, %c0_26] : memref<9x4x8xf32, #tpu.memory_space<vmem>>, vector<1x4x8xf32>
    %28 = vector.shape_cast %27 : vector<1x4x8xf32> to vector<4x8xf32>
    %cst_27 = arith.constant dense<0.000000e+00> : vector<224x8xf32>
    %29 = tpu.matmul %26, %28, %cst_27 {dimension_numbers = #tpu.dot_dimension_numbers<[1], [0], [0], [1], [0, 0, 1, 1], [], []>} : vector<224x4xf32>, vector<4x8xf32>, vector<224x8xf32> -> vector<224x8xf32>
    %30 = arith.addf %24, %29 : vector<224x8xf32>
    %c0_28 = arith.constant 0 : index
    %c18 = arith.constant 18 : index
    %c0_29 = arith.constant 0 : index
    %31 = vector.load %arg2[%c0_28, %c18, %c0_29] : memref<1x258x4xf32, #tpu.memory_space<vmem>>, vector<1x224x4xf32>
    %32 = vector.shape_cast %31 : vector<1x224x4xf32> to vector<224x4xf32>
    %c5 = arith.constant 5 : index
    %c0_30 = arith.constant 0 : index
    %c0_31 = arith.constant 0 : index
    %33 = vector.load %arg3[%c5, %c0_30, %c0_31] : memref<9x4x8xf32, #tpu.memory_space<vmem>>, vector<1x4x8xf32>
    %34 = vector.shape_cast %33 : vector<1x4x8xf32> to vector<4x8xf32>
    %cst_32 = arith.constant dense<0.000000e+00> : vector<224x8xf32>
    %35 = tpu.matmul %32, %34, %cst_32 {dimension_numbers = #tpu.dot_dimension_numbers<[1], [0], [0], [1], [0, 0, 1, 1], [], []>} : vector<224x4xf32>, vector<4x8xf32>, vector<224x8xf32> -> vector<224x8xf32>
    %36 = arith.addf %30, %35 : vector<224x8xf32>
    %c0_33 = arith.constant 0 : index
    %c32 = arith.constant 32 : index
    %c0_34 = arith.constant 0 : index
    %37 = vector.load %arg2[%c0_33, %c32, %c0_34] : memref<1x258x4xf32, #tpu.memory_space<vmem>>, vector<1x224x4xf32>
    %38 = vector.shape_cast %37 : vector<1x224x4xf32> to vector<224x4xf32>
    %c6 = arith.constant 6 : index
    %c0_35 = arith.constant 0 : index
    %c0_36 = arith.constant 0 : index
    %39 = vector.load %arg3[%c6, %c0_35, %c0_36] : memref<9x4x8xf32, #tpu.memory_space<vmem>>, vector<1x4x8xf32>
    %40 = vector.shape_cast %39 : vector<1x4x8xf32> to vector<4x8xf32>
    %cst_37 = arith.constant dense<0.000000e+00> : vector<224x8xf32>
    %41 = tpu.matmul %38, %40, %cst_37 {dimension_numbers = #tpu.dot_dimension_numbers<[1], [0], [0], [1], [0, 0, 1, 1], [], []>} : vector<224x4xf32>, vector<4x8xf32>, vector<224x8xf32> -> vector<224x8xf32>
    %42 = arith.addf %36, %41 : vector<224x8xf32>
    %c0_38 = arith.constant 0 : index
    %c33 = arith.constant 33 : index
    %c0_39 = arith.constant 0 : index
    %43 = vector.load %arg2[%c0_38, %c33, %c0_39] : memref<1x258x4xf32, #tpu.memory_space<vmem>>, vector<1x224x4xf32>
    %44 = vector.shape_cast %43 : vector<1x224x4xf32> to vector<224x4xf32>
    %c7 = arith.constant 7 : index
    %c0_40 = arith.constant 0 : index
    %c0_41 = arith.constant 0 : index
    %45 = vector.load %arg3[%c7, %c0_40, %c0_41] : memref<9x4x8xf32, #tpu.memory_space<vmem>>, vector<1x4x8xf32>
    %46 = vector.shape_cast %45 : vector<1x4x8xf32> to vector<4x8xf32>
    %cst_42 = arith.constant dense<0.000000e+00> : vector<224x8xf32>
    %47 = tpu.matmul %44, %46, %cst_42 {dimension_numbers = #tpu.dot_dimension_numbers<[1], [0], [0], [1], [0, 0, 1, 1], [], []>} : vector<224x4xf32>, vector<4x8xf32>, vector<224x8xf32> -> vector<224x8xf32>
    %48 = arith.addf %42, %47 : vector<224x8xf32>
    %c0_43 = arith.constant 0 : index
    %c34 = arith.constant 34 : index
    %c0_44 = arith.constant 0 : index
    %49 = vector.load %arg2[%c0_43, %c34, %c0_44] : memref<1x258x4xf32, #tpu.memory_space<vmem>>, vector<1x224x4xf32>
    %50 = vector.shape_cast %49 : vector<1x224x4xf32> to vector<224x4xf32>
    %c8 = arith.constant 8 : index
    %c0_45 = arith.constant 0 : index
    %c0_46 = arith.constant 0 : index
    %51 = vector.load %arg3[%c8, %c0_45, %c0_46] : memref<9x4x8xf32, #tpu.memory_space<vmem>>, vector<1x4x8xf32>
    %52 = vector.shape_cast %51 : vector<1x4x8xf32> to vector<4x8xf32>
    %cst_47 = arith.constant dense<0.000000e+00> : vector<224x8xf32>
    %53 = tpu.matmul %50, %52, %cst_47 {dimension_numbers = #tpu.dot_dimension_numbers<[1], [0], [0], [1], [0, 0, 1, 1], [], []>} : vector<224x4xf32>, vector<4x8xf32>, vector<224x8xf32> -> vector<224x8xf32>
    %54 = arith.addf %48, %53 : vector<224x8xf32>
    %c0_48 = arith.constant 0 : index
    %c0_49 = arith.constant 0 : index
    %55 = vector.load %arg4[%c0_48, %c0_49] : memref<1x8xf32, #tpu.memory_space<vmem>>, vector<1x8xf32>
    %56 = vector.broadcast %55 : vector<1x8xf32> to vector<224x8xf32>
    %57 = arith.addf %54, %56 : vector<224x8xf32>
    %cst_50 = arith.constant 0.000000e+00 : f32
    %58 = vector.broadcast %cst_50 : f32 to vector<224x8xf32>
    %59 = arith.maximumf %57, %58 : vector<224x8xf32>
    %c0_51 = arith.constant 0 : index
    %c0_52 = arith.constant 0 : index
    %60 = vector.load %arg8[%c0_51, %c0_52] : memref<224x8xf32, #tpu.memory_space<vmem>>, vector<224x8xf32>
    tpu.vector_store %arg8[%c0_51, %c0_52], %59 {strides = array<i32>} : memref<224x8xf32, #tpu.memory_space<vmem>>, vector<224x8xf32>,
    %c0_53 = arith.constant 0 : index
    %c0_54 = arith.constant 0 : index
    %61 = vector.load %arg5[%c0_53, %c0_54] : memref<8x14xf32, #tpu.memory_space<vmem>>, vector<8x14xf32>
    %c0_55 = arith.constant 0 : index
    %c0_56 = arith.constant 0 : index
    %62 = vector.load %arg6[%c0_55, %c0_56] : memref<8x14xf32, #tpu.memory_space<vmem>>, vector<8x14xf32>
    %c0_i32 = arith.constant 0 : i32
    %c8_i32 = arith.constant 8 : i32
    %63 = arith.addi %c0_i32, %c8_i32 : i32
    %c1_i32 = arith.constant 1 : i32
    scf.for %arg9 = %c0_i32 to %63 step %c1_i32  : i32 {
      %c2_i32 = arith.constant 2 : i32
      %64 = arith.muli %c2_i32, %arg9 : i32
      %c1_i32_58 = arith.constant 1 : i32
      %65 = arith.subi %64, %c1_i32_58 : i32
      %c0_i32_59 = arith.constant 0 : i32
      %66 = arith.maxsi %65, %c0_i32_59 : i32
      %c2_i32_60 = arith.constant 2 : i32
      %67 = arith.muli %c2_i32_60, %arg9 : i32
      %c13_i32 = arith.constant 13 : i32
      %68 = arith.minsi %67, %c13_i32 : i32
      %c16_i32 = arith.constant 16 : i32
      %69 = arith.muli %66, %c16_i32 : i32
      %70 = arith.index_cast %69 : i32 to index
      %c0_61 = arith.constant 0 : index
      %71 = vector.load %arg8[%70, %c0_61] : memref<224x8xf32, #tpu.memory_space<vmem>>, vector<14x8xf32>
      %c16_i32_62 = arith.constant 16 : i32
      %72 = arith.muli %68, %c16_i32_62 : i32
      %73 = arith.index_cast %72 : i32 to index
      %c0_63 = arith.constant 0 : index
      %74 = vector.load %arg8[%73, %c0_63] : memref<224x8xf32, #tpu.memory_space<vmem>>, vector<14x8xf32>
      %75 = arith.maximumf %71, %74 : vector<14x8xf32>
      %cst_64 = arith.constant dense<0.000000e+00> : vector<8x8xf32>
      %76 = tpu.matmul %61, %75, %cst_64 {dimension_numbers = #tpu.dot_dimension_numbers<[1], [0], [0], [1], [0, 0, 1, 1], [], []>} : vector<8x14xf32>, vector<14x8xf32>, vector<8x8xf32> -> vector<8x8xf32>
      %cst_65 = arith.constant dense<0.000000e+00> : vector<8x8xf32>
      %77 = tpu.matmul %62, %75, %cst_65 {dimension_numbers = #tpu.dot_dimension_numbers<[1], [0], [0], [1], [0, 0, 1, 1], [], []>} : vector<8x14xf32>, vector<14x8xf32>, vector<8x8xf32> -> vector<8x8xf32>
      %78 = arith.maximumf %76, %77 : vector<8x8xf32>
      %c0_66 = arith.constant 0 : index
      %79 = arith.index_cast %arg9 : i32 to index
      %c0_67 = arith.constant 0 : index
      %c0_68 = arith.constant 0 : index
      %80 = vector.load %arg7[%c0_66, %79, %c0_67, %c0_68] : memref<1x8x8x8xf32, #tpu.memory_space<vmem>>, vector<1x1x8x8xf32>
      %81 = vector.shape_cast %80 : vector<1x1x8x8xf32> to vector<8x8xf32>
      %82 = vector.shape_cast %78 : vector<8x8xf32> to vector<1x1x8x8xf32>
      tpu.vector_store %arg7[%c0_66, %79, %c0_67, %c0_68], %82 {strides = array<i32>} : memref<1x8x8x8xf32, #tpu.memory_space<vmem>>, vector<1x1x8x8xf32>,
    }
    %c8_i32_57 = arith.constant 8 : i32
    return
  }
  func.func @transform_0(%arg0: i32, %arg1: memref<1xi32, #tpu.memory_space<smem>>) -> (i32, i32, i32) {
    %c0_i32 = arith.constant 0 : i32
    %c0_i32_0 = arith.constant 0 : i32
    %c0_i32_1 = arith.constant 0 : i32
    return %arg0, %c0_i32, %c0_i32_0 : i32, i32, i32
  }
  func.func @transform_1(%arg0: i32, %arg1: memref<1xi32, #tpu.memory_space<smem>>) -> (i32, i32, i32) {
    %c0_i32 = arith.constant 0 : i32
    %c0_i32_0 = arith.constant 0 : i32
    %c0_i32_1 = arith.constant 0 : i32
    %c0_i32_2 = arith.constant 0 : i32
    return %c0_i32, %c0_i32_0, %c0_i32_1 : i32, i32, i32
  }
  func.func @transform_2(%arg0: i32, %arg1: memref<1xi32, #tpu.memory_space<smem>>) -> (i32, i32) {
    %c0_i32 = arith.constant 0 : i32
    %c0_i32_0 = arith.constant 0 : i32
    %c0_i32_1 = arith.constant 0 : i32
    return %c0_i32, %c0_i32_0 : i32, i32
  }
  func.func @transform_3(%arg0: i32, %arg1: memref<1xi32, #tpu.memory_space<smem>>) -> (i32, i32) {
    %c0_i32 = arith.constant 0 : i32
    %c0_i32_0 = arith.constant 0 : i32
    %c0_i32_1 = arith.constant 0 : i32
    return %c0_i32, %c0_i32_0 : i32, i32
  }
  func.func @transform_4(%arg0: i32, %arg1: memref<1xi32, #tpu.memory_space<smem>>) -> (i32, i32) {
    %c0_i32 = arith.constant 0 : i32
    %c0_i32_0 = arith.constant 0 : i32
    %c0_i32_1 = arith.constant 0 : i32
    return %c0_i32, %c0_i32_0 : i32, i32
  }
  func.func @transform_5(%arg0: i32, %arg1: memref<1xi32, #tpu.memory_space<smem>>) -> (i32, i32, i32, i32) {
    %c0_i32 = arith.constant 0 : i32
    %c0_i32_0 = arith.constant 0 : i32
    %c0_i32_1 = arith.constant 0 : i32
    %c0_i32_2 = arith.constant 0 : i32
    return %arg0, %c0_i32, %c0_i32_0, %c0_i32_1 : i32, i32, i32, i32
  }
}

</mosaic_0001>

<llo_original>
// kernel: tpu_custom_call.1
$region0: #{tpu_custom_call.1}
  #allocation0 [shape = 'u32[]', space=smem, size = 0x4, offset = 0x4, fixed_abs, tag = 'smem constant byte address 0x4 - core index']
  #allocation1 [shape = 'u32[144,128]{1,0:T(1,128)}', space=vmem, size = 0x12000, scoped, tag = 'internal scratch']
  #allocation2 [shape = 'f32[224,8]{1,0:T(8,128)}', space=vmem, size = 0x1c000, scoped, tag = 'scratch operand']
  #allocation3 [shape = 's32[1]{0}', space=sflag, size = 0x4, scoped, tag = 'scoped memory for tpu_custom_call.1']
  #allocation4 [shape = 's32[1]{0:T(128)S(6)}', space=smem, size = 0x200, scoped, tag = 'prefetched SMEM operand 0']
  %s0 = inlined_call_operand.<no memory space> [shape: s32[1], index: 0, kind: input, shape index: {}]
  %s1 = inlined_call_operand.vmem [shape: f32[2,258,4], index: 1, kind: input, shape index: {}]
  %s2 = inlined_call_operand.vmem [shape: f32[9,4,8], index: 2, kind: input, shape index: {}]
  %s3 = inlined_call_operand.vmem [shape: f32[1,8], index: 3, kind: input, shape index: {}]
  %s4 = inlined_call_operand.vmem [shape: f32[8,14], index: 4, kind: input, shape index: {}]
  %s5 = inlined_call_operand.vmem [shape: f32[8,14], index: 5, kind: input, shape index: {}]
  %s6 = inlined_call_operand.hbm [shape: f32[2,8,8,8], index: 6, kind: output, shape index: {}]
  %s7 = sld [smem:[#allocation0]]
  $region60: #{tpu_custom_call.1} parent=0
    _
  %s9 = ssub.s32 1, %s7
  %s10 = scalar_select 0, %s9, %s7
  %11 = sst [smem:[#allocation4]] %s0
  $region1: #{tpu_custom_call.1} parent=0
    #allocation5 [shape = 'u8[65536]{0}', space=vmem, size = 0x10000, scoped, tag = 'output window, operand 0']
    #allocation6 [shape = 's32[2]{0}', space=sflag, size = 0x8, scoped, tag = 'scoped memory for tpu_custom_call.1']
    %12 = vsyncpa [#allocation6], 0
    %s13 = scalar_lea.sflag [#allocation6], 1
    %14 = vsyncpa %s13, 0
    loop: start=0, step=1, limit=4
    $region2: #{tpu_custom_call.1} parent=1 // loop_pre_header
      _
    $region3: #{tpu_custom_call.1} parent=1 // loop_header
      %s16 = sphi 0, %s20
      %p17 = scmp.ge.s32.totalorder %s16, 4
      %s26 = sphi 0, %s28
      %s29 = sphi 0, %s26
      %s30 = sphi 0, %s29
      %s46 = sphi 0, %s30
      %s50 = sphi 0, %s50
      %s52 = sphi 0, %s50
      %s53 = sphi 0, %s52
      %s67 = sphi 0, %s53
      %s71 = sphi 0, %s71
      %s73 = sphi 0, %s71
      %s74 = sphi 0, %s73
      %s88 = sphi 0, %s74
      %s92 = sphi 0, %s92
      %s94 = sphi 0, %s92
      %s95 = sphi 0, %s94
      %s109 = sphi 0, %s95
      %s113 = sphi 0, %s113
      %s115 = sphi 0, %s113
      %s116 = sphi 0, %s115
      %s130 = sphi 0, %s116
      %s136 = sphi 0, %s138
      %s139 = sphi 0, %s136
      %s140 = sphi 0, %s139
      %s156 = sphi 0, %s140
    $region4: #{tpu_custom_call.1} parent=1 // loop_header_branch
      %19 = sbr.rel (%p17) target = $region8
    $region5: #{tpu_custom_call.1} parent=1 // loop_body
      %s21 = ssub.s32 %s16, 1
      %s22 = ssub.s32 %s16, 2
      %s23 = sadd.s32 %s16, 1
      %s24 = ssub.s32 %s16, %s23
      %p25 = scmp.eq.s32.totalorder %s24, 0
      %s27 = sadd.s32 %s26, 1
      %s28 = scalar_select %p25, %s26, %s27
      %p31 = pneg %p25
      %p32 = scmp.eq.s32.totalorder %s16, 1
      %p33 = por %p31, %p32
      %p34 = scmp.ne.s32.totalorder %s26, %s29
      %p35 = scmp.eq.s32.totalorder %s16, 0
      %p36 = por %p34, %p35
      %p37 = scmp.ne.s32.totalorder %s26, %s29
      %p38 = scmp.eq.s32.totalorder %s21, 1
      %p39 = por %p37, %p38
      %p40 = scmp.ne.s32.totalorder %s29, %s30
      %p41 = scmp.eq.s32.totalorder %s21, 0
      %p42 = por %p40, %p41
      %p43 = scmp.ne.s32.totalorder %s29, %s30
      %p44 = scmp.eq.s32.totalorder %s22, 1
      %p45 = por %p43, %p44
      %p47 = scmp.ne.s32.totalorder %s30, %s46
      %p48 = scmp.eq.s32.totalorder %s22, 0
      %p49 = por %p47, %p48
      %s51 = sadd.s32 %s50, 1
      %p54 = scmp.eq.s32.totalorder %s16, 1
      %p55 = scmp.ne.s32.totalorder %s50, %s52
      %p56 = scmp.eq.s32.totalorder %s16, 0
      %p57 = por %p55, %p56
      %p58 = scmp.ne.s32.totalorder %s50, %s52
      %p59 = scmp.eq.s32.totalorder %s21, 1
      %p60 = por %p58, %p59
      %p61 = scmp.ne.s32.totalorder %s52, %s53
      %p62 = scmp.eq.s32.totalorder %s21, 0
      %p63 = por %p61, %p62
      %p64 = scmp.ne.s32.totalorder %s52, %s53
      %p65 = scmp.eq.s32.totalorder %s22, 1
      %p66 = por %p64, %p65
      %p68 = scmp.ne.s32.totalorder %s53, %s67
      %p69 = scmp.eq.s32.totalorder %s22, 0
      %p70 = por %p68, %p69
      %s72 = sadd.s32 %s71, 1
      %p75 = scmp.eq.s32.totalorder %s16, 1
      %p76 = scmp.ne.s32.totalorder %s71, %s73
      %p77 = scmp.eq.s32.totalorder %s16, 0
      %p78 = por %p76, %p77
      %p79 = scmp.ne.s32.totalorder %s71, %s73
      %p80 = scmp.eq.s32.totalorder %s21, 1
      %p81 = por %p79, %p80
      %p82 = scmp.ne.s32.totalorder %s73, %s74
      %p83 = scmp.eq.s32.totalorder %s21, 0
      %p84 = por %p82, %p83
      %p85 = scmp.ne.s32.totalorder %s73, %s74
      %p86 = scmp.eq.s32.totalorder %s22, 1
      %p87 = por %p85, %p86
      %p89 = scmp.ne.s32.totalorder %s74, %s88
      %p90 = scmp.eq.s32.totalorder %s22, 0
      %p91 = por %p89, %p90
      %s93 = sadd.s32 %s92, 1
      %p96 = scmp.eq.s32.totalorder %s16, 1
      %p97 = scmp.ne.s32.totalorder %s92, %s94
      %p98 = scmp.eq.s32.totalorder %s16, 0
      %p99 = por %p97, %p98
      %p100 = scmp.ne.s32.totalorder %s92, %s94
      %p101 = scmp.eq.s32.totalorder %s21, 1
      %p102 = por %p100, %p101
      %p103 = scmp.ne.s32.totalorder %s94, %s95
      %p104 = scmp.eq.s32.totalorder %s21, 0
      %p105 = por %p103, %p104
      %p106 = scmp.ne.s32.totalorder %s94, %s95
      %p107 = scmp.eq.s32.totalorder %s22, 1
      %p108 = por %p106, %p107
      %p110 = scmp.ne.s32.totalorder %s95, %s109
      %p111 = scmp.eq.s32.totalorder %s22, 0
      %p112 = por %p110, %p111
      %s114 = sadd.s32 %s113, 1
      %p117 = scmp.eq.s32.totalorder %s16, 1
      %p118 = scmp.ne.s32.totalorder %s113, %s115
      %p119 = scmp.eq.s32.totalorder %s16, 0
      %p120 = por %p118, %p119
      %p121 = scmp.ne.s32.totalorder %s113, %s115
      %p122 = scmp.eq.s32.totalorder %s21, 1
      %p123 = por %p121, %p122
      %p124 = scmp.ne.s32.totalorder %s115, %s116
      %p125 = scmp.eq.s32.totalorder %s21, 0
      %p126 = por %p124, %p125
      %p127 = scmp.ne.s32.totalorder %s115, %s116
      %p128 = scmp.eq.s32.totalorder %s22, 1
      %p129 = por %p127, %p128
      %p131 = scmp.ne.s32.totalorder %s116, %s130
      %p132 = scmp.eq.s32.totalorder %s22, 0
      %p133 = por %p131, %p132
      %s134 = ssub.s32 %s16, %s23
      %p135 = scmp.eq.s32.totalorder %s134, 0
      %s137 = sadd.s32 %s136, 1
      %s138 = scalar_select %p135, %s136, %s137
      %p141 = pneg %p135
      %p142 = scmp.eq.s32.totalorder %s16, 1
      %p143 = por %p141, %p142
      %p144 = scmp.ne.s32.totalorder %s136, %s139
      %p145 = scmp.eq.s32.totalorder %s16, 0
      %p146 = por %p144, %p145
      %p147 = scmp.ne.s32.totalorder %s136, %s139
      %p148 = scmp.eq.s32.totalorder %s21, 1
      %p149 = por %p147, %p148
      %p150 = scmp.ne.s32.totalorder %s139, %s140
      %p151 = scmp.eq.s32.totalorder %s21, 0
      %p152 = por %p150, %p151
      %p153 = scmp.ne.s32.totalorder %s139, %s140
      %p154 = scmp.eq.s32.totalorder %s22, 1
      %p155 = por %p153, %p154
      %p157 = scmp.ne.s32.totalorder %s140, %s156
      %p158 = scmp.eq.s32.totalorder %s22, 0
      %p159 = por %p157, %p158
      %p160 = scmp.le.s32.totalorder 1, %s16
      %p161 = scmp.lt.s32.totalorder %s16, 3
      %p162 = pnand %p160, %p161
      %p163 = pneg %p162
      // Predicated region
      $region9: #{tpu_custom_call.1} parent=5 // pred_check
        _
      $region10: #{tpu_custom_call.1} parent=5 // pred_check_branch
        %165 = sbr.rel (%p162) target = $region12
      $region11: #{tpu_custom_call.1} parent=5 // pred_region
        %s166 = ssub.s32 %s16, 1
        // Predicated region
        $region13: #{tpu_custom_call.1} parent=11 // pred_check
          %p167 = pneg %p63
        $region14: #{tpu_custom_call.1} parent=11 // pred_check_branch
          %169 = sbr.rel (%p167) target = $region16
        $region15: #{tpu_custom_call.1} parent=11 // pred_region
          _
        $region16: #{tpu_custom_call.1} parent=11 // pred_fallthru
          _
        // Predicated region
        $region17: #{tpu_custom_call.1} parent=11 // pred_check
          %p170 = pneg %p84
        $region18: #{tpu_custom_call.1} parent=11 // pred_check_branch
          %172 = sbr.rel (%p170) target = $region20
        $region19: #{tpu_custom_call.1} parent=11 // pred_region
          _
        $region20: #{tpu_custom_call.1} parent=11 // pred_fallthru
          _
        // Predicated region
        $region21: #{tpu_custom_call.1} parent=11 // pred_check
          %p173 = pneg %p105
        $region22: #{tpu_custom_call.1} parent=11 // pred_check_branch
          %175 = sbr.rel (%p173) target = $region24
        $region23: #{tpu_custom_call.1} parent=11 // pred_region
          _
        $region24: #{tpu_custom_call.1} parent=11 // pred_fallthru
          _
        // Predicated region
        $region25: #{tpu_custom_call.1} parent=11 // pred_check
          %p176 = pneg %p126
        $region26: #{tpu_custom_call.1} parent=11 // pred_check_branch
          %178 = sbr.rel (%p176) target = $region28
        $region27: #{tpu_custom_call.1} parent=11 // pred_region
          _
        $region28: #{tpu_custom_call.1} parent=11 // pred_fallthru
          _
      $region12: #{tpu_custom_call.1} parent=5 // pred_fallthru
        _
      %p179 = scmp.lt.s32.totalorder %s16, 2
      // Predicated region
      $region29: #{tpu_custom_call.1} parent=5 // pred_check
        %p180 = pneg %p179
      $region30: #{tpu_custom_call.1} parent=5 // pred_check_branch
        %182 = sbr.rel (%p180) target = $region32
      $region31: #{tpu_custom_call.1} parent=5 // pred_region
        // Predicated region
        $region33: #{tpu_custom_call.1} parent=31 // pred_check
          %p183 = pneg %p36
        $region34: #{tpu_custom_call.1} parent=31 // pred_check_branch
          %185 = sbr.rel (%p183) target = $region36
        $region35: #{tpu_custom_call.1} parent=31 // pred_region
          %p186 = scmp.lt.s32.totalorder %s16, 1
          %s187 = scalar_select %p186, %s16, 1
          %s188 = smul.addr %s187, 33
          %s189 = smul.addr %s188, 8
          %s190 = scalar_lea.vmem %s1, %s189
        $region36: #{tpu_custom_call.1} parent=31 // pred_fallthru
          _
      $region32: #{tpu_custom_call.1} parent=5 // pred_fallthru
        _
      %p191 = scmp.le.s32.totalorder 1, %s16
      %p192 = scmp.lt.s32.totalorder %s16, 3
      %p193 = pnand %p191, %p192
      %p194 = pneg %p193
      // Predicated region
      $region37: #{tpu_custom_call.1} parent=5 // pred_check
        _
      $region38: #{tpu_custom_call.1} parent=5 // pred_check_branch
        %196 = sbr.rel (%p193) target = $region40
      $region39: #{tpu_custom_call.1} parent=5 // pred_region
        %s197 = ssub.s32 %s16, 1
        %p198 = scmp.lt.s32.totalorder %s21, 1
        %s199 = scalar_select %p198, %s21, 1
        %s200 = smul.addr %s199, 33
        %s201 = smul.addr %s200, 8
        %s202 = scalar_lea.vmem %s1, %s201
        %p203 = pneg %p42
        %p204 = pneg %p39
        %p205 = pneg %p63
        %p206 = pneg %p60
        %p207 = pneg %p84
        %p208 = pneg %p81
        %p209 = pneg %p105
        %p210 = pneg %p102
        %p211 = pneg %p126
        %p212 = pneg %p123
        %p213 = pneg %p152
        %p214 = pneg %p149
        %s215 = sand.u32 %s139, 1
        %s216 = scalar_lea.sflag [#allocation6], %s215
        %s217 = sand.u32 %s139, 1
        %s218 = smul.addr %s217, 64
        %s219 = scalar_lea.vmem [#allocation5], %s218
        %p220 = scmp.lt.s32.totalorder %s21, 1
        %s221 = scalar_select %p220, %s21, 1
        %s222 = smul.addr %s221, 33
        %s223 = smul.addr %s222, 8
        %s224 = scalar_lea.vmem %s1, %s223
        %v225 = vld [vmem:[%s224] sm:$0xff]
        %v226 = vld [vmem:[%s224 + $0x8] sm:$0xff]
        %v227 = vld [vmem:[%s224 + $0x10] sm:$0xff]
        %v228 = vld [vmem:[%s224 + $0x18] sm:$0xff]
        %v229 = vld [vmem:[%s224 + $0x20] sm:$0xff]
        %v230 = vld [vmem:[%s224 + $0x28] sm:$0xff]
        %v231 = vld [vmem:[%s224 + $0x30] sm:$0xff]
        %v232 = vld [vmem:[%s224 + $0x38] sm:$0xff]
        %v233 = vld [vmem:[%s224 + $0x40] sm:$0xff]
        %v234 = vld [vmem:[%s224 + $0x48] sm:$0xff]
        %v235 = vld [vmem:[%s224 + $0x50] sm:$0xff]
        %v236 = vld [vmem:[%s224 + $0x58] sm:$0xff]
        %v237 = vld [vmem:[%s224 + $0x60] sm:$0xff]
        %v238 = vld [vmem:[%s224 + $0x68] sm:$0xff]
        %v239 = vld [vmem:[%s224 + $0x70] sm:$0xff]
        %v240 = vld [vmem:[%s224 + $0x78] sm:$0xff]
        %v241 = vld [vmem:[%s224 + $0x80] sm:$0xff]
        %v242 = vld [vmem:[%s224 + $0x88] sm:$0xff]
        %v243 = vld [vmem:[%s224 + $0x90] sm:$0xff]
        %v244 = vld [vmem:[%s224 + $0x98] sm:$0xff]
        %v245 = vld [vmem:[%s224 + $0xa0] sm:$0xff]
        %v246 = vld [vmem:[%s224 + $0xa8] sm:$0xff]
        %v247 = vld [vmem:[%s224 + $0xb0] sm:$0xff]
        %v248 = vld [vmem:[%s224 + $0xb8] sm:$0xff]
        %v249 = vld [vmem:[%s224 + $0xc0] sm:$0xff]
        %v250 = vld [vmem:[%s224 + $0xc8] sm:$0xff]
        %v251 = vld [vmem:[%s224 + $0xd0] sm:$0xff]
        %v252 = vld [vmem:[%s224 + $0xd8] sm:$0xff]
        %v253 = vld [vmem:[%s2] sm:$0xf]
        %v254 = vld [vmem:[%s224 + $0x1] sm:$0xff]
        %v255 = vld [vmem:[%s224 + $0x9] sm:$0xff]
        %v256 = vld [vmem:[%s224 + $0x11] sm:$0xff]
        %v257 = vld [vmem:[%s224 + $0x19] sm:$0xff]
        %v258 = vld [vmem:[%s224 + $0x21] sm:$0xff]
        %v259 = vld [vmem:[%s224 + $0x29] sm:$0xff]
        %v260 = vld [vmem:[%s224 + $0x31] sm:$0xff]
        %v261 = vld [vmem:[%s224 + $0x39] sm:$0xff]
        %v262 = vld [vmem:[%s224 + $0x41] sm:$0xff]
        %v263 = vld [vmem:[%s224 + $0x49] sm:$0xff]
        %v264 = vld [vmem:[%s224 + $0x51] sm:$0xff]
        %v265 = vld [vmem:[%s224 + $0x59] sm:$0xff]
        %v266 = vld [vmem:[%s224 + $0x61] sm:$0xff]
        %v267 = vld [vmem:[%s224 + $0x69] sm:$0xff]
        %v268 = vld [vmem:[%s224 + $0x71] sm:$0xff]
        %v269 = vld [vmem:[%s224 + $0x79] sm:$0xff]
        %v270 = vld [vmem:[%s224 + $0x81] sm:$0xff]
        %v271 = vld [vmem:[%s224 + $0x89] sm:$0xff]
        %v272 = vld [vmem:[%s224 + $0x91] sm:$0xff]
        %v273 = vld [vmem:[%s224 + $0x99] sm:$0xff]
        %v274 = vld [vmem:[%s224 + $0xa1] sm:$0xff]
        %v275 = vld [vmem:[%s224 + $0xa9] sm:$0xff]
        %v276 = vld [vmem:[%s224 + $0xb1] sm:$0xff]
        %v277 = vld [vmem:[%s224 + $0xb9] sm:$0xff]
        %v278 = vld [vmem:[%s224 + $0xc1] sm:$0xff]
        %v279 = vld [vmem:[%s224 + $0xc9] sm:$0xff]
        %v280 = vld [vmem:[%s224 + $0xd1] sm:$0xff]
        %v281 = vld [vmem:[%s224 + $0xd9] sm:$0xff]
        %s282 = scalar_lea.vmem %s2, 4
        %v283 = vld [vmem:[%s282] sm:$0xf]
        %vm284 = vcmask 31744
        %v286 = vsel %vm284, %v254, 0
        %v289 = vsel %vm284, %v255, 0
        %v292 = vsel %vm284, %v256, 0
        %v295 = vsel %vm284, %v257, 0
        %v298 = vsel %vm284, %v258, 0
        %v301 = vsel %vm284, %v259, 0
        %v304 = vsel %vm284, %v260, 0
        %v307 = vsel %vm284, %v261, 0
        %v310 = vsel %vm284, %v262, 0
        %v313 = vsel %vm284, %v263, 0
        %v316 = vsel %vm284, %v264, 0
        %v319 = vsel %vm284, %v265, 0
        %v322 = vsel %vm284, %v266, 0
        %v325 = vsel %vm284, %v267, 0
        %v328 = vsel %vm284, %v268, 0
        %v331 = vsel %vm284, %v269, 0
        %v334 = vsel %vm284, %v270, 0
        %v337 = vsel %vm284, %v271, 0
        %v340 = vsel %vm284, %v272, 0
        %v343 = vsel %vm284, %v273, 0
        %v346 = vsel %vm284, %v274, 0
        %v349 = vsel %vm284, %v275, 0
        %v352 = vsel %vm284, %v276, 0
        %v355 = vsel %vm284, %v277, 0
        %v358 = vsel %vm284, %v278, 0
        %v361 = vsel %vm284, %v279, 0
        %v364 = vsel %vm284, %v280, 0
        %v367 = vsel %vm284, %v281, 0
        %vm369 = vcmask 1043456
        %v371 = vsel %vm369, %v283, 0
        %373 = vmatprep.subr.mxu0 0.0
        %374 = vmatpush1.msra.mxu0 %v371
        %375 = vmatprep.subr.mxu0 0.0
        %376 = vmatpush1.msra.mxu0 0.0
        %377 = vmatprep.subr.mxu0 0.0
        %378 = vmatpush1.msra.mxu0 0.0
        %379 = vmatprep.subr.mxu0 0.0
        %380 = vmatpush1.msra.mxu0 0.0
        %381 = vmatprep.subr.mxu0 0.0
        %382 = vmatpush1.msra.mxu0 0.0
        %383 = vmatprep.subr.mxu0 0.0
        %384 = vmatpush1.msra.mxu0 0.0
        %385 = vmatprep.subr.mxu0 0.0
        %386 = vmatpush1.msra.mxu0 0.0
        %387 = vmatprep.subr.mxu0 0.0
        %388 = vmatpush1.msra.mxu0 0.0
        %389 = vmatprep.subr.mxu0 0.0
        %390 = vmatpush1.msra.mxu0 0.0
        %391 = vmatprep.subr.mxu0 0.0
        %392 = vmatpush1.msra.mxu0 0.0
        %393 = vmatprep.subr.mxu0 0.0
        %394 = vmatpush1.msra.mxu0 0.0
        %395 = vmatprep.subr.mxu0 0.0
        %396 = vmatpush1.msra.mxu0 0.0
        %397 = vmatprep.subr.mxu0 0.0
        %398 = vmatpush1.msra.mxu0 0.0
        %399 = vmatprep.subr.mxu0 0.0
        %400 = vmatpush1.msra.mxu0 0.0
        %401 = vmatprep.subr.mxu0 0.0
        %402 = vmatpush1.msra.mxu0 0.0
        %403 = vmatprep.subr.mxu0 0.0
        %404 = vmatpush1.msra.mxu0 0.0
        %405 = vmatprep.subr.mxu0 0.0
        %406 = vmatpush1.msra.mxu0 0.0
        %407 = vmatprep.subr.mxu0 0.0
        %408 = vmatpush1.msra.mxu0 0.0
        %409 = vmatprep.subr.mxu0 0.0
        %410 = vmatpush1.msra.mxu0 0.0
        %411 = vmatprep.subr.mxu0 0.0
        %412 = vmatpush1.msra.mxu0 0.0
        %413 = vmatprep.subr.mxu0 0.0
        %414 = vmatpush1.msra.mxu0 0.0
        %415 = vmatprep.subr.mxu0 0.0
        %416 = vmatpush1.msra.mxu0 0.0
        %417 = vmatprep.subr.mxu0 0.0
        %418 = vmatpush1.msra.mxu0 0.0
        %419 = vmatprep.subr.mxu0 0.0
        %420 = vmatpush1.msra.mxu0 0.0
        %421 = vmatprep.subr.mxu0 0.0
        %422 = vmatpush1.msra.mxu0 0.0
        %423 = vmatprep.subr.mxu0 0.0
        %424 = vmatpush1.msra.mxu0 0.0
        %425 = vmatprep.subr.mxu0 0.0
        %426 = vmatpush1.msra.mxu0 0.0
        %427 = vmatprep.subr.mxu0 0.0
        %428 = vmatpush1.msra.mxu0 0.0
        %429 = vmatprep.subr.mxu0 0.0
        %430 = vmatpush1.msra.mxu0 0.0
        %431 = vmatprep.subr.mxu0 0.0
        %432 = vmatpush1.msra.mxu0 0.0
        %433 = vmatprep.subr.mxu0 0.0
        %434 = vmatpush1.msra.mxu0 0.0
        %435 = vmatprep.subr.mxu0 0.0
        %436 = vmatpush1.msra.mxu0 0.0
        %437 = vmatprep.mubr.f32.mxu0 0.0
        %438 = vmatmul.mubr.f32.gmra.mrb[0].mxu0 %v286
        %v439 = vpop.f32.mrb[0].mxu0
        %v440 = vadd.f32 0.0, %v439
        %v441 = vpop.f32.mrb[0].mxu0
        %442 = vmatprep.mubr.f32.mxu0 0.0
        %443 = vmatmul.mubr.f32.gmra.mrb[0].mxu0 %v289
        %v444 = vpop.f32.mrb[0].mxu0
        %v445 = vadd.f32 0.0, %v444
        %v446 = vpop.f32.mrb[0].mxu0
        %447 = vmatprep.mubr.f32.mxu0 0.0
        %448 = vmatmul.mubr.f32.gmra.mrb[0].mxu0 %v292
        %v449 = vpop.f32.mrb[0].mxu0
        %v450 = vadd.f32 0.0, %v449
        %v451 = vpop.f32.mrb[0].mxu0
        %452 = vmatprep.mubr.f32.mxu0 0.0
        %453 = vmatmul.mubr.f32.gmra.mrb[0].mxu0 %v295
        %v454 = vpop.f32.mrb[0].mxu0
        %v455 = vadd.f32 0.0, %v454
        %v456 = vpop.f32.mrb[0].mxu0
        %457 = vmatprep.mubr.f32.mxu0 0.0
        %458 = vmatmul.mubr.f32.gmra.mrb[0].mxu0 %v298
        %v459 = vpop.f32.mrb[0].mxu0
        %v460 = vadd.f32 0.0, %v459
        %v461 = vpop.f32.mrb[0].mxu0
        %462 = vmatprep.mubr.f32.mxu0 0.0
        %463 = vmatmul.mubr.f32.gmra.mrb[0].mxu0 %v301
        %v464 = vpop.f32.mrb[0].mxu0
        %v465 = vadd.f32 0.0, %v464
        %v466 = vpop.f32.mrb[0].mxu0
        %467 = vmatprep.mubr.f32.mxu0 0.0
        %468 = vmatmul.mubr.f32.gmra.mrb[0].mxu0 %v304
        %v469 = vpop.f32.mrb[0].mxu0
        %v470 = vadd.f32 0.0, %v469
        %v471 = vpop.f32.mrb[0].mxu0
        %472 = vmatprep.mubr.f32.mxu0 0.0
        %473 = vmatmul.mubr.f32.gmra.mrb[0].mxu0 %v307
        %v474 = vpop.f32.mrb[0].mxu0
        %v475 = vadd.f32 0.0, %v474
        %v476 = vpop.f32.mrb[0].mxu0
        %477 = vmatprep.mubr.f32.mxu0 0.0
        %478 = vmatmul.mubr.f32.gmra.mrb[0].mxu0 %v310
        %v479 = vpop.f32.mrb[0].mxu0
        %v480 = vadd.f32 0.0, %v479
        %v481 = vpop.f32.mrb[0].mxu0
        %482 = vmatprep.mubr.f32.mxu0 0.0
        %483 = vmatmul.mubr.f32.gmra.mrb[0].mxu0 %v313
        %v484 = vpop.f32.mrb[0].mxu0
        %v485 = vadd.f32 0.0, %v484
        %v486 = vpop.f32.mrb[0].mxu0
        %487 = vmatprep.mubr.f32.mxu0 0.0
        %488 = vmatmul.mubr.f32.gmra.mrb[0].mxu0 %v316
        %v489 = vpop.f32.mrb[0].mxu0
        %v490 = vadd.f32 0.0, %v489
        %v491 = vpop.f32.mrb[0].mxu0
        %492 = vmatprep.mubr.f32.mxu0 0.0
        %493 = vmatmul.mubr.f32.gmra.mrb[0].mxu0 %v319
        %v494 = vpop.f32.mrb[0].mxu0
        %v495 = vadd.f32 0.0, %v494
        %v496 = vpop.f32.mrb[0].mxu0
        %497 = vmatprep.mubr.f32.mxu0 0.0
        %498 = vmatmul.mubr.f32.gmra.mrb[0].mxu0 %v322
        %v499 = vpop.f32.mrb[0].mxu0
        %v500 = vadd.f32 0.0, %v499
        %v501 = vpop.f32.mrb[0].mxu0
        %502 = vmatprep.mubr.f32.mxu0 0.0
        %503 = vmatmul.mubr.f32.gmra.mrb[0].mxu0 %v325
        %v504 = vpop.f32.mrb[0].mxu0
        %v505 = vadd.f32 0.0, %v504
        %v506 = vpop.f32.mrb[0].mxu0
        %507 = vmatprep.mubr.f32.mxu0 0.0
        %508 = vmatmul.mubr.f32.gmra.mrb[0].mxu0 %v328
        %v509 = vpop.f32.mrb[0].mxu0
        %v510 = vadd.f32 0.0, %v509
        %v511 = vpop.f32.mrb[0].mxu0
        %512 = vmatprep.mubr.f32.mxu0 0.0
        %513 = vmatmul.mubr.f32.gmra.mrb[0].mxu0 %v331
        %v514 = vpop.f32.mrb[0].mxu0
        %v515 = vadd.f32 0.0, %v514
        %v516 = vpop.f32.mrb[0].mxu0
        %517 = vmatprep.mubr.f32.mxu0 0.0
        %518 = vmatmul.mubr.f32.gmra.mrb[0].mxu0 %v334
        %v519 = vpop.f32.mrb[0].mxu0
        %v520 = vadd.f32 0.0, %v519
        %v521 = vpop.f32.mrb[0].mxu0
        %522 = vmatprep.mubr.f32.mxu0 0.0
        %523 = vmatmul.mubr.f32.gmra.mrb[0].mxu0 %v337
        %v524 = vpop.f32.mrb[0].mxu0
        %v525 = vadd.f32 0.0, %v524
        %v526 = vpop.f32.mrb[0].mxu0
        %527 = vmatprep.mubr.f32.mxu0 0.0
        %528 = vmatmul.mubr.f32.gmra.mrb[0].mxu0 %v340
        %v529 = vpop.f32.mrb[0].mxu0
        %v530 = vadd.f32 0.0, %v529
        %v531 = vpop.f32.mrb[0].mxu0
        %532 = vmatprep.mubr.f32.mxu0 0.0
        %533 = vmatmul.mubr.f32.gmra.mrb[0].mxu0 %v343
        %v534 = vpop.f32.mrb[0].mxu0
        %v535 = vadd.f32 0.0, %v534
        %v536 = vpop.f32.mrb[0].mxu0
        %537 = vmatprep.mubr.f32.mxu0 0.0
        %538 = vmatmul.mubr.f32.gmra.mrb[0].mxu0 %v346
        %v539 = vpop.f32.mrb[0].mxu0
        %v540 = vadd.f32 0.0, %v539
        %v541 = vpop.f32.mrb[0].mxu0
        %542 = vmatprep.mubr.f32.mxu0 0.0
        %543 = vmatmul.mubr.f32.gmra.mrb[0].mxu0 %v349
        %v544 = vpop.f32.mrb[0].mxu0
        %v545 = vadd.f32 0.0, %v544
        %v546 = vpop.f32.mrb[0].mxu0
        %547 = vmatprep.mubr.f32.mxu0 0.0
        %548 = vmatmul.mubr.f32.gmra.mrb[0].mxu0 %v352
        %v549 = vpop.f32.mrb[0].mxu0
        %v550 = vadd.f32 0.0, %v549
        %v551 = vpop.f32.mrb[0].mxu0
        %552 = vmatprep.mubr.f32.mxu0 0.0
        %553 = vmatmul.mubr.f32.gmra.mrb[0].mxu0 %v355
        %v554 = vpop.f32.mrb[0].mxu0
        %v555 = vadd.f32 0.0, %v554
        %v556 = vpop.f32.mrb[0].mxu0
        %557 = vmatprep.mubr.f32.mxu0 0.0
        %558 = vmatmul.mubr.f32.gmra.mrb[0].mxu0 %v358
        %v559 = vpop.f32.mrb[0].mxu0
        %v560 = vadd.f32 0.0, %v559
        %v561 = vpop.f32.mrb[0].mxu0
        %562 = vmatprep.mubr.f32.mxu0 0.0
        %563 = vmatmul.mubr.f32.gmra.mrb[0].mxu0 %v361
        %v564 = vpop.f32.mrb[0].mxu0
        %v565 = vadd.f32 0.0, %v564
        %v566 = vpop.f32.mrb[0].mxu0
        %567 = vmatprep.mubr.f32.mxu0 0.0
        %568 = vmatmul.mubr.f32.gmra.mrb[0].mxu0 %v364
        %v569 = vpop.f32.mrb[0].mxu0
        %v570 = vadd.f32 0.0, %v569
        %v571 = vpop.f32.mrb[0].mxu0
        %572 = vmatprep.mubr.f32.mxu0 0.0
        %573 = vmatmul.mubr.f32.gmra.mrb[0].mxu0 %v367
        %v574 = vpop.f32.mrb[0].mxu0
        %v575 = vadd.f32 0.0, %v574
        %v576 = vpop.f32.mrb[0].mxu0
        %577 = vdwg.mxu0
        %v579 = vsel %vm284, %v225, 0
        %v582 = vsel %vm284, %v226, 0
        %v585 = vsel %vm284, %v227, 0
        %v588 = vsel %vm284, %v228, 0
        %v591 = vsel %vm284, %v229, 0
        %v594 = vsel %vm284, %v230, 0
        %v597 = vsel %vm284, %v231, 0
        %v600 = vsel %vm284, %v232, 0
        %v603 = vsel %vm284, %v233, 0
        %v606 = vsel %vm284, %v234, 0
        %v609 = vsel %vm284, %v235, 0
        %v612 = vsel %vm284, %v236, 0
        %v615 = vsel %vm284, %v237, 0
        %v618 = vsel %vm284, %v238, 0
        %v621 = vsel %vm284, %v239, 0
        %v624 = vsel %vm284, %v240, 0
        %v627 = vsel %vm284, %v241, 0
        %v630 = vsel %vm284, %v242, 0
        %v633 = vsel %vm284, %v243, 0
        %v636 = vsel %vm284, %v244, 0
        %v639 = vsel %vm284, %v245, 0
        %v642 = vsel %vm284, %v246, 0
        %v645 = vsel %vm284, %v247, 0
        %v648 = vsel %vm284, %v248, 0
        %v651 = vsel %vm284, %v249, 0
        %v654 = vsel %vm284, %v250, 0
        %v657 = vsel %vm284, %v251, 0
        %v660 = vsel %vm284, %v252, 0
        %v663 = vsel %vm369, %v253, 0
        %665 = vmatprep.subr.mxu0 0.0
        %666 = vmatpush1.msra.mxu0 %v663
        %667 = vmatprep.subr.mxu0 0.0
        %668 = vmatpush1.msra.mxu0 0.0
        %669 = vmatprep.subr.mxu0 0.0
        %670 = vmatpush1.msra.mxu0 0.0
        %671 = vmatprep.subr.mxu0 0.0
        %672 = vmatpush1.msra.mxu0 0.0
        %673 = vmatprep.subr.mxu0 0.0
        %674 = vmatpush1.msra.mxu0 0.0
        %675 = vmatprep.subr.mxu0 0.0
        %676 = vmatpush1.msra.mxu0 0.0
        %677 = vmatprep.subr.mxu0 0.0
        %678 = vmatpush1.msra.mxu0 0.0
        %679 = vmatprep.subr.mxu0 0.0
        %680 = vmatpush1.msra.mxu0 0.0
        %681 = vmatprep.subr.mxu0 0.0
        %682 = vmatpush1.msra.mxu0 0.0
        %683 = vmatprep.subr.mxu0 0.0
        %684 = vmatpush1.msra.mxu0 0.0
        %685 = vmatprep.subr.mxu0 0.0
        %686 = vmatpush1.msra.mxu0 0.0
        %687 = vmatprep.subr.mxu0 0.0
        %688 = vmatpush1.msra.mxu0 0.0
        %689 = vmatprep.subr.mxu0 0.0
        %690 = vmatpush1.msra.mxu0 0.0
        %691 = vmatprep.subr.mxu0 0.0
        %692 = vmatpush1.msra.mxu0 0.0
        %693 = vmatprep.subr.mxu0 0.0
        %694 = vmatpush1.msra.mxu0 0.0
        %695 = vmatprep.subr.mxu0 0.0
        %696 = vmatpush1.msra.mxu0 0.0
        %697 = vmatprep.subr.mxu0 0.0
        %698 = vmatpush1.msra.mxu0 0.0
        %699 = vmatprep.subr.mxu0 0.0
        %700 = vmatpush1.msra.mxu0 0.0
        %701 = vmatprep.subr.mxu0 0.0
        %702 = vmatpush1.msra.mxu0 0.0
        %703 = vmatprep.subr.mxu0 0.0
        %704 = vmatpush1.msra.mxu0 0.0
        %705 = vmatprep.subr.mxu0 0.0
        %706 = vmatpush1.msra.mxu0 0.0
        %707 = vmatprep.subr.mxu0 0.0
        %708 = vmatpush1.msra.mxu0 0.0
        %709 = vmatprep.subr.mxu0 0.0
        %710 = vmatpush1.msra.mxu0 0.0
        %711 = vmatprep.subr.mxu0 0.0
        %712 = vmatpush1.msra.mxu0 0.0
        %713 = vmatprep.subr.mxu0 0.0
        %714 = vmatpush1.msra.mxu0 0.0
        %715 = vmatprep.subr.mxu0 0.0
        %716 = vmatpush1.msra.mxu0 0.0
        %717 = vmatprep.subr.mxu0 0.0
        %718 = vmatpush1.msra.mxu0 0.0
        %719 = vmatprep.subr.mxu0 0.0
        %720 = vmatpush1.msra.mxu0 0.0
        %721 = vmatprep.subr.mxu0 0.0
        %722 = vmatpush1.msra.mxu0 0.0
        %723 = vmatprep.subr.mxu0 0.0
        %724 = vmatpush1.msra.mxu0 0.0
        %725 = vmatprep.subr.mxu0 0.0
        %726 = vmatpush1.msra.mxu0 0.0
        %727 = vmatprep.subr.mxu0 0.0
        %728 = vmatpush1.msra.mxu0 0.0
        %729 = vmatprep.mubr.f32.mxu0 0.0
        %730 = vmatmul.mubr.f32.gmra.mrb[0].mxu0 %v579
        %v731 = vpop.f32.mrb[0].mxu0
        %v732 = vadd.f32 %v440, %v731
        %v733 = vpop.f32.mrb[0].mxu0
        %734 = vmatprep.mubr.f32.mxu0 0.0
        %735 = vmatmul.mubr.f32.gmra.mrb[0].mxu0 %v582
        %v736 = vpop.f32.mrb[0].mxu0
        %v737 = vadd.f32 %v445, %v736
        %v738 = vpop.f32.mrb[0].mxu0
        %739 = vmatprep.mubr.f32.mxu0 0.0
        %740 = vmatmul.mubr.f32.gmra.mrb[0].mxu0 %v585
        %v741 = vpop.f32.mrb[0].mxu0
        %v742 = vadd.f32 %v450, %v741
        %v743 = vpop.f32.mrb[0].mxu0
        %744 = vmatprep.mubr.f32.mxu0 0.0
        %745 = vmatmul.mubr.f32.gmra.mrb[0].mxu0 %v588
        %v746 = vpop.f32.mrb[0].mxu0
        %v747 = vadd.f32 %v455, %v746
        %v748 = vpop.f32.mrb[0].mxu0
        %749 = vmatprep.mubr.f32.mxu0 0.0
        %750 = vmatmul.mubr.f32.gmra.mrb[0].mxu0 %v591
        %v751 = vpop.f32.mrb[0].mxu0
        %v752 = vadd.f32 %v460, %v751
        %v753 = vpop.f32.mrb[0].mxu0
        %754 = vmatprep.mubr.f32.mxu0 0.0
        %755 = vmatmul.mubr.f32.gmra.mrb[0].mxu0 %v594
        %v756 = vpop.f32.mrb[0].mxu0
        %v757 = vadd.f32 %v465, %v756
        %v758 = vpop.f32.mrb[0].mxu0
        %759 = vmatprep.mubr.f32.mxu0 0.0
        %760 = vmatmul.mubr.f32.gmra.mrb[0].mxu0 %v597
        %v761 = vpop.f32.mrb[0].mxu0
        %v762 = vadd.f32 %v470, %v761
        %v763 = vpop.f32.mrb[0].mxu0
        %764 = vmatprep.mubr.f32.mxu0 0.0
        %765 = vmatmul.mubr.f32.gmra.mrb[0].mxu0 %v600
        %v766 = vpop.f32.mrb[0].mxu0
        %v767 = vadd.f32 %v475, %v766
        %v768 = vpop.f32.mrb[0].mxu0
        %769 = vmatprep.mubr.f32.mxu0 0.0
        %770 = vmatmul.mubr.f32.gmra.mrb[0].mxu0 %v603
        %v771 = vpop.f32.mrb[0].mxu0
        %v772 = vadd.f32 %v480, %v771
        %v773 = vpop.f32.mrb[0].mxu0
        %774 = vmatprep.mubr.f32.mxu0 0.0
        %775 = vmatmul.mubr.f32.gmra.mrb[0].mxu0 %v606
        %v776 = vpop.f32.mrb[0].mxu0
        %v777 = vadd.f32 %v485, %v776
        %v778 = vpop.f32.mrb[0].mxu0
        %779 = vmatprep.mubr.f32.mxu0 0.0
        %780 = vmatmul.mubr.f32.gmra.mrb[0].mxu0 %v609
        %v781 = vpop.f32.mrb[0].mxu0
        %v782 = vadd.f32 %v490, %v781
        %v783 = vpop.f32.mrb[0].mxu0
        %784 = vmatprep.mubr.f32.mxu0 0.0
        %785 = vmatmul.mubr.f32.gmra.mrb[0].mxu0 %v612
        %v786 = vpop.f32.mrb[0].mxu0
        %v787 = vadd.f32 %v495, %v786
        %v788 = vpop.f32.mrb[0].mxu0
        %789 = vmatprep.mubr.f32.mxu0 0.0
        %790 = vmatmul.mubr.f32.gmra.mrb[0].mxu0 %v615
        %v791 = vpop.f32.mrb[0].mxu0
        %v792 = vadd.f32 %v500, %v791
        %v793 = vpop.f32.mrb[0].mxu0
        %794 = vmatprep.mubr.f32.mxu0 0.0
        %795 = vmatmul.mubr.f32.gmra.mrb[0].mxu0 %v618
        %v796 = vpop.f32.mrb[0].mxu0
        %v797 = vadd.f32 %v505, %v796
        %v798 = vpop.f32.mrb[0].mxu0
        %799 = vmatprep.mubr.f32.mxu0 0.0
        %800 = vmatmul.mubr.f32.gmra.mrb[0].mxu0 %v621
        %v801 = vpop.f32.mrb[0].mxu0
        %v802 = vadd.f32 %v510, %v801
        %v803 = vpop.f32.mrb[0].mxu0
        %804 = vmatprep.mubr.f32.mxu0 0.0
        %805 = vmatmul.mubr.f32.gmra.mrb[0].mxu0 %v624
        %v806 = vpop.f32.mrb[0].mxu0
        %v807 = vadd.f32 %v515, %v806
        %v808 = vpop.f32.mrb[0].mxu0
        %809 = vmatprep.mubr.f32.mxu0 0.0
        %810 = vmatmul.mubr.f32.gmra.mrb[0].mxu0 %v627
        %v811 = vpop.f32.mrb[0].mxu0
        %v812 = vadd.f32 %v520, %v811
        %v813 = vpop.f32.mrb[0].mxu0
        %814 = vmatprep.mubr.f32.mxu0 0.0
        %815 = vmatmul.mubr.f32.gmra.mrb[0].mxu0 %v630
        %v816 = vpop.f32.mrb[0].mxu0
        %v817 = vadd.f32 %v525, %v816
        %v818 = vpop.f32.mrb[0].mxu0
        %819 = vmatprep.mubr.f32.mxu0 0.0
        %820 = vmatmul.mubr.f32.gmra.mrb[0].mxu0 %v633
        %v821 = vpop.f32.mrb[0].mxu0
        %v822 = vadd.f32 %v530, %v821
        %v823 = vpop.f32.mrb[0].mxu0
        %824 = vmatprep.mubr.f32.mxu0 0.0
        %825 = vmatmul.mubr.f32.gmra.mrb[0].mxu0 %v636
        %v826 = vpop.f32.mrb[0].mxu0
        %v827 = vadd.f32 %v535, %v826
        %v828 = vpop.f32.mrb[0].mxu0
        %829 = vmatprep.mubr.f32.mxu0 0.0
        %830 = vmatmul.mubr.f32.gmra.mrb[0].mxu0 %v639
        %v831 = vpop.f32.mrb[0].mxu0
        %v832 = vadd.f32 %v540, %v831
        %v833 = vpop.f32.mrb[0].mxu0
        %834 = vmatprep.mubr.f32.mxu0 0.0
        %835 = vmatmul.mubr.f32.gmra.mrb[0].mxu0 %v642
        %v836 = vpop.f32.mrb[0].mxu0
        %v837 = vadd.f32 %v545, %v836
        %v838 = vpop.f32.mrb[0].mxu0
        %839 = vmatprep.mubr.f32.mxu0 0.0
        %840 = vmatmul.mubr.f32.gmra.mrb[0].mxu0 %v645
        %v841 = vpop.f32.mrb[0].mxu0
        %v842 = vadd.f32 %v550, %v841
        %v843 = vpop.f32.mrb[0].mxu0
        %844 = vmatprep.mubr.f32.mxu0 0.0
        %845 = vmatmul.mubr.f32.gmra.mrb[0].mxu0 %v648
        %v846 = vpop.f32.mrb[0].mxu0
        %v847 = vadd.f32 %v555, %v846
        %v848 = vpop.f32.mrb[0].mxu0
        %849 = vmatprep.mubr.f32.mxu0 0.0
        %850 = vmatmul.mubr.f32.gmra.mrb[0].mxu0 %v651
        %v851 = vpop.f32.mrb[0].mxu0
        %v852 = vadd.f32 %v560, %v851
        %v853 = vpop.f32.mrb[0].mxu0
        %854 = vmatprep.mubr.f32.mxu0 0.0
        %855 = vmatmul.mubr.f32.gmra.mrb[0].mxu0 %v654
        %v856 = vpop.f32.mrb[0].mxu0
        %v857 = vadd.f32 %v565, %v856
        %v858 = vpop.f32.mrb[0].mxu0
        %859 = vmatprep.mubr.f32.mxu0 0.0
        %860 = vmatmul.mubr.f32.gmra.mrb[0].mxu0 %v657
        %v861 = vpop.f32.mrb[0].mxu0
        %v862 = vadd.f32 %v570, %v861
        %v863 = vpop.f32.mrb[0].mxu0
        %864 = vmatprep.mubr.f32.mxu0 0.0
        %865 = vmatmul.mubr.f32.gmra.mrb[0].mxu0 %v660
        %v866 = vpop.f32.mrb[0].mxu0
        %v867 = vadd.f32 %v575, %v866
        %v868 = vpop.f32.mrb[0].mxu0
        %869 = vdwg.mxu0
        %v870 = vld [vmem:[%s224 + $0x2] sm:$0xff]
        %v871 = vld [vmem:[%s224 + $0xa] sm:$0xff]
        %v872 = vld [vmem:[%s224 + $0x12] sm:$0xff]
        %v873 = vld [vmem:[%s224 + $0x1a] sm:$0xff]
        %v874 = vld [vmem:[%s224 + $0x22] sm:$0xff]
        %v875 = vld [vmem:[%s224 + $0x2a] sm:$0xff]
        %v876 = vld [vmem:[%s224 + $0x32] sm:$0xff]
        %v877 = vld [vmem:[%s224 + $0x3a] sm:$0xff]
        %v878 = vld [vmem:[%s224 + $0x42] sm:$0xff]
        %v879 = vld [vmem:[%s224 + $0x4a] sm:$0xff]
        %v880 = vld [vmem:[%s224 + $0x52] sm:$0xff]
        %v881 = vld [vmem:[%s224 + $0x5a] sm:$0xff]
        %v882 = vld [vmem:[%s224 + $0x62] sm:$0xff]
        %v883 = vld [vmem:[%s224 + $0x6a] sm:$0xff]
        %v884 = vld [vmem:[%s224 + $0x72] sm:$0xff]
        %v885 = vld [vmem:[%s224 + $0x7a] sm:$0xff]
        %v886 = vld [vmem:[%s224 + $0x82] sm:$0xff]
        %v887 = vld [vmem:[%s224 + $0x8a] sm:$0xff]
        %v888 = vld [vmem:[%s224 + $0x92] sm:$0xff]
        %v889 = vld [vmem:[%s224 + $0x9a] sm:$0xff]
        %v890 = vld [vmem:[%s224 + $0xa2] sm:$0xff]
        %v891 = vld [vmem:[%s224 + $0xaa] sm:$0xff]
        %v892 = vld [vmem:[%s224 + $0xb2] sm:$0xff]
        %v893 = vld [vmem:[%s224 + $0xba] sm:$0xff]
        %v894 = vld [vmem:[%s224 + $0xc2] sm:$0xff]
        %v895 = vld [vmem:[%s224 + $0xca] sm:$0xff]
        %v896 = vld [vmem:[%s224 + $0xd2] sm:$0xff]
        %v897 = vld [vmem:[%s224 + $0xda] sm:$0xff]
        %s898 = scalar_lea.vmem %s2, 8
        %v899 = vld [vmem:[%s898] sm:$0xf]
        %v901 = vsel %vm284, %v870, 0
        %v904 = vsel %vm284, %v871, 0
        %v907 = vsel %vm284, %v872, 0
        %v910 = vsel %vm284, %v873, 0
        %v913 = vsel %vm284, %v874, 0
        %v916 = vsel %vm284, %v875, 0
        %v919 = vsel %vm284, %v876, 0
        %v922 = vsel %vm284, %v877, 0
        %v925 = vsel %vm284, %v878, 0
        %v928 = vsel %vm284, %v879, 0
        %v931 = vsel %vm284, %v880, 0
        %v934 = vsel %vm284, %v881, 0
        %v937 = vsel %vm284, %v882, 0
        %v940 = vsel %vm284, %v883, 0
        %v943 = vsel %vm284, %v884, 0
        %v946 = vsel %vm284, %v885, 0
        %v949 = vsel %vm284, %v886, 0
        %v952 = vsel %vm284, %v887, 0
        %v955 = vsel %vm284, %v888, 0
        %v958 = vsel %vm284, %v889, 0
        %v961 = vsel %vm284, %v890, 0
        %v964 = vsel %vm284, %v891, 0
        %v967 = vsel %vm284, %v892, 0
        %v970 = vsel %vm284, %v893, 0
        %v973 = vsel %vm284, %v894, 0
        %v976 = vsel %vm284, %v895, 0
        %v979 = vsel %vm284, %v896, 0
        %v982 = vsel %vm284, %v897, 0
        %v985 = vsel %vm369, %v899, 0
        %987 = vmatprep.subr.mxu0 0.0
        %988 = vmatpush1.msra.mxu0 %v985
        %989 = vmatprep.subr.mxu0 0.0
        %990 = vmatpush1.msra.mxu0 0.0
        %991 = vmatprep.subr.mxu0 0.0
        %992 = vmatpush1.msra.mxu0 0.0
        %993 = vmatprep.subr.mxu0 0.0
        %994 = vmatpush1.msra.mxu0 0.0
        %995 = vmatprep.subr.mxu0 0.0
        %996 = vmatpush1.msra.mxu0 0.0
        %997 = vmatprep.subr.mxu0 0.0
        %998 = vmatpush1.msra.mxu0 0.0
        %999 = vmatprep.subr.mxu0 0.0
        %1000 = vmatpush1.msra.mxu0 0.0
        %1001 = vmatprep.subr.mxu0 0.0
        %1002 = vmatpush1.msra.mxu0 0.0
        %1003 = vmatprep.subr.mxu0 0.0
        %1004 = vmatpush1.msra.mxu0 0.0
        %1005 = vmatprep.subr.mxu0 0.0
        %1006 = vmatpush1.msra.mxu0 0.0
        %1007 = vmatprep.subr.mxu0 0.0
        %1008 = vmatpush1.msra.mxu0 0.0
        %1009 = vmatprep.subr.mxu0 0.0
        %1010 = vmatpush1.msra.mxu0 0.0
        %1011 = vmatprep.subr.mxu0 0.0
        %1012 = vmatpush1.msra.mxu0 0.0
        %1013 = vmatprep.subr.mxu0 0.0
        %1014 = vmatpush1.msra.mxu0 0.0
        %1015 = vmatprep.subr.mxu0 0.0
        %1016 = vmatpush1.msra.mxu0 0.0
        %1017 = vmatprep.subr.mxu0 0.0
        %1018 = vmatpush1.msra.mxu0 0.0
        %1019 = vmatprep.subr.mxu0 0.0
        %1020 = vmatpush1.msra.mxu0 0.0
        %1021 = vmatprep.subr.mxu0 0.0
        %1022 = vmatpush1.msra.mxu0 0.0
        %1023 = vmatprep.subr.mxu0 0.0
        %1024 = vmatpush1.msra.mxu0 0.0
        %1025 = vmatprep.subr.mxu0 0.0
        %1026 = vmatpush1.msra.mxu0 0.0
        %1027 = vmatprep.subr.mxu0 0.0
        %1028 = vmatpush1.msra.mxu0 0.0
        %1029 = vmatprep.subr.mxu0 0.0
        %1030 = vmatpush1.msra.mxu0 0.0
        %1031 = vmatprep.subr.mxu0 0.0
        %1032 = vmatpush1.msra.mxu0 0.0
        %1033 = vmatprep.subr.mxu0 0.0
        %1034 = vmatpush1.msra.mxu0 0.0
        %1035 = vmatprep.subr.mxu0 0.0
        %1036 = vmatpush1.msra.mxu0 0.0
        %1037 = vmatprep.subr.mxu0 0.0
        %1038 = vmatpush1.msra.mxu0 0.0
        %1039 = vmatprep.subr.mxu0 0.0
        %1040 = vmatpush1.msra.mxu0 0.0
        %1041 = vmatprep.subr.mxu0 0.0
        %1042 = vmatpush1.msra.mxu0 0.0
        %1043 = vmatprep.subr.mxu0 0.0
        %1044 = vmatpush1.msra.mxu0 0.0
        %1045 = vmatprep.subr.mxu0 0.0
        %1046 = vmatpush1.msra.mxu0 0.0
        %1047 = vmatprep.subr.mxu0 0.0
        %1048 = vmatpush1.msra.mxu0 0.0
        %1049 = vmatprep.subr.mxu0 0.0
        %1050 = vmatpush1.msra.mxu0 0.0
        %1051 = vmatprep.mubr.f32.mxu0 0.0
        %1052 = vmatmul.mubr.f32.gmra.mrb[0].mxu0 %v901
        %v1053 = vpop.f32.mrb[0].mxu0
        %v1054 = vadd.f32 0.0, %v1053
        %v1055 = vpop.f32.mrb[0].mxu0
        %1056 = vmatprep.mubr.f32.mxu0 0.0
        %1057 = vmatmul.mubr.f32.gmra.mrb[0].mxu0 %v904
        %v1058 = vpop.f32.mrb[0].mxu0
        %v1059 = vadd.f32 0.0, %v1058
        %v1060 = vpop.f32.mrb[0].mxu0
        %1061 = vmatprep.mubr.f32.mxu0 0.0
        %1062 = vmatmul.mubr.f32.gmra.mrb[0].mxu0 %v907
        %v1063 = vpop.f32.mrb[0].mxu0
        %v1064 = vadd.f32 0.0, %v1063
        %v1065 = vpop.f32.mrb[0].mxu0
        %1066 = vmatprep.mubr.f32.mxu0 0.0
        %1067 = vmatmul.mubr.f32.gmra.mrb[0].mxu0 %v910
        %v1068 = vpop.f32.mrb[0].mxu0
        %v1069 = vadd.f32 0.0, %v1068
        %v1070 = vpop.f32.mrb[0].mxu0
        %1071 = vmatprep.mubr.f32.mxu0 0.0
        %1072 = vmatmul.mubr.f32.gmra.mrb[0].mxu0 %v913
        %v1073 = vpop.f32.mrb[0].mxu0
        %v1074 = vadd.f32 0.0, %v1073
        %v1075 = vpop.f32.mrb[0].mxu0
        %1076 = vmatprep.mubr.f32.mxu0 0.0
        %1077 = vmatmul.mubr.f32.gmra.mrb[0].mxu0 %v916
        %v1078 = vpop.f32.mrb[0].mxu0
        %v1079 = vadd.f32 0.0, %v1078
        %v1080 = vpop.f32.mrb[0].mxu0
        %1081 = vmatprep.mubr.f32.mxu0 0.0
        %1082 = vmatmul.mubr.f32.gmra.mrb[0].mxu0 %v919
        %v1083 = vpop.f32.mrb[0].mxu0
        %v1084 = vadd.f32 0.0, %v1083
        %v1085 = vpop.f32.mrb[0].mxu0
        %1086 = vmatprep.mubr.f32.mxu0 0.0
        %1087 = vmatmul.mubr.f32.gmra.mrb[0].mxu0 %v922
        %v1088 = vpop.f32.mrb[0].mxu0
        %v1089 = vadd.f32 0.0, %v1088
        %v1090 = vpop.f32.mrb[0].mxu0
        %1091 = vmatprep.mubr.f32.mxu0 0.0
        %1092 = vmatmul.mubr.f32.gmra.mrb[0].mxu0 %v925
        %v1093 = vpop.f32.mrb[0].mxu0
        %v1094 = vadd.f32 0.0, %v1093
        %v1095 = vpop.f32.mrb[0].mxu0
        %1096 = vmatprep.mubr.f32.mxu0 0.0
        %1097 = vmatmul.mubr.f32.gmra.mrb[0].mxu0 %v928
        %v1098 = vpop.f32.mrb[0].mxu0
        %v1099 = vadd.f32 0.0, %v1098
        %v1100 = vpop.f32.mrb[0].mxu0
        %1101 = vmatprep.mubr.f32.mxu0 0.0
        %1102 = vmatmul.mubr.f32.gmra.mrb[0].mxu0 %v931
        %v1103 = vpop.f32.mrb[0].mxu0
        %v1104 = vadd.f32 0.0, %v1103
        %v1105 = vpop.f32.mrb[0].mxu0
        %1106 = vmatprep.mubr.f32.mxu0 0.0
        %1107 = vmatmul.mubr.f32.gmra.mrb[0].mxu0 %v934
        %v1108 = vpop.f32.mrb[0].mxu0
        %v1109 = vadd.f32 0.0, %v1108
        %v1110 = vpop.f32.mrb[0].mxu0
        %1111 = vmatprep.mubr.f32.mxu0 0.0
        %1112 = vmatmul.mubr.f32.gmra.mrb[0].mxu0 %v937
        %v1113 = vpop.f32.mrb[0].mxu0
        %v1114 = vadd.f32 0.0, %v1113
        %v1115 = vpop.f32.mrb[0].mxu0
        %1116 = vmatprep.mubr.f32.mxu0 0.0
        %1117 = vmatmul.mubr.f32.gmra.mrb[0].mxu0 %v940
        %v1118 = vpop.f32.mrb[0].mxu0
        %v1119 = vadd.f32 0.0, %v1118
        %v1120 = vpop.f32.mrb[0].mxu0
        %1121 = vmatprep.mubr.f32.mxu0 0.0
        %1122 = vmatmul.mubr.f32.gmra.mrb[0].mxu0 %v943
        %v1123 = vpop.f32.mrb[0].mxu0
        %v1124 = vadd.f32 0.0, %v1123
        %v1125 = vpop.f32.mrb[0].mxu0
        %1126 = vmatprep.mubr.f32.mxu0 0.0
        %1127 = vmatmul.mubr.f32.gmra.mrb[0].mxu0 %v946
        %v1128 = vpop.f32.mrb[0].mxu0
        %v1129 = vadd.f32 0.0, %v1128
        %v1130 = vpop.f32.mrb[0].mxu0
        %1131 = vmatprep.mubr.f32.mxu0 0.0
        %1132 = vmatmul.mubr.f32.gmra.mrb[0].mxu0 %v949
        %v1133 = vpop.f32.mrb[0].mxu0
        %v1134 = vadd.f32 0.0, %v1133
        %v1135 = vpop.f32.mrb[0].mxu0
        %1136 = vmatprep.mubr.f32.mxu0 0.0
        %1137 = vmatmul.mubr.f32.gmra.mrb[0].mxu0 %v952
        %v1138 = vpop.f32.mrb[0].mxu0
        %v1139 = vadd.f32 0.0, %v1138
        %v1140 = vpop.f32.mrb[0].mxu0
        %1141 = vmatprep.mubr.f32.mxu0 0.0
        %1142 = vmatmul.mubr.f32.gmra.mrb[0].mxu0 %v955
        %v1143 = vpop.f32.mrb[0].mxu0
        %v1144 = vadd.f32 0.0, %v1143
        %v1145 = vpop.f32.mrb[0].mxu0
        %1146 = vmatprep.mubr.f32.mxu0 0.0
        %1147 = vmatmul.mubr.f32.gmra.mrb[0].mxu0 %v958
        %v1148 = vpop.f32.mrb[0].mxu0
        %v1149 = vadd.f32 0.0, %v1148
        %v1150 = vpop.f32.mrb[0].mxu0
        %1151 = vmatprep.mubr.f32.mxu0 0.0
        %1152 = vmatmul.mubr.f32.gmra.mrb[0].mxu0 %v961
        %v1153 = vpop.f32.mrb[0].mxu0
        %v1154 = vadd.f32 0.0, %v1153
        %v1155 = vpop.f32.mrb[0].mxu0
        %1156 = vmatprep.mubr.f32.mxu0 0.0
        %1157 = vmatmul.mubr.f32.gmra.mrb[0].mxu0 %v964
        %v1158 = vpop.f32.mrb[0].mxu0
        %v1159 = vadd.f32 0.0, %v1158
        %v1160 = vpop.f32.mrb[0].mxu0
        %1161 = vmatprep.mubr.f32.mxu0 0.0
        %1162 = vmatmul.mubr.f32.gmra.mrb[0].mxu0 %v967
        %v1163 = vpop.f32.mrb[0].mxu0
        %v1164 = vadd.f32 0.0, %v1163
        %v1165 = vpop.f32.mrb[0].mxu0
        %1166 = vmatprep.mubr.f32.mxu0 0.0
        %1167 = vmatmul.mubr.f32.gmra.mrb[0].mxu0 %v970
        %v1168 = vpop.f32.mrb[0].mxu0
        %v1169 = vadd.f32 0.0, %v1168
        %v1170 = vpop.f32.mrb[0].mxu0
        %1171 = vmatprep.mubr.f32.mxu0 0.0
        %1172 = vmatmul.mubr.f32.gmra.mrb[0].mxu0 %v973
        %v1173 = vpop.f32.mrb[0].mxu0
        %v1174 = vadd.f32 0.0, %v1173
        %v1175 = vpop.f32.mrb[0].mxu0
        %1176 = vmatprep.mubr.f32.mxu0 0.0
        %1177 = vmatmul.mubr.f32.gmra.mrb[0].mxu0 %v976
        %v1178 = vpop.f32.mrb[0].mxu0
        %v1179 = vadd.f32 0.0, %v1178
        %v1180 = vpop.f32.mrb[0].mxu0
        %1181 = vmatprep.mubr.f32.mxu0 0.0
        %1182 = vmatmul.mubr.f32.gmra.mrb[0].mxu0 %v979
        %v1183 = vpop.f32.mrb[0].mxu0
        %v1184 = vadd.f32 0.0, %v1183
        %v1185 = vpop.f32.mrb[0].mxu0
        %1186 = vmatprep.mubr.f32.mxu0 0.0
        %1187 = vmatmul.mubr.f32.gmra.mrb[0].mxu0 %v982
        %v1188 = vpop.f32.mrb[0].mxu0
        %v1189 = vadd.f32 0.0, %v1188
        %v1190 = vpop.f32.mrb[0].mxu0
        %1191 = vdwg.mxu0
        %v1192 = vadd.f32 %v732, %v1054
        %v1193 = vadd.f32 %v737, %v1059
        %v1194 = vadd.f32 %v742, %v1064
        %v1195 = vadd.f32 %v747, %v1069
        %v1196 = vadd.f32 %v752, %v1074
        %v1197 = vadd.f32 %v757, %v1079
        %v1198 = vadd.f32 %v762, %v1084
        %v1199 = vadd.f32 %v767, %v1089
        %v1200 = vadd.f32 %v772, %v1094
        %v1201 = vadd.f32 %v777, %v1099
        %v1202 = vadd.f32 %v782, %v1104
        %v1203 = vadd.f32 %v787, %v1109
        %v1204 = vadd.f32 %v792, %v1114
        %v1205 = vadd.f32 %v797, %v1119
        %v1206 = vadd.f32 %v802, %v1124
        %v1207 = vadd.f32 %v807, %v1129
        %v1208 = vadd.f32 %v812, %v1134
        %v1209 = vadd.f32 %v817, %v1139
        %v1210 = vadd.f32 %v822, %v1144
        %v1211 = vadd.f32 %v827, %v1149
        %v1212 = vadd.f32 %v832, %v1154
        %v1213 = vadd.f32 %v837, %v1159
        %v1214 = vadd.f32 %v842, %v1164
        %v1215 = vadd.f32 %v847, %v1169
        %v1216 = vadd.f32 %v852, %v1174
        %v1217 = vadd.f32 %v857, %v1179
        %v1218 = vadd.f32 %v862, %v1184
        %v1219 = vadd.f32 %v867, %v1189
        %v1220 = vld [vmem:[%s224 + $0x10] sm:$0xff]
        %v1221 = vld [vmem:[%s224 + $0x18] sm:$0xff]
        %v1222 = vld [vmem:[%s224 + $0x20] sm:$0xff]
        %v1223 = vld [vmem:[%s224 + $0x28] sm:$0xff]
        %v1224 = vld [vmem:[%s224 + $0x30] sm:$0xff]
        %v1225 = vld [vmem:[%s224 + $0x38] sm:$0xff]
        %v1226 = vld [vmem:[%s224 + $0x40] sm:$0xff]
        %v1227 = vld [vmem:[%s224 + $0x48] sm:$0xff]
        %v1228 = vld [vmem:[%s224 + $0x50] sm:$0xff]
        %v1229 = vld [vmem:[%s224 + $0x58] sm:$0xff]
        %v1230 = vld [vmem:[%s224 + $0x60] sm:$0xff]
        %v1231 = vld [vmem:[%s224 + $0x68] sm:$0xff]
        %v1232 = vld [vmem:[%s224 + $0x70] sm:$0xff]
        %v1233 = vld [vmem:[%s224 + $0x78] sm:$0xff]
        %v1234 = vld [vmem:[%s224 + $0x80] sm:$0xff]
        %v1235 = vld [vmem:[%s224 + $0x88] sm:$0xff]
        %v1236 = vld [vmem:[%s224 + $0x90] sm:$0xff]
        %v1237 = vld [vmem:[%s224 + $0x98] sm:$0xff]
        %v1238 = vld [vmem:[%s224 + $0xa0] sm:$0xff]
        %v1239 = vld [vmem:[%s224 + $0xa8] sm:$0xff]
        %v1240 = vld [vmem:[%s224 + $0xb0] sm:$0xff]
        %v1241 = vld [vmem:[%s224 + $0xb8] sm:$0xff]
        %v1242 = vld [vmem:[%s224 + $0xc0] sm:$0xff]
        %v1243 = vld [vmem:[%s224 + $0xc8] sm:$0xff]
        %v1244 = vld [vmem:[%s224 + $0xd0] sm:$0xff]
        %v1245 = vld [vmem:[%s224 + $0xd8] sm:$0xff]
        %v1246 = vld [vmem:[%s224 + $0xe0] sm:$0xff]
        %v1247 = vld [vmem:[%s224 + $0xe8] sm:$0xff]
        %s1248 = scalar_lea.vmem %s2, 12
        %v1249 = vld [vmem:[%s1248] sm:$0xf]
        %v1251 = vsel %vm284, %v1220, 0
        %v1254 = vsel %vm284, %v1221, 0
        %v1257 = vsel %vm284, %v1222, 0
        %v1260 = vsel %vm284, %v1223, 0
        %v1263 = vsel %vm284, %v1224, 0
        %v1266 = vsel %vm284, %v1225, 0
        %v1269 = vsel %vm284, %v1226, 0
        %v1272 = vsel %vm284, %v1227, 0
        %v1275 = vsel %vm284, %v1228, 0
        %v1278 = vsel %vm284, %v1229, 0
        %v1281 = vsel %vm284, %v1230, 0
        %v1284 = vsel %vm284, %v1231, 0
        %v1287 = vsel %vm284, %v1232, 0
        %v1290 = vsel %vm284, %v1233, 0
        %v1293 = vsel %vm284, %v1234, 0
        %v1296 = vsel %vm284, %v1235, 0
        %v1299 = vsel %vm284, %v1236, 0
        %v1302 = vsel %vm284, %v1237, 0
        %v1305 = vsel %vm284, %v1238, 0
        %v1308 = vsel %vm284, %v1239, 0
        %v1311 = vsel %vm284, %v1240, 0
        %v1314 = vsel %vm284, %v1241, 0
        %v1317 = vsel %vm284, %v1242, 0
        %v1320 = vsel %vm284, %v1243, 0
        %v1323 = vsel %vm284, %v1244, 0
        %v1326 = vsel %vm284, %v1245, 0
        %v1329 = vsel %vm284, %v1246, 0
        %v1332 = vsel %vm284, %v1247, 0
        %v1335 = vsel %vm369, %v1249, 0
        %1337 = vmatprep.subr.mxu0 0.0
        %1338 = vmatpush1.msra.mxu0 %v1335
        %1339 = vmatprep.subr.mxu0 0.0
        %1340 = vmatpush1.msra.mxu0 0.0
        %1341 = vmatprep.subr.mxu0 0.0
        %1342 = vmatpush1.msra.mxu0 0.0
        %1343 = vmatprep.subr.mxu0 0.0
        %1344 = vmatpush1.msra.mxu0 0.0
        %1345 = vmatprep.subr.mxu0 0.0
        %1346 = vmatpush1.msra.mxu0 0.0
        %1347 = vmatprep.subr.mxu0 0.0
        %1348 = vmatpush1.msra.mxu0 0.0
        %1349 = vmatprep.subr.mxu0 0.0
        %1350 = vmatpush1.msra.mxu0 0.0
        %1351 = vmatprep.subr.mxu0 0.0
        %1352 = vmatpush1.msra.mxu0 0.0
        %1353 = vmatprep.subr.mxu0 0.0
        %1354 = vmatpush1.msra.mxu0 0.0
        %1355 = vmatprep.subr.mxu0 0.0
        %1356 = vmatpush1.msra.mxu0 0.0
        %1357 = vmatprep.subr.mxu0 0.0
        %1358 = vmatpush1.msra.mxu0 0.0
        %1359 = vmatprep.subr.mxu0 0.0
        %1360 = vmatpush1.msra.mxu0 0.0
        %1361 = vmatprep.subr.mxu0 0.0
        %1362 = vmatpush1.msra.mxu0 0.0
        %1363 = vmatprep.subr.mxu0 0.0
        %1364 = vmatpush1.msra.mxu0 0.0
        %1365 = vmatprep.subr.mxu0 0.0
        %1366 = vmatpush1.msra.mxu0 0.0
        %1367 = vmatprep.subr.mxu0 0.0
        %1368 = vmatpush1.msra.mxu0 0.0
        %1369 = vmatprep.subr.mxu0 0.0
        %1370 = vmatpush1.msra.mxu0 0.0
        %1371 = vmatprep.subr.mxu0 0.0
        %1372 = vmatpush1.msra.mxu0 0.0
        %1373 = vmatprep.subr.mxu0 0.0
        %1374 = vmatpush1.msra.mxu0 0.0
        %1375 = vmatprep.subr.mxu0 0.0
        %1376 = vmatpush1.msra.mxu0 0.0
        %1377 = vmatprep.subr.mxu0 0.0
        %1378 = vmatpush1.msra.mxu0 0.0
        %1379 = vmatprep.subr.mxu0 0.0
        %1380 = vmatpush1.msra.mxu0 0.0
        %1381 = vmatprep.subr.mxu0 0.0
        %1382 = vmatpush1.msra.mxu0 0.0
        %1383 = vmatprep.subr.mxu0 0.0
        %1384 = vmatpush1.msra.mxu0 0.0
        %1385 = vmatprep.subr.mxu0 0.0
        %1386 = vmatpush1.msra.mxu0 0.0
        %1387 = vmatprep.subr.mxu0 0.0
        %1388 = vmatpush1.msra.mxu0 0.0
        %1389 = vmatprep.subr.mxu0 0.0
        %1390 = vmatpush1.msra.mxu0 0.0
        %1391 = vmatprep.subr.mxu0 0.0
        %1392 = vmatpush1.msra.mxu0 0.0
        %1393 = vmatprep.subr.mxu0 0.0
        %1394 = vmatpush1.msra.mxu0 0.0
        %1395 = vmatprep.subr.mxu0 0.0
        %1396 = vmatpush1.msra.mxu0 0.0
        %1397 = vmatprep.subr.mxu0 0.0
        %1398 = vmatpush1.msra.mxu0 0.0
        %1399 = vmatprep.subr.mxu0 0.0
        %1400 = vmatpush1.msra.mxu0 0.0
        %1401 = vmatprep.mubr.f32.mxu0 0.0
        %1402 = vmatmul.mubr.f32.gmra.mrb[0].mxu0 %v1251
        %v1403 = vpop.f32.mrb[0].mxu0
        %v1404 = vadd.f32 0.0, %v1403
        %v1405 = vpop.f32.mrb[0].mxu0
        %1406 = vmatprep.mubr.f32.mxu0 0.0
        %1407 = vmatmul.mubr.f32.gmra.mrb[0].mxu0 %v1254
        %v1408 = vpop.f32.mrb[0].mxu0
        %v1409 = vadd.f32 0.0, %v1408
        %v1410 = vpop.f32.mrb[0].mxu0
        %1411 = vmatprep.mubr.f32.mxu0 0.0
        %1412 = vmatmul.mubr.f32.gmra.mrb[0].mxu0 %v1257
        %v1413 = vpop.f32.mrb[0].mxu0
        %v1414 = vadd.f32 0.0, %v1413
        %v1415 = vpop.f32.mrb[0].mxu0
        %1416 = vmatprep.mubr.f32.mxu0 0.0
        %1417 = vmatmul.mubr.f32.gmra.mrb[0].mxu0 %v1260
        %v1418 = vpop.f32.mrb[0].mxu0
        %v1419 = vadd.f32 0.0, %v1418
        %v1420 = vpop.f32.mrb[0].mxu0
        %1421 = vmatprep.mubr.f32.mxu0 0.0
        %1422 = vmatmul.mubr.f32.gmra.mrb[0].mxu0 %v1263
        %v1423 = vpop.f32.mrb[0].mxu0
        %v1424 = vadd.f32 0.0, %v1423
        %v1425 = vpop.f32.mrb[0].mxu0
        %1426 = vmatprep.mubr.f32.mxu0 0.0
        %1427 = vmatmul.mubr.f32.gmra.mrb[0].mxu0 %v1266
        %v1428 = vpop.f32.mrb[0].mxu0
        %v1429 = vadd.f32 0.0, %v1428
        %v1430 = vpop.f32.mrb[0].mxu0
        %1431 = vmatprep.mubr.f32.mxu0 0.0
        %1432 = vmatmul.mubr.f32.gmra.mrb[0].mxu0 %v1269
        %v1433 = vpop.f32.mrb[0].mxu0
        %v1434 = vadd.f32 0.0, %v1433
        %v1435 = vpop.f32.mrb[0].mxu0
        %1436 = vmatprep.mubr.f32.mxu0 0.0
        %1437 = vmatmul.mubr.f32.gmra.mrb[0].mxu0 %v1272
        %v1438 = vpop.f32.mrb[0].mxu0
        %v1439 = vadd.f32 0.0, %v1438
        %v1440 = vpop.f32.mrb[0].mxu0
        %1441 = vmatprep.mubr.f32.mxu0 0.0
        %1442 = vmatmul.mubr.f32.gmra.mrb[0].mxu0 %v1275
        %v1443 = vpop.f32.mrb[0].mxu0
        %v1444 = vadd.f32 0.0, %v1443
        %v1445 = vpop.f32.mrb[0].mxu0
        %1446 = vmatprep.mubr.f32.mxu0 0.0
        %1447 = vmatmul.mubr.f32.gmra.mrb[0].mxu0 %v1278
        %v1448 = vpop.f32.mrb[0].mxu0
        %v1449 = vadd.f32 0.0, %v1448
        %v1450 = vpop.f32.mrb[0].mxu0
        %1451 = vmatprep.mubr.f32.mxu0 0.0
        %1452 = vmatmul.mubr.f32.gmra.mrb[0].mxu0 %v1281
        %v1453 = vpop.f32.mrb[0].mxu0
        %v1454 = vadd.f32 0.0, %v1453
        %v1455 = vpop.f32.mrb[0].mxu0
        %1456 = vmatprep.mubr.f32.mxu0 0.0
        %1457 = vmatmul.mubr.f32.gmra.mrb[0].mxu0 %v1284
        %v1458 = vpop.f32.mrb[0].mxu0
        %v1459 = vadd.f32 0.0, %v1458
        %v1460 = vpop.f32.mrb[0].mxu0
        %1461 = vmatprep.mubr.f32.mxu0 0.0
        %1462 = vmatmul.mubr.f32.gmra.mrb[0].mxu0 %v1287
        %v1463 = vpop.f32.mrb[0].mxu0
        %v1464 = vadd.f32 0.0, %v1463
        %v1465 = vpop.f32.mrb[0].mxu0
        %1466 = vmatprep.mubr.f32.mxu0 0.0
        %1467 = vmatmul.mubr.f32.gmra.mrb[0].mxu0 %v1290
        %v1468 = vpop.f32.mrb[0].mxu0
        %v1469 = vadd.f32 0.0, %v1468
        %v1470 = vpop.f32.mrb[0].mxu0
        %1471 = vmatprep.mubr.f32.mxu0 0.0
        %1472 = vmatmul.mubr.f32.gmra.mrb[0].mxu0 %v1293
        %v1473 = vpop.f32.mrb[0].mxu0
        %v1474 = vadd.f32 0.0, %v1473
        %v1475 = vpop.f32.mrb[0].mxu0
        %1476 = vmatprep.mubr.f32.mxu0 0.0
        %1477 = vmatmul.mubr.f32.gmra.mrb[0].mxu0 %v1296
        %v1478 = vpop.f32.mrb[0].mxu0
        %v1479 = vadd.f32 0.0, %v1478
        %v1480 = vpop.f32.mrb[0].mxu0
        %1481 = vmatprep.mubr.f32.mxu0 0.0
        %1482 = vmatmul.mubr.f32.gmra.mrb[0].mxu0 %v1299
        %v1483 = vpop.f32.mrb[0].mxu0
        %v1484 = vadd.f32 0.0, %v1483
        %v1485 = vpop.f32.mrb[0].mxu0
        %1486 = vmatprep.mubr.f32.mxu0 0.0
        %1487 = vmatmul.mubr.f32.gmra.mrb[0].mxu0 %v1302
        %v1488 = vpop.f32.mrb[0].mxu0
        %v1489 = vadd.f32 0.0, %v1488
        %v1490 = vpop.f32.mrb[0].mxu0
        %1491 = vmatprep.mubr.f32.mxu0 0.0
        %1492 = vmatmul.mubr.f32.gmra.mrb[0].mxu0 %v1305
        %v1493 = vpop.f32.mrb[0].mxu0
        %v1494 = vadd.f32 0.0, %v1493
        %v1495 = vpop.f32.mrb[0].mxu0
        %1496 = vmatprep.mubr.f32.mxu0 0.0
        %1497 = vmatmul.mubr.f32.gmra.mrb[0].mxu0 %v1308
        %v1498 = vpop.f32.mrb[0].mxu0
        %v1499 = vadd.f32 0.0, %v1498
        %v1500 = vpop.f32.mrb[0].mxu0
        %1501 = vmatprep.mubr.f32.mxu0 0.0
        %1502 = vmatmul.mubr.f32.gmra.mrb[0].mxu0 %v1311
        %v1503 = vpop.f32.mrb[0].mxu0
        %v1504 = vadd.f32 0.0, %v1503
        %v1505 = vpop.f32.mrb[0].mxu0
        %1506 = vmatprep.mubr.f32.mxu0 0.0
        %1507 = vmatmul.mubr.f32.gmra.mrb[0].mxu0 %v1314
        %v1508 = vpop.f32.mrb[0].mxu0
        %v1509 = vadd.f32 0.0, %v1508
        %v1510 = vpop.f32.mrb[0].mxu0
        %1511 = vmatprep.mubr.f32.mxu0 0.0
        %1512 = vmatmul.mubr.f32.gmra.mrb[0].mxu0 %v1317
        %v1513 = vpop.f32.mrb[0].mxu0
        %v1514 = vadd.f32 0.0, %v1513
        %v1515 = vpop.f32.mrb[0].mxu0
        %1516 = vmatprep.mubr.f32.mxu0 0.0
        %1517 = vmatmul.mubr.f32.gmra.mrb[0].mxu0 %v1320
        %v1518 = vpop.f32.mrb[0].mxu0
        %v1519 = vadd.f32 0.0, %v1518
        %v1520 = vpop.f32.mrb[0].mxu0
        %1521 = vmatprep.mubr.f32.mxu0 0.0
        %1522 = vmatmul.mubr.f32.gmra.mrb[0].mxu0 %v1323
        %v1523 = vpop.f32.mrb[0].mxu0
        %v1524 = vadd.f32 0.0, %v1523
        %v1525 = vpop.f32.mrb[0].mxu0
        %1526 = vmatprep.mubr.f32.mxu0 0.0
        %1527 = vmatmul.mubr.f32.gmra.mrb[0].mxu0 %v1326
        %v1528 = vpop.f32.mrb[0].mxu0
        %v1529 = vadd.f32 0.0, %v1528
        %v1530 = vpop.f32.mrb[0].mxu0
        %1531 = vmatprep.mubr.f32.mxu0 0.0
        %1532 = vmatmul.mubr.f32.gmra.mrb[0].mxu0 %v1329
        %v1533 = vpop.f32.mrb[0].mxu0
        %v1534 = vadd.f32 0.0, %v1533
        %v1535 = vpop.f32.mrb[0].mxu0
        %1536 = vmatprep.mubr.f32.mxu0 0.0
        %1537 = vmatmul.mubr.f32.gmra.mrb[0].mxu0 %v1332
        %v1538 = vpop.f32.mrb[0].mxu0
        %v1539 = vadd.f32 0.0, %v1538
        %v1540 = vpop.f32.mrb[0].mxu0
        %1541 = vdwg.mxu0
        %v1542 = vadd.f32 %v1192, %v1404
        %v1543 = vadd.f32 %v1193, %v1409
        %v1544 = vadd.f32 %v1194, %v1414
        %v1545 = vadd.f32 %v1195, %v1419
        %v1546 = vadd.f32 %v1196, %v1424
        %v1547 = vadd.f32 %v1197, %v1429
        %v1548 = vadd.f32 %v1198, %v1434
        %v1549 = vadd.f32 %v1199, %v1439
        %v1550 = vadd.f32 %v1200, %v1444
        %v1551 = vadd.f32 %v1201, %v1449
        %v1552 = vadd.f32 %v1202, %v1454
        %v1553 = vadd.f32 %v1203, %v1459
        %v1554 = vadd.f32 %v1204, %v1464
        %v1555 = vadd.f32 %v1205, %v1469
        %v1556 = vadd.f32 %v1206, %v1474
        %v1557 = vadd.f32 %v1207, %v1479
        %v1558 = vadd.f32 %v1208, %v1484
        %v1559 = vadd.f32 %v1209, %v1489
        %v1560 = vadd.f32 %v1210, %v1494
        %v1561 = vadd.f32 %v1211, %v1499
        %v1562 = vadd.f32 %v1212, %v1504
        %v1563 = vadd.f32 %v1213, %v1509
        %v1564 = vadd.f32 %v1214, %v1514
        %v1565 = vadd.f32 %v1215, %v1519
        %v1566 = vadd.f32 %v1216, %v1524
        %v1567 = vadd.f32 %v1217, %v1529
        %v1568 = vadd.f32 %v1218, %v1534
        %v1569 = vadd.f32 %v1219, %v1539
        %v1570 = vld [vmem:[%s224 + $0x11] sm:$0xff]
        %v1571 = vld [vmem:[%s224 + $0x19] sm:$0xff]
        %v1572 = vld [vmem:[%s224 + $0x21] sm:$0xff]
        %v1573 = vld [vmem:[%s224 + $0x29] sm:$0xff]
        %v1574 = vld [vmem:[%s224 + $0x31] sm:$0xff]
        %v1575 = vld [vmem:[%s224 + $0x39] sm:$0xff]
        %v1576 = vld [vmem:[%s224 + $0x41] sm:$0xff]
        %v1577 = vld [vmem:[%s224 + $0x49] sm:$0xff]
        %v1578 = vld [vmem:[%s224 + $0x51] sm:$0xff]
        %v1579 = vld [vmem:[%s224 + $0x59] sm:$0xff]
        %v1580 = vld [vmem:[%s224 + $0x61] sm:$0xff]
        %v1581 = vld [vmem:[%s224 + $0x69] sm:$0xff]
        %v1582 = vld [vmem:[%s224 + $0x71] sm:$0xff]
        %v1583 = vld [vmem:[%s224 + $0x79] sm:$0xff]
        %v1584 = vld [vmem:[%s224 + $0x81] sm:$0xff]
        %v1585 = vld [vmem:[%s224 + $0x89] sm:$0xff]
        %v1586 = vld [vmem:[%s224 + $0x91] sm:$0xff]
        %v1587 = vld [vmem:[%s224 + $0x99] sm:$0xff]
        %v1588 = vld [vmem:[%s224 + $0xa1] sm:$0xff]
        %v1589 = vld [vmem:[%s224 + $0xa9] sm:$0xff]
        %v1590 = vld [vmem:[%s224 + $0xb1] sm:$0xff]
        %v1591 = vld [vmem:[%s224 + $0xb9] sm:$0xff]
        %v1592 = vld [vmem:[%s224 + $0xc1] sm:$0xff]
        %v1593 = vld [vmem:[%s224 + $0xc9] sm:$0xff]
        %v1594 = vld [vmem:[%s224 + $0xd1] sm:$0xff]
        %v1595 = vld [vmem:[%s224 + $0xd9] sm:$0xff]
        %v1596 = vld [vmem:[%s224 + $0xe1] sm:$0xff]
        %v1597 = vld [vmem:[%s224 + $0xe9] sm:$0xff]
        %s1598 = scalar_lea.vmem %s2, 16
        %v1599 = vld [vmem:[%s1598] sm:$0xf]
        %v1601 = vsel %vm284, %v1570, 0
        %v1604 = vsel %vm284, %v1571, 0
        %v1607 = vsel %vm284, %v1572, 0
        %v1610 = vsel %vm284, %v1573, 0
        %v1613 = vsel %vm284, %v1574, 0
        %v1616 = vsel %vm284, %v1575, 0
        %v1619 = vsel %vm284, %v1576, 0
        %v1622 = vsel %vm284, %v1577, 0
        %v1625 = vsel %vm284, %v1578, 0
        %v1628 = vsel %vm284, %v1579, 0
        %v1631 = vsel %vm284, %v1580, 0
        %v1634 = vsel %vm284, %v1581, 0
        %v1637 = vsel %vm284, %v1582, 0
        %v1640 = vsel %vm284, %v1583, 0
        %v1643 = vsel %vm284, %v1584, 0
        %v1646 = vsel %vm284, %v1585, 0
        %v1649 = vsel %vm284, %v1586, 0
        %v1652 = vsel %vm284, %v1587, 0
        %v1655 = vsel %vm284, %v1588, 0
        %v1658 = vsel %vm284, %v1589, 0
        %v1661 = vsel %vm284, %v1590, 0
        %v1664 = vsel %vm284, %v1591, 0
        %v1667 = vsel %vm284, %v1592, 0
        %v1670 = vsel %vm284, %v1593, 0
        %v1673 = vsel %vm284, %v1594, 0
        %v1676 = vsel %vm284, %v1595, 0
        %v1679 = vsel %vm284, %v1596, 0
        %v1682 = vsel %vm284, %v1597, 0
        %v1685 = vsel %vm369, %v1599, 0
        %1687 = vmatprep.subr.mxu0 0.0
        %1688 = vmatpush1.msra.mxu0 %v1685
        %1689 = vmatprep.subr.mxu0 0.0
        %1690 = vmatpush1.msra.mxu0 0.0
        %1691 = vmatprep.subr.mxu0 0.0
        %1692 = vmatpush1.msra.mxu0 0.0
        %1693 = vmatprep.subr.mxu0 0.0
        %1694 = vmatpush1.msra.mxu0 0.0
        %1695 = vmatprep.subr.mxu0 0.0
        %1696 = vmatpush1.msra.mxu0 0.0
        %1697 = vmatprep.subr.mxu0 0.0
        %1698 = vmatpush1.msra.mxu0 0.0
        %1699 = vmatprep.subr.mxu0 0.0
        %1700 = vmatpush1.msra.mxu0 0.0
        %1701 = vmatprep.subr.mxu0 0.0
        %1702 = vmatpush1.msra.mxu0 0.0
        %1703 = vmatprep.subr.mxu0 0.0
        %1704 = vmatpush1.msra.mxu0 0.0
        %1705 = vmatprep.subr.mxu0 0.0
        %1706 = vmatpush1.msra.mxu0 0.0
        %1707 = vmatprep.subr.mxu0 0.0
        %1708 = vmatpush1.msra.mxu0 0.0
        %1709 = vmatprep.subr.mxu0 0.0
        %1710 = vmatpush1.msra.mxu0 0.0
        %1711 = vmatprep.subr.mxu0 0.0
        %1712 = vmatpush1.msra.mxu0 0.0
        %1713 = vmatprep.subr.mxu0 0.0
        %1714 = vmatpush1.msra.mxu0 0.0
        %1715 = vmatprep.subr.mxu0 0.0
        %1716 = vmatpush1.msra.mxu0 0.0
        %1717 = vmatprep.subr.mxu0 0.0
        %1718 = vmatpush1.msra.mxu0 0.0
        %1719 = vmatprep.subr.mxu0 0.0
        %1720 = vmatpush1.msra.mxu0 0.0
        %1721 = vmatprep.subr.mxu0 0.0
        %1722 = vmatpush1.msra.mxu0 0.0
        %1723 = vmatprep.subr.mxu0 0.0
        %1724 = vmatpush1.msra.mxu0 0.0
        %1725 = vmatprep.subr.mxu0 0.0
        %1726 = vmatpush1.msra.mxu0 0.0
        %1727 = vmatprep.subr.mxu0 0.0
        %1728 = vmatpush1.msra.mxu0 0.0
        %1729 = vmatprep.subr.mxu0 0.0
        %1730 = vmatpush1.msra.mxu0 0.0
        %1731 = vmatprep.subr.mxu0 0.0
        %1732 = vmatpush1.msra.mxu0 0.0
        %1733 = vmatprep.subr.mxu0 0.0
        %1734 = vmatpush1.msra.mxu0 0.0
        %1735 = vmatprep.subr.mxu0 0.0
        %1736 = vmatpush1.msra.mxu0 0.0
        %1737 = vmatprep.subr.mxu0 0.0
        %1738 = vmatpush1.msra.mxu0 0.0
        %1739 = vmatprep.subr.mxu0 0.0
        %1740 = vmatpush1.msra.mxu0 0.0
        %1741 = vmatprep.subr.mxu0 0.0
        %1742 = vmatpush1.msra.mxu0 0.0
        %1743 = vmatprep.subr.mxu0 0.0
        %1744 = vmatpush1.msra.mxu0 0.0
        %1745 = vmatprep.subr.mxu0 0.0
        %1746 = vmatpush1.msra.mxu0 0.0
        %1747 = vmatprep.subr.mxu0 0.0
        %1748 = vmatpush1.msra.mxu0 0.0
        %1749 = vmatprep.subr.mxu0 0.0
        %1750 = vmatpush1.msra.mxu0 0.0
        %1751 = vmatprep.mubr.f32.mxu0 0.0
        %1752 = vmatmul.mubr.f32.gmra.mrb[0].mxu0 %v1601
        %v1753 = vpop.f32.mrb[0].mxu0
        %v1754 = vadd.f32 0.0, %v1753
        %v1755 = vpop.f32.mrb[0].mxu0
        %1756 = vmatprep.mubr.f32.mxu0 0.0
        %1757 = vmatmul.mubr.f32.gmra.mrb[0].mxu0 %v1604
        %v1758 = vpop.f32.mrb[0].mxu0
        %v1759 = vadd.f32 0.0, %v1758
        %v1760 = vpop.f32.mrb[0].mxu0
        %1761 = vmatprep.mubr.f32.mxu0 0.0
        %1762 = vmatmul.mubr.f32.gmra.mrb[0].mxu0 %v1607
        %v1763 = vpop.f32.mrb[0].mxu0
        %v1764 = vadd.f32 0.0, %v1763
        %v1765 = vpop.f32.mrb[0].mxu0
        %1766 = vmatprep.mubr.f32.mxu0 0.0
        %1767 = vmatmul.mubr.f32.gmra.mrb[0].mxu0 %v1610
        %v1768 = vpop.f32.mrb[0].mxu0
        %v1769 = vadd.f32 0.0, %v1768
        %v1770 = vpop.f32.mrb[0].mxu0
        %1771 = vmatprep.mubr.f32.mxu0 0.0
        %1772 = vmatmul.mubr.f32.gmra.mrb[0].mxu0 %v1613
        %v1773 = vpop.f32.mrb[0].mxu0
        %v1774 = vadd.f32 0.0, %v1773
        %v1775 = vpop.f32.mrb[0].mxu0
        %1776 = vmatprep.mubr.f32.mxu0 0.0
        %1777 = vmatmul.mubr.f32.gmra.mrb[0].mxu0 %v1616
        %v1778 = vpop.f32.mrb[0].mxu0
        %v1779 = vadd.f32 0.0, %v1778
        %v1780 = vpop.f32.mrb[0].mxu0
        %1781 = vmatprep.mubr.f32.mxu0 0.0
        %1782 = vmatmul.mubr.f32.gmra.mrb[0].mxu0 %v1619
        %v1783 = vpop.f32.mrb[0].mxu0
        %v1784 = vadd.f32 0.0, %v1783
        %v1785 = vpop.f32.mrb[0].mxu0
        %1786 = vmatprep.mubr.f32.mxu0 0.0
        %1787 = vmatmul.mubr.f32.gmra.mrb[0].mxu0 %v1622
        %v1788 = vpop.f32.mrb[0].mxu0
        %v1789 = vadd.f32 0.0, %v1788
        %v1790 = vpop.f32.mrb[0].mxu0
        %1791 = vmatprep.mubr.f32.mxu0 0.0
        %1792 = vmatmul.mubr.f32.gmra.mrb[0].mxu0 %v1625
        %v1793 = vpop.f32.mrb[0].mxu0
        %v1794 = vadd.f32 0.0, %v1793
        %v1795 = vpop.f32.mrb[0].mxu0
        %1796 = vmatprep.mubr.f32.mxu0 0.0
        %1797 = vmatmul.mubr.f32.gmra.mrb[0].mxu0 %v1628
        %v1798 = vpop.f32.mrb[0].mxu0
        %v1799 = vadd.f32 0.0, %v1798
        %v1800 = vpop.f32.mrb[0].mxu0
        %1801 = vmatprep.mubr.f32.mxu0 0.0
        %1802 = vmatmul.mubr.f32.gmra.mrb[0].mxu0 %v1631
        %v1803 = vpop.f32.mrb[0].mxu0
        %v1804 = vadd.f32 0.0, %v1803
        %v1805 = vpop.f32.mrb[0].mxu0
        %1806 = vmatprep.mubr.f32.mxu0 0.0
        %1807 = vmatmul.mubr.f32.gmra.mrb[0].mxu0 %v1634
        %v1808 = vpop.f32.mrb[0].mxu0
        %v1809 = vadd.f32 0.0, %v1808
        %v1810 = vpop.f32.mrb[0].mxu0
        %1811 = vmatprep.mubr.f32.mxu0 0.0
        %1812 = vmatmul.mubr.f32.gmra.mrb[0].mxu0 %v1637
        %v1813 = vpop.f32.mrb[0].mxu0
        %v1814 = vadd.f32 0.0, %v1813
        %v1815 = vpop.f32.mrb[0].mxu0
        %1816 = vmatprep.mubr.f32.mxu0 0.0
        %1817 = vmatmul.mubr.f32.gmra.mrb[0].mxu0 %v1640
        %v1818 = vpop.f32.mrb[0].mxu0
        %v1819 = vadd.f32 0.0, %v1818
        %v1820 = vpop.f32.mrb[0].mxu0
        %1821 = vmatprep.mubr.f32.mxu0 0.0
        %1822 = vmatmul.mubr.f32.gmra.mrb[0].mxu0 %v1643
        %v1823 = vpop.f32.mrb[0].mxu0
        %v1824 = vadd.f32 0.0, %v1823
        %v1825 = vpop.f32.mrb[0].mxu0
        %1826 = vmatprep.mubr.f32.mxu0 0.0
        %1827 = vmatmul.mubr.f32.gmra.mrb[0].mxu0 %v1646
        %v1828 = vpop.f32.mrb[0].mxu0
        %v1829 = vadd.f32 0.0, %v1828
        %v1830 = vpop.f32.mrb[0].mxu0
        %1831 = vmatprep.mubr.f32.mxu0 0.0
        %1832 = vmatmul.mubr.f32.gmra.mrb[0].mxu0 %v1649
        %v1833 = vpop.f32.mrb[0].mxu0
        %v1834 = vadd.f32 0.0, %v1833
        %v1835 = vpop.f32.mrb[0].mxu0
        %1836 = vmatprep.mubr.f32.mxu0 0.0
        %1837 = vmatmul.mubr.f32.gmra.mrb[0].mxu0 %v1652
        %v1838 = vpop.f32.mrb[0].mxu0
        %v1839 = vadd.f32 0.0, %v1838
        %v1840 = vpop.f32.mrb[0].mxu0
        %1841 = vmatprep.mubr.f32.mxu0 0.0
        %1842 = vmatmul.mubr.f32.gmra.mrb[0].mxu0 %v1655
        %v1843 = vpop.f32.mrb[0].mxu0
        %v1844 = vadd.f32 0.0, %v1843
        %v1845 = vpop.f32.mrb[0].mxu0
        %1846 = vmatprep.mubr.f32.mxu0 0.0
        %1847 = vmatmul.mubr.f32.gmra.mrb[0].mxu0 %v1658
        %v1848 = vpop.f32.mrb[0].mxu0
        %v1849 = vadd.f32 0.0, %v1848
        %v1850 = vpop.f32.mrb[0].mxu0
        %1851 = vmatprep.mubr.f32.mxu0 0.0
        %1852 = vmatmul.mubr.f32.gmra.mrb[0].mxu0 %v1661
        %v1853 = vpop.f32.mrb[0].mxu0
        %v1854 = vadd.f32 0.0, %v1853
        %v1855 = vpop.f32.mrb[0].mxu0
        %1856 = vmatprep.mubr.f32.mxu0 0.0
        %1857 = vmatmul.mubr.f32.gmra.mrb[0].mxu0 %v1664
        %v1858 = vpop.f32.mrb[0].mxu0
        %v1859 = vadd.f32 0.0, %v1858
        %v1860 = vpop.f32.mrb[0].mxu0
        %1861 = vmatprep.mubr.f32.mxu0 0.0
        %1862 = vmatmul.mubr.f32.gmra.mrb[0].mxu0 %v1667
        %v1863 = vpop.f32.mrb[0].mxu0
        %v1864 = vadd.f32 0.0, %v1863
        %v1865 = vpop.f32.mrb[0].mxu0
        %1866 = vmatprep.mubr.f32.mxu0 0.0
        %1867 = vmatmul.mubr.f32.gmra.mrb[0].mxu0 %v1670
        %v1868 = vpop.f32.mrb[0].mxu0
        %v1869 = vadd.f32 0.0, %v1868
        %v1870 = vpop.f32.mrb[0].mxu0
        %1871 = vmatprep.mubr.f32.mxu0 0.0
        %1872 = vmatmul.mubr.f32.gmra.mrb[0].mxu0 %v1673
        %v1873 = vpop.f32.mrb[0].mxu0
        %v1874 = vadd.f32 0.0, %v1873
        %v1875 = vpop.f32.mrb[0].mxu0
        %1876 = vmatprep.mubr.f32.mxu0 0.0
        %1877 = vmatmul.mubr.f32.gmra.mrb[0].mxu0 %v1676
        %v1878 = vpop.f32.mrb[0].mxu0
        %v1879 = vadd.f32 0.0, %v1878
        %v1880 = vpop.f32.mrb[0].mxu0
        %1881 = vmatprep.mubr.f32.mxu0 0.0
        %1882 = vmatmul.mubr.f32.gmra.mrb[0].mxu0 %v1679
        %v1883 = vpop.f32.mrb[0].mxu0
        %v1884 = vadd.f32 0.0, %v1883
        %v1885 = vpop.f32.mrb[0].mxu0
        %1886 = vmatprep.mubr.f32.mxu0 0.0
        %1887 = vmatmul.mubr.f32.gmra.mrb[0].mxu0 %v1682
        %v1888 = vpop.f32.mrb[0].mxu0
        %v1889 = vadd.f32 0.0, %v1888
        %v1890 = vpop.f32.mrb[0].mxu0
        %1891 = vdwg.mxu0
        %v1892 = vadd.f32 %v1542, %v1754
        %v1893 = vadd.f32 %v1543, %v1759
        %v1894 = vadd.f32 %v1544, %v1764
        %v1895 = vadd.f32 %v1545, %v1769
        %v1896 = vadd.f32 %v1546, %v1774
        %v1897 = vadd.f32 %v1547, %v1779
        %v1898 = vadd.f32 %v1548, %v1784
        %v1899 = vadd.f32 %v1549, %v1789
        %v1900 = vadd.f32 %v1550, %v1794
        %v1901 = vadd.f32 %v1551, %v1799
        %v1902 = vadd.f32 %v1552, %v1804
        %v1903 = vadd.f32 %v1553, %v1809
        %v1904 = vadd.f32 %v1554, %v1814
        %v1905 = vadd.f32 %v1555, %v1819
        %v1906 = vadd.f32 %v1556, %v1824
        %v1907 = vadd.f32 %v1557, %v1829
        %v1908 = vadd.f32 %v1558, %v1834
        %v1909 = vadd.f32 %v1559, %v1839
        %v1910 = vadd.f32 %v1560, %v1844
        %v1911 = vadd.f32 %v1561, %v1849
        %v1912 = vadd.f32 %v1562, %v1854
        %v1913 = vadd.f32 %v1563, %v1859
        %v1914 = vadd.f32 %v1564, %v1864
        %v1915 = vadd.f32 %v1565, %v1869
        %v1916 = vadd.f32 %v1566, %v1874
        %v1917 = vadd.f32 %v1567, %v1879
        %v1918 = vadd.f32 %v1568, %v1884
        %v1919 = vadd.f32 %v1569, %v1889
        %v1920 = vld [vmem:[%s224 + $0x12] sm:$0xff]
        %v1921 = vld [vmem:[%s224 + $0x1a] sm:$0xff]
        %v1922 = vld [vmem:[%s224 + $0x22] sm:$0xff]
        %v1923 = vld [vmem:[%s224 + $0x2a] sm:$0xff]
        %v1924 = vld [vmem:[%s224 + $0x32] sm:$0xff]
        %v1925 = vld [vmem:[%s224 + $0x3a] sm:$0xff]
        %v1926 = vld [vmem:[%s224 + $0x42] sm:$0xff]
        %v1927 = vld [vmem:[%s224 + $0x4a] sm:$0xff]
        %v1928 = vld [vmem:[%s224 + $0x52] sm:$0xff]
        %v1929 = vld [vmem:[%s224 + $0x5a] sm:$0xff]
        %v1930 = vld [vmem:[%s224 + $0x62] sm:$0xff]
        %v1931 = vld [vmem:[%s224 + $0x6a] sm:$0xff]
        %v1932 = vld [vmem:[%s224 + $0x72] sm:$0xff]
        %v1933 = vld [vmem:[%s224 + $0x7a] sm:$0xff]
        %v1934 = vld [vmem:[%s224 + $0x82] sm:$0xff]
        %v1935 = vld [vmem:[%s224 + $0x8a] sm:$0xff]
        %v1936 = vld [vmem:[%s224 + $0x92] sm:$0xff]
        %v1937 = vld [vmem:[%s224 + $0x9a] sm:$0xff]
        %v1938 = vld [vmem:[%s224 + $0xa2] sm:$0xff]
        %v1939 = vld [vmem:[%s224 + $0xaa] sm:$0xff]
        %v1940 = vld [vmem:[%s224 + $0xb2] sm:$0xff]
        %v1941 = vld [vmem:[%s224 + $0xba] sm:$0xff]
        %v1942 = vld [vmem:[%s224 + $0xc2] sm:$0xff]
        %v1943 = vld [vmem:[%s224 + $0xca] sm:$0xff]
        %v1944 = vld [vmem:[%s224 + $0xd2] sm:$0xff]
        %v1945 = vld [vmem:[%s224 + $0xda] sm:$0xff]
        %v1946 = vld [vmem:[%s224 + $0xe2] sm:$0xff]
        %v1947 = vld [vmem:[%s224 + $0xea] sm:$0xff]
        %s1948 = scalar_lea.vmem %s2, 20
        %v1949 = vld [vmem:[%s1948] sm:$0xf]
        %v1951 = vsel %vm284, %v1920, 0
        %v1954 = vsel %vm284, %v1921, 0
        %v1957 = vsel %vm284, %v1922, 0
        %v1960 = vsel %vm284, %v1923, 0
        %v1963 = vsel %vm284, %v1924, 0
        %v1966 = vsel %vm284, %v1925, 0
        %v1969 = vsel %vm284, %v1926, 0
        %v1972 = vsel %vm284, %v1927, 0
        %v1975 = vsel %vm284, %v1928, 0
        %v1978 = vsel %vm284, %v1929, 0
        %v1981 = vsel %vm284, %v1930, 0
        %v1984 = vsel %vm284, %v1931, 0
        %v1987 = vsel %vm284, %v1932, 0
        %v1990 = vsel %vm284, %v1933, 0
        %v1993 = vsel %vm284, %v1934, 0
        %v1996 = vsel %vm284, %v1935, 0
        %v1999 = vsel %vm284, %v1936, 0
        %v2002 = vsel %vm284, %v1937, 0
        %v2005 = vsel %vm284, %v1938, 0
        %v2008 = vsel %vm284, %v1939, 0
        %v2011 = vsel %vm284, %v1940, 0
        %v2014 = vsel %vm284, %v1941, 0
        %v2017 = vsel %vm284, %v1942, 0
        %v2020 = vsel %vm284, %v1943, 0
        %v2023 = vsel %vm284, %v1944, 0
        %v2026 = vsel %vm284, %v1945, 0
        %v2029 = vsel %vm284, %v1946, 0
        %v2032 = vsel %vm284, %v1947, 0
        %v2035 = vsel %vm369, %v1949, 0
        %2037 = vmatprep.subr.mxu0 0.0
        %2038 = vmatpush1.msra.mxu0 %v2035
        %2039 = vmatprep.subr.mxu0 0.0
        %2040 = vmatpush1.msra.mxu0 0.0
        %2041 = vmatprep.subr.mxu0 0.0
        %2042 = vmatpush1.msra.mxu0 0.0
        %2043 = vmatprep.subr.mxu0 0.0
        %2044 = vmatpush1.msra.mxu0 0.0
        %2045 = vmatprep.subr.mxu0 0.0
        %2046 = vmatpush1.msra.mxu0 0.0
        %2047 = vmatprep.subr.mxu0 0.0
        %2048 = vmatpush1.msra.mxu0 0.0
        %2049 = vmatprep.subr.mxu0 0.0
        %2050 = vmatpush1.msra.mxu0 0.0
        %2051 = vmatprep.subr.mxu0 0.0
        %2052 = vmatpush1.msra.mxu0 0.0
        %2053 = vmatprep.subr.mxu0 0.0
        %2054 = vmatpush1.msra.mxu0 0.0
        %2055 = vmatprep.subr.mxu0 0.0
        %2056 = vmatpush1.msra.mxu0 0.0
        %2057 = vmatprep.subr.mxu0 0.0
        %2058 = vmatpush1.msra.mxu0 0.0
        %2059 = vmatprep.subr.mxu0 0.0
        %2060 = vmatpush1.msra.mxu0 0.0
        %2061 = vmatprep.subr.mxu0 0.0
        %2062 = vmatpush1.msra.mxu0 0.0
        %2063 = vmatprep.subr.mxu0 0.0
        %2064 = vmatpush1.msra.mxu0 0.0
        %2065 = vmatprep.subr.mxu0 0.0
        %2066 = vmatpush1.msra.mxu0 0.0
        %2067 = vmatprep.subr.mxu0 0.0
        %2068 = vmatpush1.msra.mxu0 0.0
        %2069 = vmatprep.subr.mxu0 0.0
        %2070 = vmatpush1.msra.mxu0 0.0
        %2071 = vmatprep.subr.mxu0 0.0
        %2072 = vmatpush1.msra.mxu0 0.0
        %2073 = vmatprep.subr.mxu0 0.0
        %2074 = vmatpush1.msra.mxu0 0.0
        %2075 = vmatprep.subr.mxu0 0.0
        %2076 = vmatpush1.msra.mxu0 0.0
        %2077 = vmatprep.subr.mxu0 0.0
        %2078 = vmatpush1.msra.mxu0 0.0
        %2079 = vmatprep.subr.mxu0 0.0
        %2080 = vmatpush1.msra.mxu0 0.0
        %2081 = vmatprep.subr.mxu0 0.0
        %2082 = vmatpush1.msra.mxu0 0.0
        %2083 = vmatprep.subr.mxu0 0.0
        %2084 = vmatpush1.msra.mxu0 0.0
        %2085 = vmatprep.subr.mxu0 0.0
        %2086 = vmatpush1.msra.mxu0 0.0
        %2087 = vmatprep.subr.mxu0 0.0
        %2088 = vmatpush1.msra.mxu0 0.0
        %2089 = vmatprep.subr.mxu0 0.0
        %2090 = vmatpush1.msra.mxu0 0.0
        %2091 = vmatprep.subr.mxu0 0.0
        %2092 = vmatpush1.msra.mxu0 0.0
        %2093 = vmatprep.subr.mxu0 0.0
        %2094 = vmatpush1.msra.mxu0 0.0
        %2095 = vmatprep.subr.mxu0 0.0
        %2096 = vmatpush1.msra.mxu0 0.0
        %2097 = vmatprep.subr.mxu0 0.0
        %2098 = vmatpush1.msra.mxu0 0.0
        %2099 = vmatprep.subr.mxu0 0.0
        %2100 = vmatpush1.msra.mxu0 0.0
        %2101 = vmatprep.mubr.f32.mxu0 0.0
        %2102 = vmatmul.mubr.f32.gmra.mrb[0].mxu0 %v1951
        %v2103 = vpop.f32.mrb[0].mxu0
        %v2104 = vadd.f32 0.0, %v2103
        %v2105 = vpop.f32.mrb[0].mxu0
        %2106 = vmatprep.mubr.f32.mxu0 0.0
        %2107 = vmatmul.mubr.f32.gmra.mrb[0].mxu0 %v1954
        %v2108 = vpop.f32.mrb[0].mxu0
        %v2109 = vadd.f32 0.0, %v2108
        %v2110 = vpop.f32.mrb[0].mxu0
        %2111 = vmatprep.mubr.f32.mxu0 0.0
        %2112 = vmatmul.mubr.f32.gmra.mrb[0].mxu0 %v1957
        %v2113 = vpop.f32.mrb[0].mxu0
        %v2114 = vadd.f32 0.0, %v2113
        %v2115 = vpop.f32.mrb[0].mxu0
        %2116 = vmatprep.mubr.f32.mxu0 0.0
        %2117 = vmatmul.mubr.f32.gmra.mrb[0].mxu0 %v1960
        %v2118 = vpop.f32.mrb[0].mxu0
        %v2119 = vadd.f32 0.0, %v2118
        %v2120 = vpop.f32.mrb[0].mxu0
        %2121 = vmatprep.mubr.f32.mxu0 0.0
        %2122 = vmatmul.mubr.f32.gmra.mrb[0].mxu0 %v1963
        %v2123 = vpop.f32.mrb[0].mxu0
        %v2124 = vadd.f32 0.0, %v2123
        %v2125 = vpop.f32.mrb[0].mxu0
        %2126 = vmatprep.mubr.f32.mxu0 0.0
        %2127 = vmatmul.mubr.f32.gmra.mrb[0].mxu0 %v1966
        %v2128 = vpop.f32.mrb[0].mxu0
        %v2129 = vadd.f32 0.0, %v2128
        %v2130 = vpop.f32.mrb[0].mxu0
        %2131 = vmatprep.mubr.f32.mxu0 0.0
        %2132 = vmatmul.mubr.f32.gmra.mrb[0].mxu0 %v1969
        %v2133 = vpop.f32.mrb[0].mxu0
        %v2134 = vadd.f32 0.0, %v2133
        %v2135 = vpop.f32.mrb[0].mxu0
        %2136 = vmatprep.mubr.f32.mxu0 0.0
        %2137 = vmatmul.mubr.f32.gmra.mrb[0].mxu0 %v1972
        %v2138 = vpop.f32.mrb[0].mxu0
        %v2139 = vadd.f32 0.0, %v2138
        %v2140 = vpop.f32.mrb[0].mxu0
        %2141 = vmatprep.mubr.f32.mxu0 0.0
        %2142 = vmatmul.mubr.f32.gmra.mrb[0].mxu0 %v1975
        %v2143 = vpop.f32.mrb[0].mxu0
        %v2144 = vadd.f32 0.0, %v2143
        %v2145 = vpop.f32.mrb[0].mxu0
        %2146 = vmatprep.mubr.f32.mxu0 0.0
        %2147 = vmatmul.mubr.f32.gmra.mrb[0].mxu0 %v1978
        %v2148 = vpop.f32.mrb[0].mxu0
        %v2149 = vadd.f32 0.0, %v2148
        %v2150 = vpop.f32.mrb[0].mxu0
        %2151 = vmatprep.mubr.f32.mxu0 0.0
        %2152 = vmatmul.mubr.f32.gmra.mrb[0].mxu0 %v1981
        %v2153 = vpop.f32.mrb[0].mxu0
        %v2154 = vadd.f32 0.0, %v2153
        %v2155 = vpop.f32.mrb[0].mxu0
        %2156 = vmatprep.mubr.f32.mxu0 0.0
        %2157 = vmatmul.mubr.f32.gmra.mrb[0].mxu0 %v1984
        %v2158 = vpop.f32.mrb[0].mxu0
        %v2159 = vadd.f32 0.0, %v2158
        %v2160 = vpop.f32.mrb[0].mxu0
        %2161 = vmatprep.mubr.f32.mxu0 0.0
        %2162 = vmatmul.mubr.f32.gmra.mrb[0].mxu0 %v1987
        %v2163 = vpop.f32.mrb[0].mxu0
        %v2164 = vadd.f32 0.0, %v2163
        %v2165 = vpop.f32.mrb[0].mxu0
        %2166 = vmatprep.mubr.f32.mxu0 0.0
        %2167 = vmatmul.mubr.f32.gmra.mrb[0].mxu0 %v1990
        %v2168 = vpop.f32.mrb[0].mxu0
        %v2169 = vadd.f32 0.0, %v2168
        %v2170 = vpop.f32.mrb[0].mxu0
        %2171 = vmatprep.mubr.f32.mxu0 0.0
        %2172 = vmatmul.mubr.f32.gmra.mrb[0].mxu0 %v1993
        %v2173 = vpop.f32.mrb[0].mxu0
        %v2174 = vadd.f32 0.0, %v2173
        %v2175 = vpop.f32.mrb[0].mxu0
        %2176 = vmatprep.mubr.f32.mxu0 0.0
        %2177 = vmatmul.mubr.f32.gmra.mrb[0].mxu0 %v1996
        %v2178 = vpop.f32.mrb[0].mxu0
        %v2179 = vadd.f32 0.0, %v2178
        %v2180 = vpop.f32.mrb[0].mxu0
        %2181 = vmatprep.mubr.f32.mxu0 0.0
        %2182 = vmatmul.mubr.f32.gmra.mrb[0].mxu0 %v1999
        %v2183 = vpop.f32.mrb[0].mxu0
        %v2184 = vadd.f32 0.0, %v2183
        %v2185 = vpop.f32.mrb[0].mxu0
        %2186 = vmatprep.mubr.f32.mxu0 0.0
        %2187 = vmatmul.mubr.f32.gmra.mrb[0].mxu0 %v2002
        %v2188 = vpop.f32.mrb[0].mxu0
        %v2189 = vadd.f32 0.0, %v2188
        %v2190 = vpop.f32.mrb[0].mxu0
        %2191 = vmatprep.mubr.f32.mxu0 0.0
        %2192 = vmatmul.mubr.f32.gmra.mrb[0].mxu0 %v2005
        %v2193 = vpop.f32.mrb[0].mxu0
        %v2194 = vadd.f32 0.0, %v2193
        %v2195 = vpop.f32.mrb[0].mxu0
        %2196 = vmatprep.mubr.f32.mxu0 0.0
        %2197 = vmatmul.mubr.f32.gmra.mrb[0].mxu0 %v2008
        %v2198 = vpop.f32.mrb[0].mxu0
        %v2199 = vadd.f32 0.0, %v2198
        %v2200 = vpop.f32.mrb[0].mxu0
        %2201 = vmatprep.mubr.f32.mxu0 0.0
        %2202 = vmatmul.mubr.f32.gmra.mrb[0].mxu0 %v2011
        %v2203 = vpop.f32.mrb[0].mxu0
        %v2204 = vadd.f32 0.0, %v2203
        %v2205 = vpop.f32.mrb[0].mxu0
        %2206 = vmatprep.mubr.f32.mxu0 0.0
        %2207 = vmatmul.mubr.f32.gmra.mrb[0].mxu0 %v2014
        %v2208 = vpop.f32.mrb[0].mxu0
        %v2209 = vadd.f32 0.0, %v2208
        %v2210 = vpop.f32.mrb[0].mxu0
        %2211 = vmatprep.mubr.f32.mxu0 0.0
        %2212 = vmatmul.mubr.f32.gmra.mrb[0].mxu0 %v2017
        %v2213 = vpop.f32.mrb[0].mxu0
        %v2214 = vadd.f32 0.0, %v2213
        %v2215 = vpop.f32.mrb[0].mxu0
        %2216 = vmatprep.mubr.f32.mxu0 0.0
        %2217 = vmatmul.mubr.f32.gmra.mrb[0].mxu0 %v2020
        %v2218 = vpop.f32.mrb[0].mxu0
        %v2219 = vadd.f32 0.0, %v2218
        %v2220 = vpop.f32.mrb[0].mxu0
        %2221 = vmatprep.mubr.f32.mxu0 0.0
        %2222 = vmatmul.mubr.f32.gmra.mrb[0].mxu0 %v2023
        %v2223 = vpop.f32.mrb[0].mxu0
        %v2224 = vadd.f32 0.0, %v2223
        %v2225 = vpop.f32.mrb[0].mxu0
        %2226 = vmatprep.mubr.f32.mxu0 0.0
        %2227 = vmatmul.mubr.f32.gmra.mrb[0].mxu0 %v2026
        %v2228 = vpop.f32.mrb[0].mxu0
        %v2229 = vadd.f32 0.0, %v2228
        %v2230 = vpop.f32.mrb[0].mxu0
        %2231 = vmatprep.mubr.f32.mxu0 0.0
        %2232 = vmatmul.mubr.f32.gmra.mrb[0].mxu0 %v2029
        %v2233 = vpop.f32.mrb[0].mxu0
        %v2234 = vadd.f32 0.0, %v2233
        %v2235 = vpop.f32.mrb[0].mxu0
        %2236 = vmatprep.mubr.f32.mxu0 0.0
        %2237 = vmatmul.mubr.f32.gmra.mrb[0].mxu0 %v2032
        %v2238 = vpop.f32.mrb[0].mxu0
        %v2239 = vadd.f32 0.0, %v2238
        %v2240 = vpop.f32.mrb[0].mxu0
        %2241 = vdwg.mxu0
        %v2242 = vadd.f32 %v1892, %v2104
        %v2243 = vadd.f32 %v1893, %v2109
        %v2244 = vadd.f32 %v1894, %v2114
        %v2245 = vadd.f32 %v1895, %v2119
        %v2246 = vadd.f32 %v1896, %v2124
        %v2247 = vadd.f32 %v1897, %v2129
        %v2248 = vadd.f32 %v1898, %v2134
        %v2249 = vadd.f32 %v1899, %v2139
        %v2250 = vadd.f32 %v1900, %v2144
        %v2251 = vadd.f32 %v1901, %v2149
        %v2252 = vadd.f32 %v1902, %v2154
        %v2253 = vadd.f32 %v1903, %v2159
        %v2254 = vadd.f32 %v1904, %v2164
        %v2255 = vadd.f32 %v1905, %v2169
        %v2256 = vadd.f32 %v1906, %v2174
        %v2257 = vadd.f32 %v1907, %v2179
        %v2258 = vadd.f32 %v1908, %v2184
        %v2259 = vadd.f32 %v1909, %v2189
        %v2260 = vadd.f32 %v1910, %v2194
        %v2261 = vadd.f32 %v1911, %v2199
        %v2262 = vadd.f32 %v1912, %v2204
        %v2263 = vadd.f32 %v1913, %v2209
        %v2264 = vadd.f32 %v1914, %v2214
        %v2265 = vadd.f32 %v1915, %v2219
        %v2266 = vadd.f32 %v1916, %v2224
        %v2267 = vadd.f32 %v1917, %v2229
        %v2268 = vadd.f32 %v1918, %v2234
        %v2269 = vadd.f32 %v1919, %v2239
        %v2270 = vld [vmem:[%s224 + $0x20] sm:$0xff]
        %v2271 = vld [vmem:[%s224 + $0x28] sm:$0xff]
        %v2272 = vld [vmem:[%s224 + $0x30] sm:$0xff]
        %v2273 = vld [vmem:[%s224 + $0x38] sm:$0xff]
        %v2274 = vld [vmem:[%s224 + $0x40] sm:$0xff]
        %v2275 = vld [vmem:[%s224 + $0x48] sm:$0xff]
        %v2276 = vld [vmem:[%s224 + $0x50] sm:$0xff]
        %v2277 = vld [vmem:[%s224 + $0x58] sm:$0xff]
        %v2278 = vld [vmem:[%s224 + $0x60] sm:$0xff]
        %v2279 = vld [vmem:[%s224 + $0x68] sm:$0xff]
        %v2280 = vld [vmem:[%s224 + $0x70] sm:$0xff]
        %v2281 = vld [vmem:[%s224 + $0x78] sm:$0xff]
        %v2282 = vld [vmem:[%s224 + $0x80] sm:$0xff]
        %v2283 = vld [vmem:[%s224 + $0x88] sm:$0xff]
        %v2284 = vld [vmem:[%s224 + $0x90] sm:$0xff]
        %v2285 = vld [vmem:[%s224 + $0x98] sm:$0xff]
        %v2286 = vld [vmem:[%s224 + $0xa0] sm:$0xff]
        %v2287 = vld [vmem:[%s224 + $0xa8] sm:$0xff]
        %v2288 = vld [vmem:[%s224 + $0xb0] sm:$0xff]
        %v2289 = vld [vmem:[%s224 + $0xb8] sm:$0xff]
        %v2290 = vld [vmem:[%s224 + $0xc0] sm:$0xff]
        %v2291 = vld [vmem:[%s224 + $0xc8] sm:$0xff]
        %v2292 = vld [vmem:[%s224 + $0xd0] sm:$0xff]
        %v2293 = vld [vmem:[%s224 + $0xd8] sm:$0xff]
        %v2294 = vld [vmem:[%s224 + $0xe0] sm:$0xff]
        %v2295 = vld [vmem:[%s224 + $0xe8] sm:$0xff]
        %v2296 = vld [vmem:[%s224 + $0xf0] sm:$0xff]
        %v2297 = vld [vmem:[%s224 + $0xf8] sm:$0xff]
        %s2298 = scalar_lea.vmem %s2, 24
        %v2299 = vld [vmem:[%s2298] sm:$0xf]
        %v2301 = vsel %vm284, %v2270, 0
        %v2304 = vsel %vm284, %v2271, 0
        %v2307 = vsel %vm284, %v2272, 0
        %v2310 = vsel %vm284, %v2273, 0
        %v2313 = vsel %vm284, %v2274, 0
        %v2316 = vsel %vm284, %v2275, 0
        %v2319 = vsel %vm284, %v2276, 0
        %v2322 = vsel %vm284, %v2277, 0
        %v2325 = vsel %vm284, %v2278, 0
        %v2328 = vsel %vm284, %v2279, 0
        %v2331 = vsel %vm284, %v2280, 0
        %v2334 = vsel %vm284, %v2281, 0
        %v2337 = vsel %vm284, %v2282, 0
        %v2340 = vsel %vm284, %v2283, 0
        %v2343 = vsel %vm284, %v2284, 0
        %v2346 = vsel %vm284, %v2285, 0
        %v2349 = vsel %vm284, %v2286, 0
        %v2352 = vsel %vm284, %v2287, 0
        %v2355 = vsel %vm284, %v2288, 0
        %v2358 = vsel %vm284, %v2289, 0
        %v2361 = vsel %vm284, %v2290, 0
        %v2364 = vsel %vm284, %v2291, 0
        %v2367 = vsel %vm284, %v2292, 0
        %v2370 = vsel %vm284, %v2293, 0
        %v2373 = vsel %vm284, %v2294, 0
        %v2376 = vsel %vm284, %v2295, 0
        %v2379 = vsel %vm284, %v2296, 0
        %v2382 = vsel %vm284, %v2297, 0
        %v2385 = vsel %vm369, %v2299, 0
        %2387 = vmatprep.subr.mxu0 0.0
        %2388 = vmatpush1.msra.mxu0 %v2385
        %2389 = vmatprep.subr.mxu0 0.0
        %2390 = vmatpush1.msra.mxu0 0.0
        %2391 = vmatprep.subr.mxu0 0.0
        %2392 = vmatpush1.msra.mxu0 0.0
        %2393 = vmatprep.subr.mxu0 0.0
        %2394 = vmatpush1.msra.mxu0 0.0
        %2395 = vmatprep.subr.mxu0 0.0
        %2396 = vmatpush1.msra.mxu0 0.0
        %2397 = vmatprep.subr.mxu0 0.0
        %2398 = vmatpush1.msra.mxu0 0.0
        %2399 = vmatprep.subr.mxu0 0.0
        %2400 = vmatpush1.msra.mxu0 0.0
        %2401 = vmatprep.subr.mxu0 0.0
        %2402 = vmatpush1.msra.mxu0 0.0
        %2403 = vmatprep.subr.mxu0 0.0
        %2404 = vmatpush1.msra.mxu0 0.0
        %2405 = vmatprep.subr.mxu0 0.0
        %2406 = vmatpush1.msra.mxu0 0.0
        %2407 = vmatprep.subr.mxu0 0.0
        %2408 = vmatpush1.msra.mxu0 0.0
        %2409 = vmatprep.subr.mxu0 0.0
        %2410 = vmatpush1.msra.mxu0 0.0
        %2411 = vmatprep.subr.mxu0 0.0
        %2412 = vmatpush1.msra.mxu0 0.0
        %2413 = vmatprep.subr.mxu0 0.0
        %2414 = vmatpush1.msra.mxu0 0.0
        %2415 = vmatprep.subr.mxu0 0.0
        %2416 = vmatpush1.msra.mxu0 0.0
        %2417 = vmatprep.subr.mxu0 0.0
        %2418 = vmatpush1.msra.mxu0 0.0
        %2419 = vmatprep.subr.mxu0 0.0
        %2420 = vmatpush1.msra.mxu0 0.0
        %2421 = vmatprep.subr.mxu0 0.0
        %2422 = vmatpush1.msra.mxu0 0.0
        %2423 = vmatprep.subr.mxu0 0.0
        %2424 = vmatpush1.msra.mxu0 0.0
        %2425 = vmatprep.subr.mxu0 0.0
        %2426 = vmatpush1.msra.mxu0 0.0
        %2427 = vmatprep.subr.mxu0 0.0
        %2428 = vmatpush1.msra.mxu0 0.0
        %2429 = vmatprep.subr.mxu0 0.0
        %2430 = vmatpush1.msra.mxu0 0.0
        %2431 = vmatprep.subr.mxu0 0.0
        %2432 = vmatpush1.msra.mxu0 0.0
        %2433 = vmatprep.subr.mxu0 0.0
        %2434 = vmatpush1.msra.mxu0 0.0
        %2435 = vmatprep.subr.mxu0 0.0
        %2436 = vmatpush1.msra.mxu0 0.0
        %2437 = vmatprep.subr.mxu0 0.0
        %2438 = vmatpush1.msra.mxu0 0.0
        %2439 = vmatprep.subr.mxu0 0.0
        %2440 = vmatpush1.msra.mxu0 0.0
        %2441 = vmatprep.subr.mxu0 0.0
        %2442 = vmatpush1.msra.mxu0 0.0
        %2443 = vmatprep.subr.mxu0 0.0
        %2444 = vmatpush1.msra.mxu0 0.0
        %2445 = vmatprep.subr.mxu0 0.0
        %2446 = vmatpush1.msra.mxu0 0.0
        %2447 = vmatprep.subr.mxu0 0.0
        %2448 = vmatpush1.msra.mxu0 0.0
        %2449 = vmatprep.subr.mxu0 0.0
        %2450 = vmatpush1.msra.mxu0 0.0
        %2451 = vmatprep.mubr.f32.mxu0 0.0
        %2452 = vmatmul.mubr.f32.gmra.mrb[0].mxu0 %v2301
        %v2453 = vpop.f32.mrb[0].mxu0
        %v2454 = vadd.f32 0.0, %v2453
        %v2455 = vpop.f32.mrb[0].mxu0
        %2456 = vmatprep.mubr.f32.mxu0 0.0
        %2457 = vmatmul.mubr.f32.gmra.mrb[0].mxu0 %v2304
        %v2458 = vpop.f32.mrb[0].mxu0
        %v2459 = vadd.f32 0.0, %v2458
        %v2460 = vpop.f32.mrb[0].mxu0
        %2461 = vmatprep.mubr.f32.mxu0 0.0
        %2462 = vmatmul.mubr.f32.gmra.mrb[0].mxu0 %v2307
        %v2463 = vpop.f32.mrb[0].mxu0
        %v2464 = vadd.f32 0.0, %v2463
        %v2465 = vpop.f32.mrb[0].mxu0
        %2466 = vmatprep.mubr.f32.mxu0 0.0
        %2467 = vmatmul.mubr.f32.gmra.mrb[0].mxu0 %v2310
        %v2468 = vpop.f32.mrb[0].mxu0
        %v2469 = vadd.f32 0.0, %v2468
        %v2470 = vpop.f32.mrb[0].mxu0
        %2471 = vmatprep.mubr.f32.mxu0 0.0
        %2472 = vmatmul.mubr.f32.gmra.mrb[0].mxu0 %v2313
        %v2473 = vpop.f32.mrb[0].mxu0
        %v2474 = vadd.f32 0.0, %v2473
        %v2475 = vpop.f32.mrb[0].mxu0
        %2476 = vmatprep.mubr.f32.mxu0 0.0
        %2477 = vmatmul.mubr.f32.gmra.mrb[0].mxu0 %v2316
        %v2478 = vpop.f32.mrb[0].mxu0
        %v2479 = vadd.f32 0.0, %v2478
        %v2480 = vpop.f32.mrb[0].mxu0
        %2481 = vmatprep.mubr.f32.mxu0 0.0
        %2482 = vmatmul.mubr.f32.gmra.mrb[0].mxu0 %v2319
        %v2483 = vpop.f32.mrb[0].mxu0
        %v2484 = vadd.f32 0.0, %v2483
        %v2485 = vpop.f32.mrb[0].mxu0
        %2486 = vmatprep.mubr.f32.mxu0 0.0
        %2487 = vmatmul.mubr.f32.gmra.mrb[0].mxu0 %v2322
        %v2488 = vpop.f32.mrb[0].mxu0
        %v2489 = vadd.f32 0.0, %v2488
        %v2490 = vpop.f32.mrb[0].mxu0
        %2491 = vmatprep.mubr.f32.mxu0 0.0
        %2492 = vmatmul.mubr.f32.gmra.mrb[0].mxu0 %v2325
        %v2493 = vpop.f32.mrb[0].mxu0
        %v2494 = vadd.f32 0.0, %v2493
        %v2495 = vpop.f32.mrb[0].mxu0
        %2496 = vmatprep.mubr.f32.mxu0 0.0
        %2497 = vmatmul.mubr.f32.gmra.mrb[0].mxu0 %v2328
        %v2498 = vpop.f32.mrb[0].mxu0
        %v2499 = vadd.f32 0.0, %v2498
        %v2500 = vpop.f32.mrb[0].mxu0
        %2501 = vmatprep.mubr.f32.mxu0 0.0
        %2502 = vmatmul.mubr.f32.gmra.mrb[0].mxu0 %v2331
        %v2503 = vpop.f32.mrb[0].mxu0
        %v2504 = vadd.f32 0.0, %v2503
        %v2505 = vpop.f32.mrb[0].mxu0
        %2506 = vmatprep.mubr.f32.mxu0 0.0
        %2507 = vmatmul.mubr.f32.gmra.mrb[0].mxu0 %v2334
        %v2508 = vpop.f32.mrb[0].mxu0
        %v2509 = vadd.f32 0.0, %v2508
        %v2510 = vpop.f32.mrb[0].mxu0
        %2511 = vmatprep.mubr.f32.mxu0 0.0
        %2512 = vmatmul.mubr.f32.gmra.mrb[0].mxu0 %v2337
        %v2513 = vpop.f32.mrb[0].mxu0
        %v2514 = vadd.f32 0.0, %v2513
        %v2515 = vpop.f32.mrb[0].mxu0
        %2516 = vmatprep.mubr.f32.mxu0 0.0
        %2517 = vmatmul.mubr.f32.gmra.mrb[0].mxu0 %v2340
        %v2518 = vpop.f32.mrb[0].mxu0
        %v2519 = vadd.f32 0.0, %v2518
        %v2520 = vpop.f32.mrb[0].mxu0
        %2521 = vmatprep.mubr.f32.mxu0 0.0
        %2522 = vmatmul.mubr.f32.gmra.mrb[0].mxu0 %v2343
        %v2523 = vpop.f32.mrb[0].mxu0
        %v2524 = vadd.f32 0.0, %v2523
        %v2525 = vpop.f32.mrb[0].mxu0
        %2526 = vmatprep.mubr.f32.mxu0 0.0
        %2527 = vmatmul.mubr.f32.gmra.mrb[0].mxu0 %v2346
        %v2528 = vpop.f32.mrb[0].mxu0
        %v2529 = vadd.f32 0.0, %v2528
        %v2530 = vpop.f32.mrb[0].mxu0
        %2531 = vmatprep.mubr.f32.mxu0 0.0
        %2532 = vmatmul.mubr.f32.gmra.mrb[0].mxu0 %v2349
        %v2533 = vpop.f32.mrb[0].mxu0
        %v2534 = vadd.f32 0.0, %v2533
        %v2535 = vpop.f32.mrb[0].mxu0
        %2536 = vmatprep.mubr.f32.mxu0 0.0
        %2537 = vmatmul.mubr.f32.gmra.mrb[0].mxu0 %v2352
        %v2538 = vpop.f32.mrb[0].mxu0
        %v2539 = vadd.f32 0.0, %v2538
        %v2540 = vpop.f32.mrb[0].mxu0
        %2541 = vmatprep.mubr.f32.mxu0 0.0
        %2542 = vmatmul.mubr.f32.gmra.mrb[0].mxu0 %v2355
        %v2543 = vpop.f32.mrb[0].mxu0
        %v2544 = vadd.f32 0.0, %v2543
        %v2545 = vpop.f32.mrb[0].mxu0
        %2546 = vmatprep.mubr.f32.mxu0 0.0
        %2547 = vmatmul.mubr.f32.gmra.mrb[0].mxu0 %v2358
        %v2548 = vpop.f32.mrb[0].mxu0
        %v2549 = vadd.f32 0.0, %v2548
        %v2550 = vpop.f32.mrb[0].mxu0
        %2551 = vmatprep.mubr.f32.mxu0 0.0
        %2552 = vmatmul.mubr.f32.gmra.mrb[0].mxu0 %v2361
        %v2553 = vpop.f32.mrb[0].mxu0
        %v2554 = vadd.f32 0.0, %v2553
        %v2555 = vpop.f32.mrb[0].mxu0
        %2556 = vmatprep.mubr.f32.mxu0 0.0
        %2557 = vmatmul.mubr.f32.gmra.mrb[0].mxu0 %v2364
        %v2558 = vpop.f32.mrb[0].mxu0
        %v2559 = vadd.f32 0.0, %v2558
        %v2560 = vpop.f32.mrb[0].mxu0
        %2561 = vmatprep.mubr.f32.mxu0 0.0
        %2562 = vmatmul.mubr.f32.gmra.mrb[0].mxu0 %v2367
        %v2563 = vpop.f32.mrb[0].mxu0
        %v2564 = vadd.f32 0.0, %v2563
        %v2565 = vpop.f32.mrb[0].mxu0
        %2566 = vmatprep.mubr.f32.mxu0 0.0
        %2567 = vmatmul.mubr.f32.gmra.mrb[0].mxu0 %v2370
        %v2568 = vpop.f32.mrb[0].mxu0
        %v2569 = vadd.f32 0.0, %v2568
        %v2570 = vpop.f32.mrb[0].mxu0
        %2571 = vmatprep.mubr.f32.mxu0 0.0
        %2572 = vmatmul.mubr.f32.gmra.mrb[0].mxu0 %v2373
        %v2573 = vpop.f32.mrb[0].mxu0
        %v2574 = vadd.f32 0.0, %v2573
        %v2575 = vpop.f32.mrb[0].mxu0
        %2576 = vmatprep.mubr.f32.mxu0 0.0
        %2577 = vmatmul.mubr.f32.gmra.mrb[0].mxu0 %v2376
        %v2578 = vpop.f32.mrb[0].mxu0
        %v2579 = vadd.f32 0.0, %v2578
        %v2580 = vpop.f32.mrb[0].mxu0
        %2581 = vmatprep.mubr.f32.mxu0 0.0
        %2582 = vmatmul.mubr.f32.gmra.mrb[0].mxu0 %v2379
        %v2583 = vpop.f32.mrb[0].mxu0
        %v2584 = vadd.f32 0.0, %v2583
        %v2585 = vpop.f32.mrb[0].mxu0
        %2586 = vmatprep.mubr.f32.mxu0 0.0
        %2587 = vmatmul.mubr.f32.gmra.mrb[0].mxu0 %v2382
        %v2588 = vpop.f32.mrb[0].mxu0
        %v2589 = vadd.f32 0.0, %v2588
        %v2590 = vpop.f32.mrb[0].mxu0
        %2591 = vdwg.mxu0
        %v2592 = vadd.f32 %v2242, %v2454
        %v2593 = vadd.f32 %v2243, %v2459
        %v2594 = vadd.f32 %v2244, %v2464
        %v2595 = vadd.f32 %v2245, %v2469
        %v2596 = vadd.f32 %v2246, %v2474
        %v2597 = vadd.f32 %v2247, %v2479
        %v2598 = vadd.f32 %v2248, %v2484
        %v2599 = vadd.f32 %v2249, %v2489
        %v2600 = vadd.f32 %v2250, %v2494
        %v2601 = vadd.f32 %v2251, %v2499
        %v2602 = vadd.f32 %v2252, %v2504
        %v2603 = vadd.f32 %v2253, %v2509
        %v2604 = vadd.f32 %v2254, %v2514
        %v2605 = vadd.f32 %v2255, %v2519
        %v2606 = vadd.f32 %v2256, %v2524
        %v2607 = vadd.f32 %v2257, %v2529
        %v2608 = vadd.f32 %v2258, %v2534
        %v2609 = vadd.f32 %v2259, %v2539
        %v2610 = vadd.f32 %v2260, %v2544
        %v2611 = vadd.f32 %v2261, %v2549
        %v2612 = vadd.f32 %v2262, %v2554
        %v2613 = vadd.f32 %v2263, %v2559
        %v2614 = vadd.f32 %v2264, %v2564
        %v2615 = vadd.f32 %v2265, %v2569
        %v2616 = vadd.f32 %v2266, %v2574
        %v2617 = vadd.f32 %v2267, %v2579
        %v2618 = vadd.f32 %v2268, %v2584
        %v2619 = vadd.f32 %v2269, %v2589
        %v2620 = vld [vmem:[%s224 + $0x21] sm:$0xff]
        %v2621 = vld [vmem:[%s224 + $0x29] sm:$0xff]
        %v2622 = vld [vmem:[%s224 + $0x31] sm:$0xff]
        %v2623 = vld [vmem:[%s224 + $0x39] sm:$0xff]
        %v2624 = vld [vmem:[%s224 + $0x41] sm:$0xff]
        %v2625 = vld [vmem:[%s224 + $0x49] sm:$0xff]
        %v2626 = vld [vmem:[%s224 + $0x51] sm:$0xff]
        %v2627 = vld [vmem:[%s224 + $0x59] sm:$0xff]
        %v2628 = vld [vmem:[%s224 + $0x61] sm:$0xff]
        %v2629 = vld [vmem:[%s224 + $0x69] sm:$0xff]
        %v2630 = vld [vmem:[%s224 + $0x71] sm:$0xff]
        %v2631 = vld [vmem:[%s224 + $0x79] sm:$0xff]
        %v2632 = vld [vmem:[%s224 + $0x81] sm:$0xff]
        %v2633 = vld [vmem:[%s224 + $0x89] sm:$0xff]
        %v2634 = vld [vmem:[%s224 + $0x91] sm:$0xff]
        %v2635 = vld [vmem:[%s224 + $0x99] sm:$0xff]
        %v2636 = vld [vmem:[%s224 + $0xa1] sm:$0xff]
        %v2637 = vld [vmem:[%s224 + $0xa9] sm:$0xff]
        %v2638 = vld [vmem:[%s224 + $0xb1] sm:$0xff]
        %v2639 = vld [vmem:[%s224 + $0xb9] sm:$0xff]
        %v2640 = vld [vmem:[%s224 + $0xc1] sm:$0xff]
        %v2641 = vld [vmem:[%s224 + $0xc9] sm:$0xff]
        %v2642 = vld [vmem:[%s224 + $0xd1] sm:$0xff]
        %v2643 = vld [vmem:[%s224 + $0xd9] sm:$0xff]
        %v2644 = vld [vmem:[%s224 + $0xe1] sm:$0xff]
        %v2645 = vld [vmem:[%s224 + $0xe9] sm:$0xff]
        %v2646 = vld [vmem:[%s224 + $0xf1] sm:$0xff]
        %v2647 = vld [vmem:[%s224 + $0xf9] sm:$0xff]
        %s2648 = scalar_lea.vmem %s2, 28
        %v2649 = vld [vmem:[%s2648] sm:$0xf]
        %v2651 = vsel %vm284, %v2620, 0
        %v2654 = vsel %vm284, %v2621, 0
        %v2657 = vsel %vm284, %v2622, 0
        %v2660 = vsel %vm284, %v2623, 0
        %v2663 = vsel %vm284, %v2624, 0
        %v2666 = vsel %vm284, %v2625, 0
        %v2669 = vsel %vm284, %v2626, 0
        %v2672 = vsel %vm284, %v2627, 0
        %v2675 = vsel %vm284, %v2628, 0
        %v2678 = vsel %vm284, %v2629, 0
        %v2681 = vsel %vm284, %v2630, 0
        %v2684 = vsel %vm284, %v2631, 0
        %v2687 = vsel %vm284, %v2632, 0
        %v2690 = vsel %vm284, %v2633, 0
        %v2693 = vsel %vm284, %v2634, 0
        %v2696 = vsel %vm284, %v2635, 0
        %v2699 = vsel %vm284, %v2636, 0
        %v2702 = vsel %vm284, %v2637, 0
        %v2705 = vsel %vm284, %v2638, 0
        %v2708 = vsel %vm284, %v2639, 0
        %v2711 = vsel %vm284, %v2640, 0
        %v2714 = vsel %vm284, %v2641, 0
        %v2717 = vsel %vm284, %v2642, 0
        %v2720 = vsel %vm284, %v2643, 0
        %v2723 = vsel %vm284, %v2644, 0
        %v2726 = vsel %vm284, %v2645, 0
        %v2729 = vsel %vm284, %v2646, 0
        %v2732 = vsel %vm284, %v2647, 0
        %v2735 = vsel %vm369, %v2649, 0
        %2737 = vmatprep.subr.mxu0 0.0
        %2738 = vmatpush1.msra.mxu0 %v2735
        %2739 = vmatprep.subr.mxu0 0.0
        %2740 = vmatpush1.msra.mxu0 0.0
        %2741 = vmatprep.subr.mxu0 0.0
        %2742 = vmatpush1.msra.mxu0 0.0
        %2743 = vmatprep.subr.mxu0 0.0
        %2744 = vmatpush1.msra.mxu0 0.0
        %2745 = vmatprep.subr.mxu0 0.0
        %2746 = vmatpush1.msra.mxu0 0.0
        %2747 = vmatprep.subr.mxu0 0.0
        %2748 = vmatpush1.msra.mxu0 0.0
        %2749 = vmatprep.subr.mxu0 0.0
        %2750 = vmatpush1.msra.mxu0 0.0
        %2751 = vmatprep.subr.mxu0 0.0
        %2752 = vmatpush1.msra.mxu0 0.0
        %2753 = vmatprep.subr.mxu0 0.0
        %2754 = vmatpush1.msra.mxu0 0.0
        %2755 = vmatprep.subr.mxu0 0.0
        %2756 = vmatpush1.msra.mxu0 0.0
        %2757 = vmatprep.subr.mxu0 0.0
        %2758 = vmatpush1.msra.mxu0 0.0
        %2759 = vmatprep.subr.mxu0 0.0
        %2760 = vmatpush1.msra.mxu0 0.0
        %2761 = vmatprep.subr.mxu0 0.0
        %2762 = vmatpush1.msra.mxu0 0.0
        %2763 = vmatprep.subr.mxu0 0.0
        %2764 = vmatpush1.msra.mxu0 0.0
        %2765 = vmatprep.subr.mxu0 0.0
        %2766 = vmatpush1.msra.mxu0 0.0
        %2767 = vmatprep.subr.mxu0 0.0
        %2768 = vmatpush1.msra.mxu0 0.0
        %2769 = vmatprep.subr.mxu0 0.0
        %2770 = vmatpush1.msra.mxu0 0.0
        %2771 = vmatprep.subr.mxu0 0.0
        %2772 = vmatpush1.msra.mxu0 0.0
        %2773 = vmatprep.subr.mxu0 0.0
        %2774 = vmatpush1.msra.mxu0 0.0
        %2775 = vmatprep.subr.mxu0 0.0
        %2776 = vmatpush1.msra.mxu0 0.0
        %2777 = vmatprep.subr.mxu0 0.0
        %2778 = vmatpush1.msra.mxu0 0.0
        %2779 = vmatprep.subr.mxu0 0.0
        %2780 = vmatpush1.msra.mxu0 0.0
        %2781 = vmatprep.subr.mxu0 0.0
        %2782 = vmatpush1.msra.mxu0 0.0
        %2783 = vmatprep.subr.mxu0 0.0
        %2784 = vmatpush1.msra.mxu0 0.0
        %2785 = vmatprep.subr.mxu0 0.0
        %2786 = vmatpush1.msra.mxu0 0.0
        %2787 = vmatprep.subr.mxu0 0.0
        %2788 = vmatpush1.msra.mxu0 0.0
        %2789 = vmatprep.subr.mxu0 0.0
        %2790 = vmatpush1.msra.mxu0 0.0
        %2791 = vmatprep.subr.mxu0 0.0
        %2792 = vmatpush1.msra.mxu0 0.0
        %2793 = vmatprep.subr.mxu0 0.0
        %2794 = vmatpush1.msra.mxu0 0.0
        %2795 = vmatprep.subr.mxu0 0.0
        %2796 = vmatpush1.msra.mxu0 0.0
        %2797 = vmatprep.subr.mxu0 0.0
        %2798 = vmatpush1.msra.mxu0 0.0
        %2799 = vmatprep.subr.mxu0 0.0
        %2800 = vmatpush1.msra.mxu0 0.0
        %2801 = vmatprep.mubr.f32.mxu0 0.0
        %2802 = vmatmul.mubr.f32.gmra.mrb[0].mxu0 %v2651
        %v2803 = vpop.f32.mrb[0].mxu0
        %v2804 = vadd.f32 0.0, %v2803
        %v2805 = vpop.f32.mrb[0].mxu0
        %2806 = vmatprep.mubr.f32.mxu0 0.0
        %2807 = vmatmul.mubr.f32.gmra.mrb[0].mxu0 %v2654
        %v2808 = vpop.f32.mrb[0].mxu0
        %v2809 = vadd.f32 0.0, %v2808
        %v2810 = vpop.f32.mrb[0].mxu0
        %2811 = vmatprep.mubr.f32.mxu0 0.0
        %2812 = vmatmul.mubr.f32.gmra.mrb[0].mxu0 %v2657
        %v2813 = vpop.f32.mrb[0].mxu0
        %v2814 = vadd.f32 0.0, %v2813
        %v2815 = vpop.f32.mrb[0].mxu0
        %2816 = vmatprep.mubr.f32.mxu0 0.0
        %2817 = vmatmul.mubr.f32.gmra.mrb[0].mxu0 %v2660
        %v2818 = vpop.f32.mrb[0].mxu0
        %v2819 = vadd.f32 0.0, %v2818
        %v2820 = vpop.f32.mrb[0].mxu0
        %2821 = vmatprep.mubr.f32.mxu0 0.0
        %2822 = vmatmul.mubr.f32.gmra.mrb[0].mxu0 %v2663
        %v2823 = vpop.f32.mrb[0].mxu0
        %v2824 = vadd.f32 0.0, %v2823
        %v2825 = vpop.f32.mrb[0].mxu0
        %2826 = vmatprep.mubr.f32.mxu0 0.0
        %2827 = vmatmul.mubr.f32.gmra.mrb[0].mxu0 %v2666
        %v2828 = vpop.f32.mrb[0].mxu0
        %v2829 = vadd.f32 0.0, %v2828
        %v2830 = vpop.f32.mrb[0].mxu0
        %2831 = vmatprep.mubr.f32.mxu0 0.0
        %2832 = vmatmul.mubr.f32.gmra.mrb[0].mxu0 %v2669
        %v2833 = vpop.f32.mrb[0].mxu0
        %v2834 = vadd.f32 0.0, %v2833
        %v2835 = vpop.f32.mrb[0].mxu0
        %2836 = vmatprep.mubr.f32.mxu0 0.0
        %2837 = vmatmul.mubr.f32.gmra.mrb[0].mxu0 %v2672
        %v2838 = vpop.f32.mrb[0].mxu0
        %v2839 = vadd.f32 0.0, %v2838
        %v2840 = vpop.f32.mrb[0].mxu0
        %2841 = vmatprep.mubr.f32.mxu0 0.0
        %2842 = vmatmul.mubr.f32.gmra.mrb[0].mxu0 %v2675
        %v2843 = vpop.f32.mrb[0].mxu0
        %v2844 = vadd.f32 0.0, %v2843
        %v2845 = vpop.f32.mrb[0].mxu0
        %2846 = vmatprep.mubr.f32.mxu0 0.0
        %2847 = vmatmul.mubr.f32.gmra.mrb[0].mxu0 %v2678
        %v2848 = vpop.f32.mrb[0].mxu0
        %v2849 = vadd.f32 0.0, %v2848
        %v2850 = vpop.f32.mrb[0].mxu0
        %2851 = vmatprep.mubr.f32.mxu0 0.0
        %2852 = vmatmul.mubr.f32.gmra.mrb[0].mxu0 %v2681
        %v2853 = vpop.f32.mrb[0].mxu0
        %v2854 = vadd.f32 0.0, %v2853
        %v2855 = vpop.f32.mrb[0].mxu0
        %2856 = vmatprep.mubr.f32.mxu0 0.0
        %2857 = vmatmul.mubr.f32.gmra.mrb[0].mxu0 %v2684
        %v2858 = vpop.f32.mrb[0].mxu0
        %v2859 = vadd.f32 0.0, %v2858
        %v2860 = vpop.f32.mrb[0].mxu0
        %2861 = vmatprep.mubr.f32.mxu0 0.0
        %2862 = vmatmul.mubr.f32.gmra.mrb[0].mxu0 %v2687
        %v2863 = vpop.f32.mrb[0].mxu0
        %v2864 = vadd.f32 0.0, %v2863
        %v2865 = vpop.f32.mrb[0].mxu0
        %2866 = vmatprep.mubr.f32.mxu0 0.0
        %2867 = vmatmul.mubr.f32.gmra.mrb[0].mxu0 %v2690
        %v2868 = vpop.f32.mrb[0].mxu0
        %v2869 = vadd.f32 0.0, %v2868
        %v2870 = vpop.f32.mrb[0].mxu0
        %2871 = vmatprep.mubr.f32.mxu0 0.0
        %2872 = vmatmul.mubr.f32.gmra.mrb[0].mxu0 %v2693
        %v2873 = vpop.f32.mrb[0].mxu0
        %v2874 = vadd.f32 0.0, %v2873
        %v2875 = vpop.f32.mrb[0].mxu0
        %2876 = vmatprep.mubr.f32.mxu0 0.0
        %2877 = vmatmul.mubr.f32.gmra.mrb[0].mxu0 %v2696
        %v2878 = vpop.f32.mrb[0].mxu0
        %v2879 = vadd.f32 0.0, %v2878
        %v2880 = vpop.f32.mrb[0].mxu0
        %2881 = vmatprep.mubr.f32.mxu0 0.0
        %2882 = vmatmul.mubr.f32.gmra.mrb[0].mxu0 %v2699
        %v2883 = vpop.f32.mrb[0].mxu0
        %v2884 = vadd.f32 0.0, %v2883
        %v2885 = vpop.f32.mrb[0].mxu0
        %2886 = vmatprep.mubr.f32.mxu0 0.0
        %2887 = vmatmul.mubr.f32.gmra.mrb[0].mxu0 %v2702
        %v2888 = vpop.f32.mrb[0].mxu0
        %v2889 = vadd.f32 0.0, %v2888
        %v2890 = vpop.f32.mrb[0].mxu0
        %2891 = vmatprep.mubr.f32.mxu0 0.0
        %2892 = vmatmul.mubr.f32.gmra.mrb[0].mxu0 %v2705
        %v2893 = vpop.f32.mrb[0].mxu0
        %v2894 = vadd.f32 0.0, %v2893
        %v2895 = vpop.f32.mrb[0].mxu0
        %2896 = vmatprep.mubr.f32.mxu0 0.0
        %2897 = vmatmul.mubr.f32.gmra.mrb[0].mxu0 %v2708
        %v2898 = vpop.f32.mrb[0].mxu0
        %v2899 = vadd.f32 0.0, %v2898
        %v2900 = vpop.f32.mrb[0].mxu0
        %2901 = vmatprep.mubr.f32.mxu0 0.0
        %2902 = vmatmul.mubr.f32.gmra.mrb[0].mxu0 %v2711
        %v2903 = vpop.f32.mrb[0].mxu0
        %v2904 = vadd.f32 0.0, %v2903
        %v2905 = vpop.f32.mrb[0].mxu0
        %2906 = vmatprep.mubr.f32.mxu0 0.0
        %2907 = vmatmul.mubr.f32.gmra.mrb[0].mxu0 %v2714
        %v2908 = vpop.f32.mrb[0].mxu0
        %v2909 = vadd.f32 0.0, %v2908
        %v2910 = vpop.f32.mrb[0].mxu0
        %2911 = vmatprep.mubr.f32.mxu0 0.0
        %2912 = vmatmul.mubr.f32.gmra.mrb[0].mxu0 %v2717
        %v2913 = vpop.f32.mrb[0].mxu0
        %v2914 = vadd.f32 0.0, %v2913
        %v2915 = vpop.f32.mrb[0].mxu0
        %2916 = vmatprep.mubr.f32.mxu0 0.0
        %2917 = vmatmul.mubr.f32.gmra.mrb[0].mxu0 %v2720
        %v2918 = vpop.f32.mrb[0].mxu0
        %v2919 = vadd.f32 0.0, %v2918
        %v2920 = vpop.f32.mrb[0].mxu0
        %2921 = vmatprep.mubr.f32.mxu0 0.0
        %2922 = vmatmul.mubr.f32.gmra.mrb[0].mxu0 %v2723
        %v2923 = vpop.f32.mrb[0].mxu0
        %v2924 = vadd.f32 0.0, %v2923
        %v2925 = vpop.f32.mrb[0].mxu0
        %2926 = vmatprep.mubr.f32.mxu0 0.0
        %2927 = vmatmul.mubr.f32.gmra.mrb[0].mxu0 %v2726
        %v2928 = vpop.f32.mrb[0].mxu0
        %v2929 = vadd.f32 0.0, %v2928
        %v2930 = vpop.f32.mrb[0].mxu0
        %2931 = vmatprep.mubr.f32.mxu0 0.0
        %2932 = vmatmul.mubr.f32.gmra.mrb[0].mxu0 %v2729
        %v2933 = vpop.f32.mrb[0].mxu0
        %v2934 = vadd.f32 0.0, %v2933
        %v2935 = vpop.f32.mrb[0].mxu0
        %2936 = vmatprep.mubr.f32.mxu0 0.0
        %2937 = vmatmul.mubr.f32.gmra.mrb[0].mxu0 %v2732
        %v2938 = vpop.f32.mrb[0].mxu0
        %v2939 = vadd.f32 0.0, %v2938
        %v2940 = vpop.f32.mrb[0].mxu0
        %2941 = vdwg.mxu0
        %v2942 = vadd.f32 %v2592, %v2804
        %v2943 = vadd.f32 %v2593, %v2809
        %v2944 = vadd.f32 %v2594, %v2814
        %v2945 = vadd.f32 %v2595, %v2819
        %v2946 = vadd.f32 %v2596, %v2824
        %v2947 = vadd.f32 %v2597, %v2829
        %v2948 = vadd.f32 %v2598, %v2834
        %v2949 = vadd.f32 %v2599, %v2839
        %v2950 = vadd.f32 %v2600, %v2844
        %v2951 = vadd.f32 %v2601, %v2849
        %v2952 = vadd.f32 %v2602, %v2854
        %v2953 = vadd.f32 %v2603, %v2859
        %v2954 = vadd.f32 %v2604, %v2864
        %v2955 = vadd.f32 %v2605, %v2869
        %v2956 = vadd.f32 %v2606, %v2874
        %v2957 = vadd.f32 %v2607, %v2879
        %v2958 = vadd.f32 %v2608, %v2884
        %v2959 = vadd.f32 %v2609, %v2889
        %v2960 = vadd.f32 %v2610, %v2894
        %v2961 = vadd.f32 %v2611, %v2899
        %v2962 = vadd.f32 %v2612, %v2904
        %v2963 = vadd.f32 %v2613, %v2909
        %v2964 = vadd.f32 %v2614, %v2914
        %v2965 = vadd.f32 %v2615, %v2919
        %v2966 = vadd.f32 %v2616, %v2924
        %v2967 = vadd.f32 %v2617, %v2929
        %v2968 = vadd.f32 %v2618, %v2934
        %v2969 = vadd.f32 %v2619, %v2939
        %v2970 = vld [vmem:[%s224 + $0x22] sm:$0xff]
        %v2971 = vld [vmem:[%s224 + $0x2a] sm:$0xff]
        %v2972 = vld [vmem:[%s224 + $0x32] sm:$0xff]
        %v2973 = vld [vmem:[%s224 + $0x3a] sm:$0xff]
        %v2974 = vld [vmem:[%s224 + $0x42] sm:$0xff]
        %v2975 = vld [vmem:[%s224 + $0x4a] sm:$0xff]
        %v2976 = vld [vmem:[%s224 + $0x52] sm:$0xff]
        %v2977 = vld [vmem:[%s224 + $0x5a] sm:$0xff]
        %v2978 = vld [vmem:[%s224 + $0x62] sm:$0xff]
        %v2979 = vld [vmem:[%s224 + $0x6a] sm:$0xff]
        %v2980 = vld [vmem:[%s224 + $0x72] sm:$0xff]
        %v2981 = vld [vmem:[%s224 + $0x7a] sm:$0xff]
        %v2982 = vld [vmem:[%s224 + $0x82] sm:$0xff]
        %v2983 = vld [vmem:[%s224 + $0x8a] sm:$0xff]
        %v2984 = vld [vmem:[%s224 + $0x92] sm:$0xff]
        %v2985 = vld [vmem:[%s224 + $0x9a] sm:$0xff]
        %v2986 = vld [vmem:[%s224 + $0xa2] sm:$0xff]
        %v2987 = vld [vmem:[%s224 + $0xaa] sm:$0xff]
        %v2988 = vld [vmem:[%s224 + $0xb2] sm:$0xff]
        %v2989 = vld [vmem:[%s224 + $0xba] sm:$0xff]
        %v2990 = vld [vmem:[%s224 + $0xc2] sm:$0xff]
        %v2991 = vld [vmem:[%s224 + $0xca] sm:$0xff]
        %v2992 = vld [vmem:[%s224 + $0xd2] sm:$0xff]
        %v2993 = vld [vmem:[%s224 + $0xda] sm:$0xff]
        %v2994 = vld [vmem:[%s224 + $0xe2] sm:$0xff]
        %v2995 = vld [vmem:[%s224 + $0xea] sm:$0xff]
        %v2996 = vld [vmem:[%s224 + $0xf2] sm:$0xff]
        %v2997 = vld [vmem:[%s224 + $0xfa] sm:$0xff]
        %s2998 = scalar_lea.vmem %s2, 32
        %v2999 = vld [vmem:[%s2998] sm:$0xf]
        %v3001 = vsel %vm284, %v2970, 0
        %v3004 = vsel %vm284, %v2971, 0
        %v3007 = vsel %vm284, %v2972, 0
        %v3010 = vsel %vm284, %v2973, 0
        %v3013 = vsel %vm284, %v2974, 0
        %v3016 = vsel %vm284, %v2975, 0
        %v3019 = vsel %vm284, %v2976, 0
        %v3022 = vsel %vm284, %v2977, 0
        %v3025 = vsel %vm284, %v2978, 0
        %v3028 = vsel %vm284, %v2979, 0
        %v3031 = vsel %vm284, %v2980, 0
        %v3034 = vsel %vm284, %v2981, 0
        %v3037 = vsel %vm284, %v2982, 0
        %v3040 = vsel %vm284, %v2983, 0
        %v3043 = vsel %vm284, %v2984, 0
        %v3046 = vsel %vm284, %v2985, 0
        %v3049 = vsel %vm284, %v2986, 0
        %v3052 = vsel %vm284, %v2987, 0
        %v3055 = vsel %vm284, %v2988, 0
        %v3058 = vsel %vm284, %v2989, 0
        %v3061 = vsel %vm284, %v2990, 0
        %v3064 = vsel %vm284, %v2991, 0
        %v3067 = vsel %vm284, %v2992, 0
        %v3070 = vsel %vm284, %v2993, 0
        %v3073 = vsel %vm284, %v2994, 0
        %v3076 = vsel %vm284, %v2995, 0
        %v3079 = vsel %vm284, %v2996, 0
        %v3082 = vsel %vm284, %v2997, 0
        %v3085 = vsel %vm369, %v2999, 0
        %3087 = vmatprep.subr.mxu0 0.0
        %3088 = vmatpush1.msra.mxu0 %v3085
        %3089 = vmatprep.subr.mxu0 0.0
        %3090 = vmatpush1.msra.mxu0 0.0
        %3091 = vmatprep.subr.mxu0 0.0
        %3092 = vmatpush1.msra.mxu0 0.0
        %3093 = vmatprep.subr.mxu0 0.0
        %3094 = vmatpush1.msra.mxu0 0.0
        %3095 = vmatprep.subr.mxu0 0.0
        %3096 = vmatpush1.msra.mxu0 0.0
        %3097 = vmatprep.subr.mxu0 0.0
        %3098 = vmatpush1.msra.mxu0 0.0
        %3099 = vmatprep.subr.mxu0 0.0
        %3100 = vmatpush1.msra.mxu0 0.0
        %3101 = vmatprep.subr.mxu0 0.0
        %3102 = vmatpush1.msra.mxu0 0.0
        %3103 = vmatprep.subr.mxu0 0.0
        %3104 = vmatpush1.msra.mxu0 0.0
        %3105 = vmatprep.subr.mxu0 0.0
        %3106 = vmatpush1.msra.mxu0 0.0
        %3107 = vmatprep.subr.mxu0 0.0
        %3108 = vmatpush1.msra.mxu0 0.0
        %3109 = vmatprep.subr.mxu0 0.0
        %3110 = vmatpush1.msra.mxu0 0.0
        %3111 = vmatprep.subr.mxu0 0.0
        %3112 = vmatpush1.msra.mxu0 0.0
        %3113 = vmatprep.subr.mxu0 0.0
        %3114 = vmatpush1.msra.mxu0 0.0
        %3115 = vmatprep.subr.mxu0 0.0
        %3116 = vmatpush1.msra.mxu0 0.0
        %3117 = vmatprep.subr.mxu0 0.0
        %3118 = vmatpush1.msra.mxu0 0.0
        %3119 = vmatprep.subr.mxu0 0.0
        %3120 = vmatpush1.msra.mxu0 0.0
        %3121 = vmatprep.subr.mxu0 0.0
        %3122 = vmatpush1.msra.mxu0 0.0
        %3123 = vmatprep.subr.mxu0 0.0
        %3124 = vmatpush1.msra.mxu0 0.0
        %3125 = vmatprep.subr.mxu0 0.0
        %3126 = vmatpush1.msra.mxu0 0.0
        %3127 = vmatprep.subr.mxu0 0.0
        %3128 = vmatpush1.msra.mxu0 0.0
        %3129 = vmatprep.subr.mxu0 0.0
        %3130 = vmatpush1.msra.mxu0 0.0
        %3131 = vmatprep.subr.mxu0 0.0
        %3132 = vmatpush1.msra.mxu0 0.0
        %3133 = vmatprep.subr.mxu0 0.0
        %3134 = vmatpush1.msra.mxu0 0.0
        %3135 = vmatprep.subr.mxu0 0.0
        %3136 = vmatpush1.msra.mxu0 0.0
        %3137 = vmatprep.subr.mxu0 0.0
        %3138 = vmatpush1.msra.mxu0 0.0
        %3139 = vmatprep.subr.mxu0 0.0
        %3140 = vmatpush1.msra.mxu0 0.0
        %3141 = vmatprep.subr.mxu0 0.0
        %3142 = vmatpush1.msra.mxu0 0.0
        %3143 = vmatprep.subr.mxu0 0.0
        %3144 = vmatpush1.msra.mxu0 0.0
        %3145 = vmatprep.subr.mxu0 0.0
        %3146 = vmatpush1.msra.mxu0 0.0
        %3147 = vmatprep.subr.mxu0 0.0
        %3148 = vmatpush1.msra.mxu0 0.0
        %3149 = vmatprep.subr.mxu0 0.0
        %3150 = vmatpush1.msra.mxu0 0.0
        %3151 = vmatprep.mubr.f32.mxu0 0.0
        %3152 = vmatmul.mubr.f32.gmra.mrb[0].mxu0 %v3001
        %v3153 = vpop.f32.mrb[0].mxu0
        %v3154 = vadd.f32 0.0, %v3153
        %v3155 = vpop.f32.mrb[0].mxu0
        %3156 = vmatprep.mubr.f32.mxu0 0.0
        %3157 = vmatmul.mubr.f32.gmra.mrb[0].mxu0 %v3004
        %v3158 = vpop.f32.mrb[0].mxu0
        %v3159 = vadd.f32 0.0, %v3158
        %v3160 = vpop.f32.mrb[0].mxu0
        %3161 = vmatprep.mubr.f32.mxu0 0.0
        %3162 = vmatmul.mubr.f32.gmra.mrb[0].mxu0 %v3007
        %v3163 = vpop.f32.mrb[0].mxu0
        %v3164 = vadd.f32 0.0, %v3163
        %v3165 = vpop.f32.mrb[0].mxu0
        %3166 = vmatprep.mubr.f32.mxu0 0.0
        %3167 = vmatmul.mubr.f32.gmra.mrb[0].mxu0 %v3010
        %v3168 = vpop.f32.mrb[0].mxu0
        %v3169 = vadd.f32 0.0, %v3168
        %v3170 = vpop.f32.mrb[0].mxu0
        %3171 = vmatprep.mubr.f32.mxu0 0.0
        %3172 = vmatmul.mubr.f32.gmra.mrb[0].mxu0 %v3013
        %v3173 = vpop.f32.mrb[0].mxu0
        %v3174 = vadd.f32 0.0, %v3173
        %v3175 = vpop.f32.mrb[0].mxu0
        %3176 = vmatprep.mubr.f32.mxu0 0.0
        %3177 = vmatmul.mubr.f32.gmra.mrb[0].mxu0 %v3016
        %v3178 = vpop.f32.mrb[0].mxu0
        %v3179 = vadd.f32 0.0, %v3178
        %v3180 = vpop.f32.mrb[0].mxu0
        %3181 = vmatprep.mubr.f32.mxu0 0.0
        %3182 = vmatmul.mubr.f32.gmra.mrb[0].mxu0 %v3019
        %v3183 = vpop.f32.mrb[0].mxu0
        %v3184 = vadd.f32 0.0, %v3183
        %v3185 = vpop.f32.mrb[0].mxu0
        %3186 = vmatprep.mubr.f32.mxu0 0.0
        %3187 = vmatmul.mubr.f32.gmra.mrb[0].mxu0 %v3022
        %v3188 = vpop.f32.mrb[0].mxu0
        %v3189 = vadd.f32 0.0, %v3188
        %v3190 = vpop.f32.mrb[0].mxu0
        %3191 = vmatprep.mubr.f32.mxu0 0.0
        %3192 = vmatmul.mubr.f32.gmra.mrb[0].mxu0 %v3025
        %v3193 = vpop.f32.mrb[0].mxu0
        %v3194 = vadd.f32 0.0, %v3193
        %v3195 = vpop.f32.mrb[0].mxu0
        %3196 = vmatprep.mubr.f32.mxu0 0.0
        %3197 = vmatmul.mubr.f32.gmra.mrb[0].mxu0 %v3028
        %v3198 = vpop.f32.mrb[0].mxu0
        %v3199 = vadd.f32 0.0, %v3198
        %v3200 = vpop.f32.mrb[0].mxu0
        %3201 = vmatprep.mubr.f32.mxu0 0.0
        %3202 = vmatmul.mubr.f32.gmra.mrb[0].mxu0 %v3031
        %v3203 = vpop.f32.mrb[0].mxu0
        %v3204 = vadd.f32 0.0, %v3203
        %v3205 = vpop.f32.mrb[0].mxu0
        %3206 = vmatprep.mubr.f32.mxu0 0.0
        %3207 = vmatmul.mubr.f32.gmra.mrb[0].mxu0 %v3034
        %v3208 = vpop.f32.mrb[0].mxu0
        %v3209 = vadd.f32 0.0, %v3208
        %v3210 = vpop.f32.mrb[0].mxu0
        %3211 = vmatprep.mubr.f32.mxu0 0.0
        %3212 = vmatmul.mubr.f32.gmra.mrb[0].mxu0 %v3037
        %v3213 = vpop.f32.mrb[0].mxu0
        %v3214 = vadd.f32 0.0, %v3213
        %v3215 = vpop.f32.mrb[0].mxu0
        %3216 = vmatprep.mubr.f32.mxu0 0.0
        %3217 = vmatmul.mubr.f32.gmra.mrb[0].mxu0 %v3040
        %v3218 = vpop.f32.mrb[0].mxu0
        %v3219 = vadd.f32 0.0, %v3218
        %v3220 = vpop.f32.mrb[0].mxu0
        %3221 = vmatprep.mubr.f32.mxu0 0.0
        %3222 = vmatmul.mubr.f32.gmra.mrb[0].mxu0 %v3043
        %v3223 = vpop.f32.mrb[0].mxu0
        %v3224 = vadd.f32 0.0, %v3223
        %v3225 = vpop.f32.mrb[0].mxu0
        %3226 = vmatprep.mubr.f32.mxu0 0.0
        %3227 = vmatmul.mubr.f32.gmra.mrb[0].mxu0 %v3046
        %v3228 = vpop.f32.mrb[0].mxu0
        %v3229 = vadd.f32 0.0, %v3228
        %v3230 = vpop.f32.mrb[0].mxu0
        %3231 = vmatprep.mubr.f32.mxu0 0.0
        %3232 = vmatmul.mubr.f32.gmra.mrb[0].mxu0 %v3049
        %v3233 = vpop.f32.mrb[0].mxu0
        %v3234 = vadd.f32 0.0, %v3233
        %v3235 = vpop.f32.mrb[0].mxu0
        %3236 = vmatprep.mubr.f32.mxu0 0.0
        %3237 = vmatmul.mubr.f32.gmra.mrb[0].mxu0 %v3052
        %v3238 = vpop.f32.mrb[0].mxu0
        %v3239 = vadd.f32 0.0, %v3238
        %v3240 = vpop.f32.mrb[0].mxu0
        %3241 = vmatprep.mubr.f32.mxu0 0.0
        %3242 = vmatmul.mubr.f32.gmra.mrb[0].mxu0 %v3055
        %v3243 = vpop.f32.mrb[0].mxu0
        %v3244 = vadd.f32 0.0, %v3243
        %v3245 = vpop.f32.mrb[0].mxu0
        %3246 = vmatprep.mubr.f32.mxu0 0.0
        %3247 = vmatmul.mubr.f32.gmra.mrb[0].mxu0 %v3058
        %v3248 = vpop.f32.mrb[0].mxu0
        %v3249 = vadd.f32 0.0, %v3248
        %v3250 = vpop.f32.mrb[0].mxu0
        %3251 = vmatprep.mubr.f32.mxu0 0.0
        %3252 = vmatmul.mubr.f32.gmra.mrb[0].mxu0 %v3061
        %v3253 = vpop.f32.mrb[0].mxu0
        %v3254 = vadd.f32 0.0, %v3253
        %v3255 = vpop.f32.mrb[0].mxu0
        %3256 = vmatprep.mubr.f32.mxu0 0.0
        %3257 = vmatmul.mubr.f32.gmra.mrb[0].mxu0 %v3064
        %v3258 = vpop.f32.mrb[0].mxu0
        %v3259 = vadd.f32 0.0, %v3258
        %v3260 = vpop.f32.mrb[0].mxu0
        %3261 = vmatprep.mubr.f32.mxu0 0.0
        %3262 = vmatmul.mubr.f32.gmra.mrb[0].mxu0 %v3067
        %v3263 = vpop.f32.mrb[0].mxu0
        %v3264 = vadd.f32 0.0, %v3263
        %v3265 = vpop.f32.mrb[0].mxu0
        %3266 = vmatprep.mubr.f32.mxu0 0.0
        %3267 = vmatmul.mubr.f32.gmra.mrb[0].mxu0 %v3070
        %v3268 = vpop.f32.mrb[0].mxu0
        %v3269 = vadd.f32 0.0, %v3268
        %v3270 = vpop.f32.mrb[0].mxu0
        %3271 = vmatprep.mubr.f32.mxu0 0.0
        %3272 = vmatmul.mubr.f32.gmra.mrb[0].mxu0 %v3073
        %v3273 = vpop.f32.mrb[0].mxu0
        %v3274 = vadd.f32 0.0, %v3273
        %v3275 = vpop.f32.mrb[0].mxu0
        %3276 = vmatprep.mubr.f32.mxu0 0.0
        %3277 = vmatmul.mubr.f32.gmra.mrb[0].mxu0 %v3076
        %v3278 = vpop.f32.mrb[0].mxu0
        %v3279 = vadd.f32 0.0, %v3278
        %v3280 = vpop.f32.mrb[0].mxu0
        %3281 = vmatprep.mubr.f32.mxu0 0.0
        %3282 = vmatmul.mubr.f32.gmra.mrb[0].mxu0 %v3079
        %v3283 = vpop.f32.mrb[0].mxu0
        %v3284 = vadd.f32 0.0, %v3283
        %v3285 = vpop.f32.mrb[0].mxu0
        %3286 = vmatprep.mubr.f32.mxu0 0.0
        %3287 = vmatmul.mubr.f32.gmra.mrb[0].mxu0 %v3082
        %v3288 = vpop.f32.mrb[0].mxu0
        %v3289 = vadd.f32 0.0, %v3288
        %v3290 = vpop.f32.mrb[0].mxu0
        %3291 = vdwg.mxu0
        %v3292 = vadd.f32 %v2942, %v3154
        %v3293 = vadd.f32 %v2943, %v3159
        %v3294 = vadd.f32 %v2944, %v3164
        %v3295 = vadd.f32 %v2945, %v3169
        %v3296 = vadd.f32 %v2946, %v3174
        %v3297 = vadd.f32 %v2947, %v3179
        %v3298 = vadd.f32 %v2948, %v3184
        %v3299 = vadd.f32 %v2949, %v3189
        %v3300 = vadd.f32 %v2950, %v3194
        %v3301 = vadd.f32 %v2951, %v3199
        %v3302 = vadd.f32 %v2952, %v3204
        %v3303 = vadd.f32 %v2953, %v3209
        %v3304 = vadd.f32 %v2954, %v3214
        %v3305 = vadd.f32 %v2955, %v3219
        %v3306 = vadd.f32 %v2956, %v3224
        %v3307 = vadd.f32 %v2957, %v3229
        %v3308 = vadd.f32 %v2958, %v3234
        %v3309 = vadd.f32 %v2959, %v3239
        %v3310 = vadd.f32 %v2960, %v3244
        %v3311 = vadd.f32 %v2961, %v3249
        %v3312 = vadd.f32 %v2962, %v3254
        %v3313 = vadd.f32 %v2963, %v3259
        %v3314 = vadd.f32 %v2964, %v3264
        %v3315 = vadd.f32 %v2965, %v3269
        %v3316 = vadd.f32 %v2966, %v3274
        %v3317 = vadd.f32 %v2967, %v3279
        %v3318 = vadd.f32 %v2968, %v3284
        %v3319 = vadd.f32 %v2969, %v3289
        %v3320 = vld [vmem:[%s3] sm:$0x1]
        %v3322 = vlaneseq
        %v3323 = vshrl.u32 %v3322, 7
        %v3324 = vsub.s32 0, %v3323
        %v3325 = vrot.slane %v3320, %v3324
        %v3327 = vadd.f32 %v3292, %v3325
        %v3328 = vadd.f32 %v3293, %v3325
        %v3329 = vadd.f32 %v3294, %v3325
        %v3330 = vadd.f32 %v3295, %v3325
        %v3331 = vadd.f32 %v3296, %v3325
        %v3332 = vadd.f32 %v3297, %v3325
        %v3333 = vadd.f32 %v3298, %v3325
        %v3334 = vadd.f32 %v3299, %v3325
        %v3335 = vadd.f32 %v3300, %v3325
        %v3336 = vadd.f32 %v3301, %v3325
        %v3337 = vadd.f32 %v3302, %v3325
        %v3338 = vadd.f32 %v3303, %v3325
        %v3339 = vadd.f32 %v3304, %v3325
        %v3340 = vadd.f32 %v3305, %v3325
        %v3341 = vadd.f32 %v3306, %v3325
        %v3342 = vadd.f32 %v3307, %v3325
        %v3343 = vadd.f32 %v3308, %v3325
        %v3344 = vadd.f32 %v3309, %v3325
        %v3345 = vadd.f32 %v3310, %v3325
        %v3346 = vadd.f32 %v3311, %v3325
        %v3347 = vadd.f32 %v3312, %v3325
        %v3348 = vadd.f32 %v3313, %v3325
        %v3349 = vadd.f32 %v3314, %v3325
        %v3350 = vadd.f32 %v3315, %v3325
        %v3351 = vadd.f32 %v3316, %v3325
        %v3352 = vadd.f32 %v3317, %v3325
        %v3353 = vadd.f32 %v3318, %v3325
        %v3354 = vadd.f32 %v3319, %v3325
        %v3355 = vmax.f32 %v3327, 0.0
        %v3356 = vmax.f32 %v3328, 0.0
        %v3357 = vmax.f32 %v3329, 0.0
        %v3358 = vmax.f32 %v3330, 0.0
        %v3359 = vmax.f32 %v3331, 0.0
        %v3360 = vmax.f32 %v3332, 0.0
        %v3361 = vmax.f32 %v3333, 0.0
        %v3362 = vmax.f32 %v3334, 0.0
        %v3363 = vmax.f32 %v3335, 0.0
        %v3364 = vmax.f32 %v3336, 0.0
        %v3365 = vmax.f32 %v3337, 0.0
        %v3366 = vmax.f32 %v3338, 0.0
        %v3367 = vmax.f32 %v3339, 0.0
        %v3368 = vmax.f32 %v3340, 0.0
        %v3369 = vmax.f32 %v3341, 0.0
        %v3370 = vmax.f32 %v3342, 0.0
        %v3371 = vmax.f32 %v3343, 0.0
        %v3372 = vmax.f32 %v3344, 0.0
        %v3373 = vmax.f32 %v3345, 0.0
        %v3374 = vmax.f32 %v3346, 0.0
        %v3375 = vmax.f32 %v3347, 0.0
        %v3376 = vmax.f32 %v3348, 0.0
        %v3377 = vmax.f32 %v3349, 0.0
        %v3378 = vmax.f32 %v3350, 0.0
        %v3379 = vmax.f32 %v3351, 0.0
        %v3380 = vmax.f32 %v3352, 0.0
        %v3381 = vmax.f32 %v3353, 0.0
        %v3382 = vmax.f32 %v3354, 0.0
        %vm3383 = vcmask 64512
        %3384 = vst.msk [vmem:[#allocation2] sm:$0xff] %vm3383, %v3355
        %3385 = vst.msk [vmem:[#allocation2 + $0x8] sm:$0xff] %vm3383, %v3356
        %3386 = vst.msk [vmem:[#allocation2 + $0x10] sm:$0xff] %vm3383, %v3357
        %3387 = vst.msk [vmem:[#allocation2 + $0x18] sm:$0xff] %vm3383, %v3358
        %3388 = vst.msk [vmem:[#allocation2 + $0x20] sm:$0xff] %vm3383, %v3359
        %3389 = vst.msk [vmem:[#allocation2 + $0x28] sm:$0xff] %vm3383, %v3360
        %3390 = vst.msk [vmem:[#allocation2 + $0x30] sm:$0xff] %vm3383, %v3361
        %3391 = vst.msk [vmem:[#allocation2 + $0x38] sm:$0xff] %vm3383, %v3362
        %3392 = vst.msk [vmem:[#allocation2 + $0x40] sm:$0xff] %vm3383, %v3363
        %3393 = vst.msk [vmem:[#allocation2 + $0x48] sm:$0xff] %vm3383, %v3364
        %3394 = vst.msk [vmem:[#allocation2 + $0x50] sm:$0xff] %vm3383, %v3365
        %3395 = vst.msk [vmem:[#allocation2 + $0x58] sm:$0xff] %vm3383, %v3366
        %3396 = vst.msk [vmem:[#allocation2 + $0x60] sm:$0xff] %vm3383, %v3367
        %3397 = vst.msk [vmem:[#allocation2 + $0x68] sm:$0xff] %vm3383, %v3368
        %3398 = vst.msk [vmem:[#allocation2 + $0x70] sm:$0xff] %vm3383, %v3369
        %3399 = vst.msk [vmem:[#allocation2 + $0x78] sm:$0xff] %vm3383, %v3370
        %3400 = vst.msk [vmem:[#allocation2 + $0x80] sm:$0xff] %vm3383, %v3371
        %3401 = vst.msk [vmem:[#allocation2 + $0x88] sm:$0xff] %vm3383, %v3372
        %3402 = vst.msk [vmem:[#allocation2 + $0x90] sm:$0xff] %vm3383, %v3373
        %3403 = vst.msk [vmem:[#allocation2 + $0x98] sm:$0xff] %vm3383, %v3374
        %3404 = vst.msk [vmem:[#allocation2 + $0xa0] sm:$0xff] %vm3383, %v3375
        %3405 = vst.msk [vmem:[#allocation2 + $0xa8] sm:$0xff] %vm3383, %v3376
        %3406 = vst.msk [vmem:[#allocation2 + $0xb0] sm:$0xff] %vm3383, %v3377
        %3407 = vst.msk [vmem:[#allocation2 + $0xb8] sm:$0xff] %vm3383, %v3378
        %3408 = vst.msk [vmem:[#allocation2 + $0xc0] sm:$0xff] %vm3383, %v3379
        %3409 = vst.msk [vmem:[#allocation2 + $0xc8] sm:$0xff] %vm3383, %v3380
        %3410 = vst.msk [vmem:[#allocation2 + $0xd0] sm:$0xff] %vm3383, %v3381
        %3411 = vst.msk [vmem:[#allocation2 + $0xd8] sm:$0xff] %vm3383, %v3382
        %v3412 = vld [vmem:[%s4] sm:$0xff]
        %v3413 = vld [vmem:[%s5] sm:$0xff]
        loop: start=0, step=1, limit=8
        $region41: #{tpu_custom_call.1} parent=39 // loop_pre_header
          _
        $region42: #{tpu_custom_call.1} parent=39 // loop_header
          %s3415 = sphi 0, %s3419
          %p3416 = scmp.ge.s32.totalorder %s3415, 8
        $region43: #{tpu_custom_call.1} parent=39 // loop_header_branch
          %3418 = sbr.rel (%p3416) target = $region47
        $region44: #{tpu_custom_call.1} parent=39 // loop_body
          %s3420 = smul.u32 %s3415, 2
          %s3421 = ssub.s32 %s3420, 1
          %p3422 = scmp.gt.s32.totalorder %s3421, 0
          %s3423 = scalar_select %p3422, %s3421, 0
          %p3424 = scmp.lt.s32.totalorder %s3420, 13
          %s3425 = scalar_select %p3424, %s3420, 13
          %s3426 = smul.u32 %s3423, 16
          %s3427 = scalar_lea.vmem [#allocation2], %s3426
          %v3428 = vld [vmem:[%s3427] sm:$0xff]
          %v3429 = vld [vmem:[%s3427 + $0x8] sm:$0x3f]
          %s3430 = smul.u32 %s3425, 16
          %s3431 = scalar_lea.vmem [#allocation2], %s3430
          %v3432 = vld [vmem:[%s3431] sm:$0xff]
          %v3433 = vld [vmem:[%s3431 + $0x8] sm:$0x3f]
          %v3434 = vmax.f32 %v3428, %v3432
          %v3435 = vmax.f32 %v3429, %v3433
          %vm3436 = vcmask 113664
          %v3438 = vsel %vm3436, %v3412, 0
          %vm3440 = vcmask 1045504
          %v3442 = vsel %vm3440, %v3435, 0
          %3444 = vmatprep.subr.mxu0 0.0
          %3445 = vmatpush1.msra.mxu0 %v3434
          %3446 = vmatprep.subr.mxu0 0.0
          %3447 = vmatpush1.msra.mxu0 %v3442
          %3448 = vmatprep.subr.mxu0 0.0
          %3449 = vmatpush1.msra.mxu0 0.0
          %3450 = vmatprep.subr.mxu0 0.0
          %3451 = vmatpush1.msra.mxu0 0.0
          %3452 = vmatprep.subr.mxu0 0.0
          %3453 = vmatpush1.msra.mxu0 0.0
          %3454 = vmatprep.subr.mxu0 0.0
          %3455 = vmatpush1.msra.mxu0 0.0
          %3456 = vmatprep.subr.mxu0 0.0
          %3457 = vmatpush1.msra.mxu0 0.0
          %3458 = vmatprep.subr.mxu0 0.0
          %3459 = vmatpush1.msra.mxu0 0.0
          %3460 = vmatprep.subr.mxu0 0.0
          %3461 = vmatpush1.msra.mxu0 0.0
          %3462 = vmatprep.subr.mxu0 0.0
          %3463 = vmatpush1.msra.mxu0 0.0
          %3464 = vmatprep.subr.mxu0 0.0
          %3465 = vmatpush1.msra.mxu0 0.0
          %3466 = vmatprep.subr.mxu0 0.0
          %3467 = vmatpush1.msra.mxu0 0.0
          %3468 = vmatprep.subr.mxu0 0.0
          %3469 = vmatpush1.msra.mxu0 0.0
          %3470 = vmatprep.subr.mxu0 0.0
          %3471 = vmatpush1.msra.mxu0 0.0
          %3472 = vmatprep.subr.mxu0 0.0
          %3473 = vmatpush1.msra.mxu0 0.0
          %3474 = vmatprep.subr.mxu0 0.0
          %3475 = vmatpush1.msra.mxu0 0.0
          %3476 = vmatprep.subr.mxu0 0.0
          %3477 = vmatpush1.msra.mxu0 0.0
          %3478 = vmatprep.subr.mxu0 0.0
          %3479 = vmatpush1.msra.mxu0 0.0
          %3480 = vmatprep.subr.mxu0 0.0
          %3481 = vmatpush1.msra.mxu0 0.0
          %3482 = vmatprep.subr.mxu0 0.0
          %3483 = vmatpush1.msra.mxu0 0.0
          %3484 = vmatprep.subr.mxu0 0.0
          %3485 = vmatpush1.msra.mxu0 0.0
          %3486 = vmatprep.subr.mxu0 0.0
          %3487 = vmatpush1.msra.mxu0 0.0
          %3488 = vmatprep.subr.mxu0 0.0
          %3489 = vmatpush1.msra.mxu0 0.0
          %3490 = vmatprep.subr.mxu0 0.0
          %3491 = vmatpush1.msra.mxu0 0.0
          %3492 = vmatprep.subr.mxu0 0.0
          %3493 = vmatpush1.msra.mxu0 0.0
          %3494 = vmatprep.subr.mxu0 0.0
          %3495 = vmatpush1.msra.mxu0 0.0
          %3496 = vmatprep.subr.mxu0 0.0
          %3497 = vmatpush1.msra.mxu0 0.0
          %3498 = vmatprep.subr.mxu0 0.0
          %3499 = vmatpush1.msra.mxu0 0.0
          %3500 = vmatprep.subr.mxu0 0.0
          %3501 = vmatpush1.msra.mxu0 0.0
          %3502 = vmatprep.subr.mxu0 0.0
          %3503 = vmatpush1.msra.mxu0 0.0
          %3504 = vmatprep.subr.mxu0 0.0
          %3505 = vmatpush1.msra.mxu0 0.0
          %3506 = vmatprep.subr.mxu0 0.0
          %3507 = vmatpush1.msra.mxu0 0.0
          %3508 = vmatprep.mubr.f32.mxu0 0.0
          %3509 = vmatmul.mubr.f32.gmra.mrb[0].mxu0 %v3438
          %v3510 = vpop.f32.mrb[0].mxu0
          %v3511 = vadd.f32 0.0, %v3510
          %v3512 = vpop.f32.mrb[0].mxu0
          %3513 = vdwg.mxu0
          %v3515 = vsel %vm3436, %v3413, 0
          %3517 = vmatprep.subr.mxu0 0.0
          %3518 = vmatpush1.msra.mxu0 %v3434
          %3519 = vmatprep.subr.mxu0 0.0
          %3520 = vmatpush1.msra.mxu0 %v3442
          %3521 = vmatprep.subr.mxu0 0.0
          %3522 = vmatpush1.msra.mxu0 0.0
          %3523 = vmatprep.subr.mxu0 0.0
          %3524 = vmatpush1.msra.mxu0 0.0
          %3525 = vmatprep.subr.mxu0 0.0
          %3526 = vmatpush1.msra.mxu0 0.0
          %3527 = vmatprep.subr.mxu0 0.0
          %3528 = vmatpush1.msra.mxu0 0.0
          %3529 = vmatprep.subr.mxu0 0.0
          %3530 = vmatpush1.msra.mxu0 0.0
          %3531 = vmatprep.subr.mxu0 0.0
          %3532 = vmatpush1.msra.mxu0 0.0
          %3533 = vmatprep.subr.mxu0 0.0
          %3534 = vmatpush1.msra.mxu0 0.0
          %3535 = vmatprep.subr.mxu0 0.0
          %3536 = vmatpush1.msra.mxu0 0.0
          %3537 = vmatprep.subr.mxu0 0.0
          %3538 = vmatpush1.msra.mxu0 0.0
          %3539 = vmatprep.subr.mxu0 0.0
          %3540 = vmatpush1.msra.mxu0 0.0
          %3541 = vmatprep.subr.mxu0 0.0
          %3542 = vmatpush1.msra.mxu0 0.0
          %3543 = vmatprep.subr.mxu0 0.0
          %3544 = vmatpush1.msra.mxu0 0.0
          %3545 = vmatprep.subr.mxu0 0.0
          %3546 = vmatpush1.msra.mxu0 0.0
          %3547 = vmatprep.subr.mxu0 0.0
          %3548 = vmatpush1.msra.mxu0 0.0
          %3549 = vmatprep.subr.mxu0 0.0
          %3550 = vmatpush1.msra.mxu0 0.0
          %3551 = vmatprep.subr.mxu0 0.0
          %3552 = vmatpush1.msra.mxu0 0.0
          %3553 = vmatprep.subr.mxu0 0.0
          %3554 = vmatpush1.msra.mxu0 0.0
          %3555 = vmatprep.subr.mxu0 0.0
          %3556 = vmatpush1.msra.mxu0 0.0
          %3557 = vmatprep.subr.mxu0 0.0
          %3558 = vmatpush1.msra.mxu0 0.0
          %3559 = vmatprep.subr.mxu0 0.0
          %3560 = vmatpush1.msra.mxu0 0.0
          %3561 = vmatprep.subr.mxu0 0.0
          %3562 = vmatpush1.msra.mxu0 0.0
          %3563 = vmatprep.subr.mxu0 0.0
          %3564 = vmatpush1.msra.mxu0 0.0
          %3565 = vmatprep.subr.mxu0 0.0
          %3566 = vmatpush1.msra.mxu0 0.0
          %3567 = vmatprep.subr.mxu0 0.0
          %3568 = vmatpush1.msra.mxu0 0.0
          %3569 = vmatprep.subr.mxu0 0.0
          %3570 = vmatpush1.msra.mxu0 0.0
          %3571 = vmatprep.subr.mxu0 0.0
          %3572 = vmatpush1.msra.mxu0 0.0
          %3573 = vmatprep.subr.mxu0 0.0
          %3574 = vmatpush1.msra.mxu0 0.0
          %3575 = vmatprep.subr.mxu0 0.0
          %3576 = vmatpush1.msra.mxu0 0.0
          %3577 = vmatprep.subr.mxu0 0.0
          %3578 = vmatpush1.msra.mxu0 0.0
          %3579 = vmatprep.subr.mxu0 0.0
          %3580 = vmatpush1.msra.mxu0 0.0
          %3581 = vmatprep.mubr.f32.mxu0 0.0
          %3582 = vmatmul.mubr.f32.gmra.mrb[0].mxu0 %v3515
          %v3583 = vpop.f32.mrb[0].mxu0
          %v3584 = vadd.f32 0.0, %v3583
          %v3585 = vpop.f32.mrb[0].mxu0
          %3586 = vdwg.mxu0
          %v3587 = vmax.f32 %v3511, %v3584
          %s3588 = smul.u32 %s3415, 8
          %s3589 = scalar_lea.vmem %s219, %s3588 [#allocation5]
          %3590 = vst.msk [vmem:[%s3589] sm:$0xff] %vm3383, %v3587
        $region45: #{tpu_custom_call.1} parent=39 // loop_footer
          %s3419 = sadd.s32 1, %s3415
        $region46: #{tpu_custom_call.1} parent=39 // loop_footer_branch
          %3414 = sbr.rel target = $region42
        $region47: #{tpu_custom_call.1} parent=39 // loop_exit
          _
        %s3591 = sand.u32 %s139, 1
        %s3592 = scalar_lea.sflag [#allocation6], %s3591
        %s3593 = sand.u32 %s139, 1
        %s3594 = smul.addr %s3593, 64
        %s3595 = scalar_lea.vmem [#allocation5], %s3594
        // Predicated region
        $region48: #{tpu_custom_call.1} parent=39 // pred_check
          %p3596 = pneg %p149
        $region49: #{tpu_custom_call.1} parent=39 // pred_check_branch
          %3598 = sbr.rel (%p3596) target = $region51
        $region50: #{tpu_custom_call.1} parent=39 // pred_region
          %s3600 = ssub.s32 1024, 1024
          %3601 = vsyncadd %s3592, %s3600
          %s3602 = smul.addr %s21, 8
          %s3603 = smul.addr %s3602, 128
          %s3604 = scalar_lea.hbm %s6, %s3603
          %s3605 = sshll.u32 %s3595, 4
          %s3606 = int_to_ptr.vmem [resolvable:$true] %s3605
          %3611 = dma.vmem_to_hbm [thread:$0]  %s3606, 1024, %s3604, %s3592, 128, 128, 8
        $region51: #{tpu_custom_call.1} parent=39 // pred_fallthru
          _
      $region40: #{tpu_custom_call.1} parent=5 // pred_fallthru
        _
      %p3612 = scmp.le.s32.totalorder 2, %s16
      // Predicated region
      $region52: #{tpu_custom_call.1} parent=5 // pred_check
        %p3613 = pneg %p3612
      $region53: #{tpu_custom_call.1} parent=5 // pred_check_branch
        %3615 = sbr.rel (%p3613) target = $region55
      $region54: #{tpu_custom_call.1} parent=5 // pred_region
        %s3616 = ssub.s32 %s16, 2
        // Predicated region
        $region56: #{tpu_custom_call.1} parent=54 // pred_check
          %p3617 = pneg %p155
        $region57: #{tpu_custom_call.1} parent=54 // pred_check_branch
          %3619 = sbr.rel (%p3617) target = $region59
        $region58: #{tpu_custom_call.1} parent=54 // pred_region
          %s3620 = sand.u32 %s140, 1
          %s3621 = scalar_lea.sflag [#allocation6], %s3620
          %s3622 = sand.u32 %s140, 1
          %s3623 = smul.addr %s3622, 64
          %s3624 = scalar_lea.vmem [#allocation5], %s3623
          %3625 = dma.done %s3621, 1024
        $region59: #{tpu_custom_call.1} parent=54 // pred_fallthru
          _
      $region55: #{tpu_custom_call.1} parent=5 // pred_fallthru
        _
    $region6: #{tpu_custom_call.1} parent=1 // loop_footer
      %s20 = sadd.s32 1, %s16
    $region7: #{tpu_custom_call.1} parent=1 // loop_footer_branch
      %15 = sbr.rel target = $region3
    $region8: #{tpu_custom_call.1} parent=1 // loop_exit
      _
    %3626 = vsyncpa [#allocation6], 1
    %s3627 = scalar_lea.sflag [#allocation6], 1
    %3628 = vsyncpa %s3627, 1

</llo_original>
